<compile_context>
chip_gen: v7x
topology: tpu7x:2x2x1
jax: 0.10.0
libtpu: 0.0.40
codegen_flags: <defaults>
</compile_context>

<pallas_src>
import functools

import jax
import jax.numpy as jnp
import numpy as np
from jax import lax
from jax.experimental import pallas as pl
from jax.experimental.pallas import tpu as pltpu

_LANES = 128  # trunk width == TPU lane width


def _decoder_kernel(dts_ref, h0_ref, w_ode_ref, b_all_ref, w_trunk_hbm,
                    out_ref, w_trunk_vmem, dma_sem, *, x_size):
    BP, F = h0_ref.shape            # sublane-padded batch (8), lane width (128)
    Tm1 = dts_ref.shape[0]          # traj_len - 1 (static)

    # Kick off the 320 KB trunk/head weight DMA immediately; the strictly
    # dependent RK4 chain below hides it completely off the critical path.
    trunk_cp = pltpu.make_async_copy(w_trunk_hbm, w_trunk_vmem, dma_sem)
    trunk_cp.start()

    w_ode = w_ode_ref[...]          # (F, F): zero-padded (h_size, h_size)
    b_all = b_all_ref[...]          # (8, F)
    # Hoist the bias broadcast out of the 4*(T-1) ode_fn calls.
    b_ode = jnp.broadcast_to(b_all[0:1, :], (BP, F))

    def ode_fn(h):
        # synthetic ode_function: dh/dt = tanh(h @ W_ode + b_ode)
        return jnp.tanh(jnp.dot(h, w_ode, preferred_element_type=jnp.float32) + b_ode)

    # ---- odeint(ode_function, h0, times, method='rk4'): fixed-grid RK4 ----
    h = h0_ref[...]                 # (8,128) = exactly one vreg
    traj = [h]                      # trajectory stays in vregs (T=8 -> 8 vregs)
    for i in range(Tm1):            # traj_len is small -> static unroll
        dt = dts_ref[i]             # scalar SMEM read (before the DMA wait)
        half_dt = 0.5 * dt
        k1 = ode_fn(h)
        k2 = ode_fn(h + half_dt * k1)
        k3 = ode_fn(h + half_dt * k2)
        k4 = ode_fn(h + dt * k3)
        h = h + (dt * (1.0 / 6.0)) * (k1 + 2.0 * k2 + 2.0 * k3 + k4)
        traj.append(h)

    # Tile-aligned sublane concat -> (T*BP, 128); never touches VMEM scratch.
    x = jnp.concatenate(traj, axis=0)

    # Trunk/head weights must be resident now; DMA has had the whole RK4
    # chain to complete, so this wait is effectively free.
    trunk_cp.wait()

    # ---- MLP trunk: 4 x (Linear(128) + ReLU), one (T*BP,128) matmul each ---
    for layer in range(4):
        x = jnp.maximum(
            jnp.dot(x, w_trunk_vmem[layer], preferred_element_type=jnp.float32)
            + b_all[layer + 1:layer + 2, :],
            0.0)

    # ---- fused heads: [x_mu | x_sigma] in one lane-dense matmul ------------
    y = (jnp.dot(x, w_trunk_vmem[4], preferred_element_type=jnp.float32)
         + b_all[5:6, :])
    col = lax.broadcasted_iota(jnp.int32, y.shape, 1)
    # first x_size lanes: mu ; next x_size lanes: 0.1 + 0.9 * softplus(z)
    # (softplus on all 128 lanes is ~8x excess EUP work but EUP has slack here)
    out_ref[...] = jnp.where(col < x_size, y, 0.1 + 0.9 * jax.nn.softplus(y))


def pack_decoder_params(params):
    """One-time host-side packing of the 16 tiny parameter tensors.

    Returns a dict with:
      w_ode   : (128,128) zero-padded ODE weight          (VMEM input)
      w_trunk : (5,128,128) trunk + fused-head weights    (pl.ANY input, DMA'd)
      b_all   : (8,128) all biases (ode, 4 trunk, head)   (VMEM input)
      x_size, h_size : python ints
    """
    F = _LANES

    def pad_w(w):
        return jnp.pad(jnp.asarray(w, jnp.float32),
                       ((0, F - w.shape[0]), (0, F - w.shape[1])))

    def pad_b(b):
        b = jnp.asarray(b, jnp.float32).reshape(1, -1)
        return jnp.pad(b, ((0, 0), (0, F - b.shape[1])))

    x_size = params["w_mu"].shape[1]
    h_size = params["w_ode"].shape[0]
    assert h_size <= F and 2 * x_size <= F

    # Fuse the mu / sigma heads into one weight / bias.
    w_head = jnp.concatenate([params["w_mu"], params["w_sigma"]], axis=1)
    b_head = jnp.concatenate([params["b_mu"].reshape(1, -1),
                              params["b_sigma"].reshape(1, -1)], axis=1)

    w_ode = pad_w(params["w_ode"])
    w_trunk = jnp.stack([pad_w(params["w1"]), pad_w(params["w2"]),
                         pad_w(params["w3"]), pad_w(params["w4"]),
                         pad_w(w_head)], axis=0)
    b_all = jnp.concatenate(
        [pad_b(params["b_ode"]), pad_b(params["b1"]), pad_b(params["b2"]),
         pad_b(params["b3"]), pad_b(params["b4"]), pad_b(b_head),
         jnp.zeros((2, F), jnp.float32)], axis=0)

    jax.block_until_ready((w_ode, w_trunk, b_all))
    return {"w_ode": w_ode, "w_trunk": w_trunk, "b_all": b_all,
            "x_size": int(x_size), "h_size": int(h_size)}


@functools.partial(jax.jit, static_argnames=("x_size",))
def _decoder_apply(times, h_vector, w_ode, w_trunk, b_all, *, x_size):
    B, H = h_vector.shape
    T = times.shape[0]
    F = _LANES
    BP = max(8, ((B + 7) // 8) * 8)

    dts = (times[1:] - times[:-1]).astype(jnp.float32)

    # Sublane-pad batch to 8 and lane-pad hidden to 128 so the RK4 state is a
    # full (8,128) tile (layout plumbing only; padded rows are sliced away).
    h0_pad = jnp.zeros((BP, F), jnp.float32).at[:B, :H].set(
        h_vector.astype(jnp.float32))

    vmem = pl.BlockSpec(memory_space=pltpu.MemorySpace.VMEM)
    smem = pl.BlockSpec(memory_space=pltpu.MemorySpace.SMEM)
    anyspec = pl.BlockSpec(memory_space=pl.ANY)   # raw ref; DMA'd in-kernel

    out_flat = pl.pallas_call(
        functools.partial(_decoder_kernel, x_size=x_size),
        out_shape=jax.ShapeDtypeStruct((T * BP, F), jnp.float32),
        in_specs=[smem, vmem, vmem, vmem, anyspec],
        out_specs=vmem,
        scratch_shapes=[pltpu.VMEM((5, F, F), jnp.float32),
                        pltpu.SemaphoreType.DMA],
    )(dts, h0_pad, w_ode, b_all, w_trunk)

    out3 = out_flat.reshape(T, BP, F)
    mu = out3[:, :B, :x_size].transpose(1, 0, 2)               # (B, T, X)
    sigma = out3[:, :B, x_size:2 * x_size].transpose(1, 0, 2)  # (B, T, X)
    return mu, sigma


def decoder_forward(times, h_vector, packed):
    return _decoder_apply(times, h_vector, packed["w_ode"], packed["w_trunk"],
                          packed["b_all"], x_size=packed["x_size"])


def decoder_forward_ref(times, h_vector, params):
    """Pure-JAX reference with identical math (for verification)."""
    def ode_fn(h):
        return jnp.tanh(h @ params["w_ode"] + params["b_ode"])

    traj = [h_vector]
    h = h_vector
    for i in range(times.shape[0] - 1):
        dt = times[i + 1] - times[i]
        k1 = ode_fn(h)
        k2 = ode_fn(h + 0.5 * dt * k1)
        k3 = ode_fn(h + 0.5 * dt * k2)
        k4 = ode_fn(h + dt * k3)
        h = h + (dt / 6.0) * (k1 + 2.0 * k2 + 2.0 * k3 + k4)
        traj.append(h)
    hs = jnp.stack(traj, axis=0).transpose(1, 0, 2)   # (B, T, H) like .permute(1,0,2)

    x = hs
    for w, b in [(params["w1"], params["b1"]), (params["w2"], params["b2"]),
                 (params["w3"], params["b3"]), (params["w4"], params["b4"])]:
        x = jnp.maximum(x @ w + b, 0.0)
    mu = x @ params["w_mu"] + params["b_mu"]
    sigma = 0.1 + 0.9 * jax.nn.softplus(x @ params["w_sigma"] + params["b_sigma"])
    return mu, sigma


def init_params(key, h_size, x_size):
    def lin(k, fan_in, fan_out):
        kw, kb = jax.random.split(k)
        lim = 1.0 / np.sqrt(fan_in)
        w = jax.random.uniform(kw, (fan_in, fan_out), jnp.float32, -lim, lim)
        b = jax.random.uniform(kb, (1, fan_out), jnp.float32, -lim, lim)
        return w, b

    ks = jax.random.split(key, 7)
    p = {}
    p["w_ode"], p["b_ode"] = lin(ks[0], h_size, h_size)
    p["w1"], p["b1"] = lin(ks[1], h_size, 128)
    p["w2"], p["b2"] = lin(ks[2], 128, 128)
    p["w3"], p["b3"] = lin(ks[3], 128, 128)
    p["w4"], p["b4"] = lin(ks[4], 128, 128)
    p["w_mu"], p["b_mu"] = lin(ks[5], 128, x_size)
    p["w_sigma"], p["b_sigma"] = lin(ks[6], 128, x_size)
    return p


if __name__ == "__main__":
    B, H, X, T = 2, 32, 16, 8           # batch, h_size, x_size, traj_len

    key = jax.random.PRNGKey(0)
    k_h, k_p = jax.random.split(key)
    h_vector = jax.random.normal(k_h, (B, H), jnp.float32)
    times = jnp.linspace(0.0, 1.0, T, dtype=jnp.float32)
    params = init_params(k_p, H, X)

    packed = pack_decoder_params(params)          # one-time weight packing
    mu, sigma = decoder_forward(times, h_vector, packed)
    jax.block_until_ready((mu, sigma))

    # steady-state call (jit cache hit, single dispatch)
    mu, sigma = decoder_forward(times, h_vector, packed)
    jax.block_until_ready((mu, sigma))

    mu_ref, sigma_ref = decoder_forward_ref(times, h_vector, params)
    assert mu.shape == (B, T, X) and sigma.shape == (B, T, X)
    np.testing.assert_allclose(np.asarray(mu), np.asarray(mu_ref), atol=1e-4, rtol=1e-4)
    np.testing.assert_allclose(np.asarray(sigma), np.asarray(sigma_ref), atol=1e-4, rtol=1e-4)

    print("KERNEL_OK")
</pallas_src>

<mosaic_0001>
module attributes {stable_mosaic.version = 11 : i64} {
  func.func @_decoder_kernel(%arg0: memref<7xf32, #tpu.memory_space<smem>>, %arg1: memref<8x128xf32, #tpu.memory_space<vmem>>, %arg2: memref<128x128xf32, #tpu.memory_space<vmem>>, %arg3: memref<8x128xf32, #tpu.memory_space<vmem>>, %arg4: memref<5x128x128xf32, #tpu.memory_space<any>>, %arg5: memref<64x128xf32, #tpu.memory_space<vmem>>, %arg6: memref<5x128x128xf32, #tpu.memory_space<vmem>>, %arg7: memref<!tpu.dma_semaphore, #tpu.memory_space<semaphore_mem>>) attributes {dimension_semantics = [], scalar_prefetch = 0 : i64, scratch_operands = 2 : i64, tpu.core_type = #tpu.core_type<tc>} {
    tpu.enqueue_dma source(%arg4 : memref<5x128x128xf32, #tpu.memory_space<any>>) target(%arg6 : memref<5x128x128xf32, #tpu.memory_space<vmem>>) target_semaphore(%arg7 : memref<!tpu.dma_semaphore, #tpu.memory_space<semaphore_mem>>)
    %c0 = arith.constant 0 : index
    %c0_0 = arith.constant 0 : index
    %0 = vector.load %arg2[%c0, %c0_0] : memref<128x128xf32, #tpu.memory_space<vmem>>, vector<128x128xf32>
    %c0_1 = arith.constant 0 : index
    %c0_2 = arith.constant 0 : index
    %1 = vector.load %arg3[%c0_1, %c0_2] : memref<8x128xf32, #tpu.memory_space<vmem>>, vector<8x128xf32>
    %2 = vector.extract_strided_slice %1 {offsets = [0, 0], sizes = [1, 128], strides = [1, 1]} : vector<8x128xf32> to vector<1x128xf32>
    %3 = vector.shape_cast %2 : vector<1x128xf32> to vector<1x128xf32>
    %4 = vector.broadcast %3 : vector<1x128xf32> to vector<8x128xf32>
    %c0_3 = arith.constant 0 : index
    %c0_4 = arith.constant 0 : index
    %5 = vector.load %arg1[%c0_3, %c0_4] : memref<8x128xf32, #tpu.memory_space<vmem>>, vector<8x128xf32>
    %c0_5 = arith.constant 0 : index
    %6 = memref.load %arg0[%c0_5] : memref<7xf32, #tpu.memory_space<smem>>
    %cst = arith.constant 5.000000e-01 : f32
    %7 = arith.mulf %cst, %6 : f32
    %cst_6 = arith.constant dense<0.000000e+00> : vector<8x128xf32>
    %8 = tpu.matmul %5, %0, %cst_6 {dimension_numbers = #tpu.dot_dimension_numbers<[1], [0], [0], [1], [0, 0, 1, 1], [], []>} : vector<8x128xf32>, vector<128x128xf32>, vector<8x128xf32> -> vector<8x128xf32>
    %9 = arith.addf %8, %4 : vector<8x128xf32>
    %10 = math.tanh %9 : vector<8x128xf32>
    %11 = vector.broadcast %7 : f32 to vector<8x128xf32>
    %12 = arith.mulf %11, %10 : vector<8x128xf32>
    %13 = arith.addf %5, %12 : vector<8x128xf32>
    %cst_7 = arith.constant dense<0.000000e+00> : vector<8x128xf32>
    %14 = tpu.matmul %13, %0, %cst_7 {dimension_numbers = #tpu.dot_dimension_numbers<[1], [0], [0], [1], [0, 0, 1, 1], [], []>} : vector<8x128xf32>, vector<128x128xf32>, vector<8x128xf32> -> vector<8x128xf32>
    %15 = arith.addf %14, %4 : vector<8x128xf32>
    %16 = math.tanh %15 : vector<8x128xf32>
    %17 = vector.broadcast %7 : f32 to vector<8x128xf32>
    %18 = arith.mulf %17, %16 : vector<8x128xf32>
    %19 = arith.addf %5, %18 : vector<8x128xf32>
    %cst_8 = arith.constant dense<0.000000e+00> : vector<8x128xf32>
    %20 = tpu.matmul %19, %0, %cst_8 {dimension_numbers = #tpu.dot_dimension_numbers<[1], [0], [0], [1], [0, 0, 1, 1], [], []>} : vector<8x128xf32>, vector<128x128xf32>, vector<8x128xf32> -> vector<8x128xf32>
    %21 = arith.addf %20, %4 : vector<8x128xf32>
    %22 = math.tanh %21 : vector<8x128xf32>
    %23 = vector.broadcast %6 : f32 to vector<8x128xf32>
    %24 = arith.mulf %23, %22 : vector<8x128xf32>
    %25 = arith.addf %5, %24 : vector<8x128xf32>
    %cst_9 = arith.constant dense<0.000000e+00> : vector<8x128xf32>
    %26 = tpu.matmul %25, %0, %cst_9 {dimension_numbers = #tpu.dot_dimension_numbers<[1], [0], [0], [1], [0, 0, 1, 1], [], []>} : vector<8x128xf32>, vector<128x128xf32>, vector<8x128xf32> -> vector<8x128xf32>
    %27 = arith.addf %26, %4 : vector<8x128xf32>
    %28 = math.tanh %27 : vector<8x128xf32>
    %cst_10 = arith.constant 0.166666672 : f32
    %29 = arith.mulf %6, %cst_10 : f32
    %cst_11 = arith.constant 2.000000e+00 : f32
    %30 = vector.broadcast %cst_11 : f32 to vector<8x128xf32>
    %31 = arith.mulf %30, %16 : vector<8x128xf32>
    %32 = arith.addf %10, %31 : vector<8x128xf32>
    %cst_12 = arith.constant 2.000000e+00 : f32
    %33 = vector.broadcast %cst_12 : f32 to vector<8x128xf32>
    %34 = arith.mulf %33, %22 : vector<8x128xf32>
    %35 = arith.addf %32, %34 : vector<8x128xf32>
    %36 = arith.addf %35, %28 : vector<8x128xf32>
    %37 = vector.broadcast %29 : f32 to vector<8x128xf32>
    %38 = arith.mulf %37, %36 : vector<8x128xf32>
    %39 = arith.addf %5, %38 : vector<8x128xf32>
    %c1 = arith.constant 1 : index
    %40 = memref.load %arg0[%c1] : memref<7xf32, #tpu.memory_space<smem>>
    %cst_13 = arith.constant 5.000000e-01 : f32
    %41 = arith.mulf %cst_13, %40 : f32
    %cst_14 = arith.constant dense<0.000000e+00> : vector<8x128xf32>
    %42 = tpu.matmul %39, %0, %cst_14 {dimension_numbers = #tpu.dot_dimension_numbers<[1], [0], [0], [1], [0, 0, 1, 1], [], []>} : vector<8x128xf32>, vector<128x128xf32>, vector<8x128xf32> -> vector<8x128xf32>
    %43 = arith.addf %42, %4 : vector<8x128xf32>
    %44 = math.tanh %43 : vector<8x128xf32>
    %45 = vector.broadcast %41 : f32 to vector<8x128xf32>
    %46 = arith.mulf %45, %44 : vector<8x128xf32>
    %47 = arith.addf %39, %46 : vector<8x128xf32>
    %cst_15 = arith.constant dense<0.000000e+00> : vector<8x128xf32>
    %48 = tpu.matmul %47, %0, %cst_15 {dimension_numbers = #tpu.dot_dimension_numbers<[1], [0], [0], [1], [0, 0, 1, 1], [], []>} : vector<8x128xf32>, vector<128x128xf32>, vector<8x128xf32> -> vector<8x128xf32>
    %49 = arith.addf %48, %4 : vector<8x128xf32>
    %50 = math.tanh %49 : vector<8x128xf32>
    %51 = vector.broadcast %41 : f32 to vector<8x128xf32>
    %52 = arith.mulf %51, %50 : vector<8x128xf32>
    %53 = arith.addf %39, %52 : vector<8x128xf32>
    %cst_16 = arith.constant dense<0.000000e+00> : vector<8x128xf32>
    %54 = tpu.matmul %53, %0, %cst_16 {dimension_numbers = #tpu.dot_dimension_numbers<[1], [0], [0], [1], [0, 0, 1, 1], [], []>} : vector<8x128xf32>, vector<128x128xf32>, vector<8x128xf32> -> vector<8x128xf32>
    %55 = arith.addf %54, %4 : vector<8x128xf32>
    %56 = math.tanh %55 : vector<8x128xf32>
    %57 = vector.broadcast %40 : f32 to vector<8x128xf32>
    %58 = arith.mulf %57, %56 : vector<8x128xf32>
    %59 = arith.addf %39, %58 : vector<8x128xf32>
    %cst_17 = arith.constant dense<0.000000e+00> : vector<8x128xf32>
    %60 = tpu.matmul %59, %0, %cst_17 {dimension_numbers = #tpu.dot_dimension_numbers<[1], [0], [0], [1], [0, 0, 1, 1], [], []>} : vector<8x128xf32>, vector<128x128xf32>, vector<8x128xf32> -> vector<8x128xf32>
    %61 = arith.addf %60, %4 : vector<8x128xf32>
    %62 = math.tanh %61 : vector<8x128xf32>
    %cst_18 = arith.constant 0.166666672 : f32
    %63 = arith.mulf %40, %cst_18 : f32
    %cst_19 = arith.constant 2.000000e+00 : f32
    %64 = vector.broadcast %cst_19 : f32 to vector<8x128xf32>
    %65 = arith.mulf %64, %50 : vector<8x128xf32>
    %66 = arith.addf %44, %65 : vector<8x128xf32>
    %cst_20 = arith.constant 2.000000e+00 : f32
    %67 = vector.broadcast %cst_20 : f32 to vector<8x128xf32>
    %68 = arith.mulf %67, %56 : vector<8x128xf32>
    %69 = arith.addf %66, %68 : vector<8x128xf32>
    %70 = arith.addf %69, %62 : vector<8x128xf32>
    %71 = vector.broadcast %63 : f32 to vector<8x128xf32>
    %72 = arith.mulf %71, %70 : vector<8x128xf32>
    %73 = arith.addf %39, %72 : vector<8x128xf32>
    %c2 = arith.constant 2 : index
    %74 = memref.load %arg0[%c2] : memref<7xf32, #tpu.memory_space<smem>>
    %cst_21 = arith.constant 5.000000e-01 : f32
    %75 = arith.mulf %cst_21, %74 : f32
    %cst_22 = arith.constant dense<0.000000e+00> : vector<8x128xf32>
    %76 = tpu.matmul %73, %0, %cst_22 {dimension_numbers = #tpu.dot_dimension_numbers<[1], [0], [0], [1], [0, 0, 1, 1], [], []>} : vector<8x128xf32>, vector<128x128xf32>, vector<8x128xf32> -> vector<8x128xf32>
    %77 = arith.addf %76, %4 : vector<8x128xf32>
    %78 = math.tanh %77 : vector<8x128xf32>
    %79 = vector.broadcast %75 : f32 to vector<8x128xf32>
    %80 = arith.mulf %79, %78 : vector<8x128xf32>
    %81 = arith.addf %73, %80 : vector<8x128xf32>
    %cst_23 = arith.constant dense<0.000000e+00> : vector<8x128xf32>
    %82 = tpu.matmul %81, %0, %cst_23 {dimension_numbers = #tpu.dot_dimension_numbers<[1], [0], [0], [1], [0, 0, 1, 1], [], []>} : vector<8x128xf32>, vector<128x128xf32>, vector<8x128xf32> -> vector<8x128xf32>
    %83 = arith.addf %82, %4 : vector<8x128xf32>
    %84 = math.tanh %83 : vector<8x128xf32>
    %85 = vector.broadcast %75 : f32 to vector<8x128xf32>
    %86 = arith.mulf %85, %84 : vector<8x128xf32>
    %87 = arith.addf %73, %86 : vector<8x128xf32>
    %cst_24 = arith.constant dense<0.000000e+00> : vector<8x128xf32>
    %88 = tpu.matmul %87, %0, %cst_24 {dimension_numbers = #tpu.dot_dimension_numbers<[1], [0], [0], [1], [0, 0, 1, 1], [], []>} : vector<8x128xf32>, vector<128x128xf32>, vector<8x128xf32> -> vector<8x128xf32>
    %89 = arith.addf %88, %4 : vector<8x128xf32>
    %90 = math.tanh %89 : vector<8x128xf32>
    %91 = vector.broadcast %74 : f32 to vector<8x128xf32>
    %92 = arith.mulf %91, %90 : vector<8x128xf32>
    %93 = arith.addf %73, %92 : vector<8x128xf32>
    %cst_25 = arith.constant dense<0.000000e+00> : vector<8x128xf32>
    %94 = tpu.matmul %93, %0, %cst_25 {dimension_numbers = #tpu.dot_dimension_numbers<[1], [0], [0], [1], [0, 0, 1, 1], [], []>} : vector<8x128xf32>, vector<128x128xf32>, vector<8x128xf32> -> vector<8x128xf32>
    %95 = arith.addf %94, %4 : vector<8x128xf32>
    %96 = math.tanh %95 : vector<8x128xf32>
    %cst_26 = arith.constant 0.166666672 : f32
    %97 = arith.mulf %74, %cst_26 : f32
    %cst_27 = arith.constant 2.000000e+00 : f32
    %98 = vector.broadcast %cst_27 : f32 to vector<8x128xf32>
    %99 = arith.mulf %98, %84 : vector<8x128xf32>
    %100 = arith.addf %78, %99 : vector<8x128xf32>
    %cst_28 = arith.constant 2.000000e+00 : f32
    %101 = vector.broadcast %cst_28 : f32 to vector<8x128xf32>
    %102 = arith.mulf %101, %90 : vector<8x128xf32>
    %103 = arith.addf %100, %102 : vector<8x128xf32>
    %104 = arith.addf %103, %96 : vector<8x128xf32>
    %105 = vector.broadcast %97 : f32 to vector<8x128xf32>
    %106 = arith.mulf %105, %104 : vector<8x128xf32>
    %107 = arith.addf %73, %106 : vector<8x128xf32>
    %c3 = arith.constant 3 : index
    %108 = memref.load %arg0[%c3] : memref<7xf32, #tpu.memory_space<smem>>
    %cst_29 = arith.constant 5.000000e-01 : f32
    %109 = arith.mulf %cst_29, %108 : f32
    %cst_30 = arith.constant dense<0.000000e+00> : vector<8x128xf32>
    %110 = tpu.matmul %107, %0, %cst_30 {dimension_numbers = #tpu.dot_dimension_numbers<[1], [0], [0], [1], [0, 0, 1, 1], [], []>} : vector<8x128xf32>, vector<128x128xf32>, vector<8x128xf32> -> vector<8x128xf32>
    %111 = arith.addf %110, %4 : vector<8x128xf32>
    %112 = math.tanh %111 : vector<8x128xf32>
    %113 = vector.broadcast %109 : f32 to vector<8x128xf32>
    %114 = arith.mulf %113, %112 : vector<8x128xf32>
    %115 = arith.addf %107, %114 : vector<8x128xf32>
    %cst_31 = arith.constant dense<0.000000e+00> : vector<8x128xf32>
    %116 = tpu.matmul %115, %0, %cst_31 {dimension_numbers = #tpu.dot_dimension_numbers<[1], [0], [0], [1], [0, 0, 1, 1], [], []>} : vector<8x128xf32>, vector<128x128xf32>, vector<8x128xf32> -> vector<8x128xf32>
    %117 = arith.addf %116, %4 : vector<8x128xf32>
    %118 = math.tanh %117 : vector<8x128xf32>
    %119 = vector.broadcast %109 : f32 to vector<8x128xf32>
    %120 = arith.mulf %119, %118 : vector<8x128xf32>
    %121 = arith.addf %107, %120 : vector<8x128xf32>
    %cst_32 = arith.constant dense<0.000000e+00> : vector<8x128xf32>
    %122 = tpu.matmul %121, %0, %cst_32 {dimension_numbers = #tpu.dot_dimension_numbers<[1], [0], [0], [1], [0, 0, 1, 1], [], []>} : vector<8x128xf32>, vector<128x128xf32>, vector<8x128xf32> -> vector<8x128xf32>
    %123 = arith.addf %122, %4 : vector<8x128xf32>
    %124 = math.tanh %123 : vector<8x128xf32>
    %125 = vector.broadcast %108 : f32 to vector<8x128xf32>
    %126 = arith.mulf %125, %124 : vector<8x128xf32>
    %127 = arith.addf %107, %126 : vector<8x128xf32>
    %cst_33 = arith.constant dense<0.000000e+00> : vector<8x128xf32>
    %128 = tpu.matmul %127, %0, %cst_33 {dimension_numbers = #tpu.dot_dimension_numbers<[1], [0], [0], [1], [0, 0, 1, 1], [], []>} : vector<8x128xf32>, vector<128x128xf32>, vector<8x128xf32> -> vector<8x128xf32>
    %129 = arith.addf %128, %4 : vector<8x128xf32>
    %130 = math.tanh %129 : vector<8x128xf32>
    %cst_34 = arith.constant 0.166666672 : f32
    %131 = arith.mulf %108, %cst_34 : f32
    %cst_35 = arith.constant 2.000000e+00 : f32
    %132 = vector.broadcast %cst_35 : f32 to vector<8x128xf32>
    %133 = arith.mulf %132, %118 : vector<8x128xf32>
    %134 = arith.addf %112, %133 : vector<8x128xf32>
    %cst_36 = arith.constant 2.000000e+00 : f32
    %135 = vector.broadcast %cst_36 : f32 to vector<8x128xf32>
    %136 = arith.mulf %135, %124 : vector<8x128xf32>
    %137 = arith.addf %134, %136 : vector<8x128xf32>
    %138 = arith.addf %137, %130 : vector<8x128xf32>
    %139 = vector.broadcast %131 : f32 to vector<8x128xf32>
    %140 = arith.mulf %139, %138 : vector<8x128xf32>
    %141 = arith.addf %107, %140 : vector<8x128xf32>
    %c4 = arith.constant 4 : index
    %142 = memref.load %arg0[%c4] : memref<7xf32, #tpu.memory_space<smem>>
    %cst_37 = arith.constant 5.000000e-01 : f32
    %143 = arith.mulf %cst_37, %142 : f32
    %cst_38 = arith.constant dense<0.000000e+00> : vector<8x128xf32>
    %144 = tpu.matmul %141, %0, %cst_38 {dimension_numbers = #tpu.dot_dimension_numbers<[1], [0], [0], [1], [0, 0, 1, 1], [], []>} : vector<8x128xf32>, vector<128x128xf32>, vector<8x128xf32> -> vector<8x128xf32>
    %145 = arith.addf %144, %4 : vector<8x128xf32>
    %146 = math.tanh %145 : vector<8x128xf32>
    %147 = vector.broadcast %143 : f32 to vector<8x128xf32>
    %148 = arith.mulf %147, %146 : vector<8x128xf32>
    %149 = arith.addf %141, %148 : vector<8x128xf32>
    %cst_39 = arith.constant dense<0.000000e+00> : vector<8x128xf32>
    %150 = tpu.matmul %149, %0, %cst_39 {dimension_numbers = #tpu.dot_dimension_numbers<[1], [0], [0], [1], [0, 0, 1, 1], [], []>} : vector<8x128xf32>, vector<128x128xf32>, vector<8x128xf32> -> vector<8x128xf32>
    %151 = arith.addf %150, %4 : vector<8x128xf32>
    %152 = math.tanh %151 : vector<8x128xf32>
    %153 = vector.broadcast %143 : f32 to vector<8x128xf32>
    %154 = arith.mulf %153, %152 : vector<8x128xf32>
    %155 = arith.addf %141, %154 : vector<8x128xf32>
    %cst_40 = arith.constant dense<0.000000e+00> : vector<8x128xf32>
    %156 = tpu.matmul %155, %0, %cst_40 {dimension_numbers = #tpu.dot_dimension_numbers<[1], [0], [0], [1], [0, 0, 1, 1], [], []>} : vector<8x128xf32>, vector<128x128xf32>, vector<8x128xf32> -> vector<8x128xf32>
    %157 = arith.addf %156, %4 : vector<8x128xf32>
    %158 = math.tanh %157 : vector<8x128xf32>
    %159 = vector.broadcast %142 : f32 to vector<8x128xf32>
    %160 = arith.mulf %159, %158 : vector<8x128xf32>
    %161 = arith.addf %141, %160 : vector<8x128xf32>
    %cst_41 = arith.constant dense<0.000000e+00> : vector<8x128xf32>
    %162 = tpu.matmul %161, %0, %cst_41 {dimension_numbers = #tpu.dot_dimension_numbers<[1], [0], [0], [1], [0, 0, 1, 1], [], []>} : vector<8x128xf32>, vector<128x128xf32>, vector<8x128xf32> -> vector<8x128xf32>
    %163 = arith.addf %162, %4 : vector<8x128xf32>
    %164 = math.tanh %163 : vector<8x128xf32>
    %cst_42 = arith.constant 0.166666672 : f32
    %165 = arith.mulf %142, %cst_42 : f32
    %cst_43 = arith.constant 2.000000e+00 : f32
    %166 = vector.broadcast %cst_43 : f32 to vector<8x128xf32>
    %167 = arith.mulf %166, %152 : vector<8x128xf32>
    %168 = arith.addf %146, %167 : vector<8x128xf32>
    %cst_44 = arith.constant 2.000000e+00 : f32
    %169 = vector.broadcast %cst_44 : f32 to vector<8x128xf32>
    %170 = arith.mulf %169, %158 : vector<8x128xf32>
    %171 = arith.addf %168, %170 : vector<8x128xf32>
    %172 = arith.addf %171, %164 : vector<8x128xf32>
    %173 = vector.broadcast %165 : f32 to vector<8x128xf32>
    %174 = arith.mulf %173, %172 : vector<8x128xf32>
    %175 = arith.addf %141, %174 : vector<8x128xf32>
    %c5 = arith.constant 5 : index
    %176 = memref.load %arg0[%c5] : memref<7xf32, #tpu.memory_space<smem>>
    %cst_45 = arith.constant 5.000000e-01 : f32
    %177 = arith.mulf %cst_45, %176 : f32
    %cst_46 = arith.constant dense<0.000000e+00> : vector<8x128xf32>
    %178 = tpu.matmul %175, %0, %cst_46 {dimension_numbers = #tpu.dot_dimension_numbers<[1], [0], [0], [1], [0, 0, 1, 1], [], []>} : vector<8x128xf32>, vector<128x128xf32>, vector<8x128xf32> -> vector<8x128xf32>
    %179 = arith.addf %178, %4 : vector<8x128xf32>
    %180 = math.tanh %179 : vector<8x128xf32>
    %181 = vector.broadcast %177 : f32 to vector<8x128xf32>
    %182 = arith.mulf %181, %180 : vector<8x128xf32>
    %183 = arith.addf %175, %182 : vector<8x128xf32>
    %cst_47 = arith.constant dense<0.000000e+00> : vector<8x128xf32>
    %184 = tpu.matmul %183, %0, %cst_47 {dimension_numbers = #tpu.dot_dimension_numbers<[1], [0], [0], [1], [0, 0, 1, 1], [], []>} : vector<8x128xf32>, vector<128x128xf32>, vector<8x128xf32> -> vector<8x128xf32>
    %185 = arith.addf %184, %4 : vector<8x128xf32>
    %186 = math.tanh %185 : vector<8x128xf32>
    %187 = vector.broadcast %177 : f32 to vector<8x128xf32>
    %188 = arith.mulf %187, %186 : vector<8x128xf32>
    %189 = arith.addf %175, %188 : vector<8x128xf32>
    %cst_48 = arith.constant dense<0.000000e+00> : vector<8x128xf32>
    %190 = tpu.matmul %189, %0, %cst_48 {dimension_numbers = #tpu.dot_dimension_numbers<[1], [0], [0], [1], [0, 0, 1, 1], [], []>} : vector<8x128xf32>, vector<128x128xf32>, vector<8x128xf32> -> vector<8x128xf32>
    %191 = arith.addf %190, %4 : vector<8x128xf32>
    %192 = math.tanh %191 : vector<8x128xf32>
    %193 = vector.broadcast %176 : f32 to vector<8x128xf32>
    %194 = arith.mulf %193, %192 : vector<8x128xf32>
    %195 = arith.addf %175, %194 : vector<8x128xf32>
    %cst_49 = arith.constant dense<0.000000e+00> : vector<8x128xf32>
    %196 = tpu.matmul %195, %0, %cst_49 {dimension_numbers = #tpu.dot_dimension_numbers<[1], [0], [0], [1], [0, 0, 1, 1], [], []>} : vector<8x128xf32>, vector<128x128xf32>, vector<8x128xf32> -> vector<8x128xf32>
    %197 = arith.addf %196, %4 : vector<8x128xf32>
    %198 = math.tanh %197 : vector<8x128xf32>
    %cst_50 = arith.constant 0.166666672 : f32
    %199 = arith.mulf %176, %cst_50 : f32
    %cst_51 = arith.constant 2.000000e+00 : f32
    %200 = vector.broadcast %cst_51 : f32 to vector<8x128xf32>
    %201 = arith.mulf %200, %186 : vector<8x128xf32>
    %202 = arith.addf %180, %201 : vector<8x128xf32>
    %cst_52 = arith.constant 2.000000e+00 : f32
    %203 = vector.broadcast %cst_52 : f32 to vector<8x128xf32>
    %204 = arith.mulf %203, %192 : vector<8x128xf32>
    %205 = arith.addf %202, %204 : vector<8x128xf32>
    %206 = arith.addf %205, %198 : vector<8x128xf32>
    %207 = vector.broadcast %199 : f32 to vector<8x128xf32>
    %208 = arith.mulf %207, %206 : vector<8x128xf32>
    %209 = arith.addf %175, %208 : vector<8x128xf32>
    %c6 = arith.constant 6 : index
    %210 = memref.load %arg0[%c6] : memref<7xf32, #tpu.memory_space<smem>>
    %cst_53 = arith.constant 5.000000e-01 : f32
    %211 = arith.mulf %cst_53, %210 : f32
    %cst_54 = arith.constant dense<0.000000e+00> : vector<8x128xf32>
    %212 = tpu.matmul %209, %0, %cst_54 {dimension_numbers = #tpu.dot_dimension_numbers<[1], [0], [0], [1], [0, 0, 1, 1], [], []>} : vector<8x128xf32>, vector<128x128xf32>, vector<8x128xf32> -> vector<8x128xf32>
    %213 = arith.addf %212, %4 : vector<8x128xf32>
    %214 = math.tanh %213 : vector<8x128xf32>
    %215 = vector.broadcast %211 : f32 to vector<8x128xf32>
    %216 = arith.mulf %215, %214 : vector<8x128xf32>
    %217 = arith.addf %209, %216 : vector<8x128xf32>
    %cst_55 = arith.constant dense<0.000000e+00> : vector<8x128xf32>
    %218 = tpu.matmul %217, %0, %cst_55 {dimension_numbers = #tpu.dot_dimension_numbers<[1], [0], [0], [1], [0, 0, 1, 1], [], []>} : vector<8x128xf32>, vector<128x128xf32>, vector<8x128xf32> -> vector<8x128xf32>
    %219 = arith.addf %218, %4 : vector<8x128xf32>
    %220 = math.tanh %219 : vector<8x128xf32>
    %221 = vector.broadcast %211 : f32 to vector<8x128xf32>
    %222 = arith.mulf %221, %220 : vector<8x128xf32>
    %223 = arith.addf %209, %222 : vector<8x128xf32>
    %cst_56 = arith.constant dense<0.000000e+00> : vector<8x128xf32>
    %224 = tpu.matmul %223, %0, %cst_56 {dimension_numbers = #tpu.dot_dimension_numbers<[1], [0], [0], [1], [0, 0, 1, 1], [], []>} : vector<8x128xf32>, vector<128x128xf32>, vector<8x128xf32> -> vector<8x128xf32>
    %225 = arith.addf %224, %4 : vector<8x128xf32>
    %226 = math.tanh %225 : vector<8x128xf32>
    %227 = vector.broadcast %210 : f32 to vector<8x128xf32>
    %228 = arith.mulf %227, %226 : vector<8x128xf32>
    %229 = arith.addf %209, %228 : vector<8x128xf32>
    %cst_57 = arith.constant dense<0.000000e+00> : vector<8x128xf32>
    %230 = tpu.matmul %229, %0, %cst_57 {dimension_numbers = #tpu.dot_dimension_numbers<[1], [0], [0], [1], [0, 0, 1, 1], [], []>} : vector<8x128xf32>, vector<128x128xf32>, vector<8x128xf32> -> vector<8x128xf32>
    %231 = arith.addf %230, %4 : vector<8x128xf32>
    %232 = math.tanh %231 : vector<8x128xf32>
    %cst_58 = arith.constant 0.166666672 : f32
    %233 = arith.mulf %210, %cst_58 : f32
    %cst_59 = arith.constant 2.000000e+00 : f32
    %234 = vector.broadcast %cst_59 : f32 to vector<8x128xf32>
    %235 = arith.mulf %234, %220 : vector<8x128xf32>
    %236 = arith.addf %214, %235 : vector<8x128xf32>
    %cst_60 = arith.constant 2.000000e+00 : f32
    %237 = vector.broadcast %cst_60 : f32 to vector<8x128xf32>
    %238 = arith.mulf %237, %226 : vector<8x128xf32>
    %239 = arith.addf %236, %238 : vector<8x128xf32>
    %240 = arith.addf %239, %232 : vector<8x128xf32>
    %241 = vector.broadcast %233 : f32 to vector<8x128xf32>
    %242 = arith.mulf %241, %240 : vector<8x128xf32>
    %243 = arith.addf %209, %242 : vector<8x128xf32>
    %244 = tpu.concatenate %5, %39, %73, %107, %141, %175, %209, %243 in 0 : vector<8x128xf32>, vector<8x128xf32>, vector<8x128xf32>, vector<8x128xf32>, vector<8x128xf32>, vector<8x128xf32>, vector<8x128xf32>, vector<8x128xf32> -> vector<64x128xf32>
    tpu.wait_dma2 semaphore(%arg7 : memref<!tpu.dma_semaphore, #tpu.memory_space<semaphore_mem>>) src(%arg4 : memref<5x128x128xf32, #tpu.memory_space<any>>) dst(%arg6 : memref<5x128x128xf32, #tpu.memory_space<vmem>>)
    %c0_61 = arith.constant 0 : index
    %c0_62 = arith.constant 0 : index
    %c0_63 = arith.constant 0 : index
    %245 = vector.load %arg6[%c0_61, %c0_62, %c0_63] : memref<5x128x128xf32, #tpu.memory_space<vmem>>, vector<1x128x128xf32>
    %246 = vector.shape_cast %245 : vector<1x128x128xf32> to vector<128x128xf32>
    %cst_64 = arith.constant dense<0.000000e+00> : vector<64x128xf32>
    %247 = tpu.matmul %244, %246, %cst_64 {dimension_numbers = #tpu.dot_dimension_numbers<[1], [0], [0], [1], [0, 0, 1, 1], [], []>} : vector<64x128xf32>, vector<128x128xf32>, vector<64x128xf32> -> vector<64x128xf32>
    %248 = vector.extract_strided_slice %1 {offsets = [1, 0], sizes = [1, 128], strides = [1, 1]} : vector<8x128xf32> to vector<1x128xf32>
    %249 = vector.broadcast %248 : vector<1x128xf32> to vector<64x128xf32>
    %250 = arith.addf %247, %249 : vector<64x128xf32>
    %cst_65 = arith.constant 0.000000e+00 : f32
    %251 = vector.broadcast %cst_65 : f32 to vector<64x128xf32>
    %252 = arith.maximumf %250, %251 : vector<64x128xf32>
    %c1_66 = arith.constant 1 : index
    %c0_67 = arith.constant 0 : index
    %c0_68 = arith.constant 0 : index
    %253 = vector.load %arg6[%c1_66, %c0_67, %c0_68] : memref<5x128x128xf32, #tpu.memory_space<vmem>>, vector<1x128x128xf32>
    %254 = vector.shape_cast %253 : vector<1x128x128xf32> to vector<128x128xf32>
    %cst_69 = arith.constant dense<0.000000e+00> : vector<64x128xf32>
    %255 = tpu.matmul %252, %254, %cst_69 {dimension_numbers = #tpu.dot_dimension_numbers<[1], [0], [0], [1], [0, 0, 1, 1], [], []>} : vector<64x128xf32>, vector<128x128xf32>, vector<64x128xf32> -> vector<64x128xf32>
    %256 = vector.extract_strided_slice %1 {offsets = [2, 0], sizes = [1, 128], strides = [1, 1]} : vector<8x128xf32> to vector<1x128xf32>
    %257 = vector.broadcast %256 : vector<1x128xf32> to vector<64x128xf32>
    %258 = arith.addf %255, %257 : vector<64x128xf32>
    %cst_70 = arith.constant 0.000000e+00 : f32
    %259 = vector.broadcast %cst_70 : f32 to vector<64x128xf32>
    %260 = arith.maximumf %258, %259 : vector<64x128xf32>
    %c2_71 = arith.constant 2 : index
    %c0_72 = arith.constant 0 : index
    %c0_73 = arith.constant 0 : index
    %261 = vector.load %arg6[%c2_71, %c0_72, %c0_73] : memref<5x128x128xf32, #tpu.memory_space<vmem>>, vector<1x128x128xf32>
    %262 = vector.shape_cast %261 : vector<1x128x128xf32> to vector<128x128xf32>
    %cst_74 = arith.constant dense<0.000000e+00> : vector<64x128xf32>
    %263 = tpu.matmul %260, %262, %cst_74 {dimension_numbers = #tpu.dot_dimension_numbers<[1], [0], [0], [1], [0, 0, 1, 1], [], []>} : vector<64x128xf32>, vector<128x128xf32>, vector<64x128xf32> -> vector<64x128xf32>
    %264 = vector.extract_strided_slice %1 {offsets = [3, 0], sizes = [1, 128], strides = [1, 1]} : vector<8x128xf32> to vector<1x128xf32>
    %265 = vector.broadcast %264 : vector<1x128xf32> to vector<64x128xf32>
    %266 = arith.addf %263, %265 : vector<64x128xf32>
    %cst_75 = arith.constant 0.000000e+00 : f32
    %267 = vector.broadcast %cst_75 : f32 to vector<64x128xf32>
    %268 = arith.maximumf %266, %267 : vector<64x128xf32>
    %c3_76 = arith.constant 3 : index
    %c0_77 = arith.constant 0 : index
    %c0_78 = arith.constant 0 : index
    %269 = vector.load %arg6[%c3_76, %c0_77, %c0_78] : memref<5x128x128xf32, #tpu.memory_space<vmem>>, vector<1x128x128xf32>
    %270 = vector.shape_cast %269 : vector<1x128x128xf32> to vector<128x128xf32>
    %cst_79 = arith.constant dense<0.000000e+00> : vector<64x128xf32>
    %271 = tpu.matmul %268, %270, %cst_79 {dimension_numbers = #tpu.dot_dimension_numbers<[1], [0], [0], [1], [0, 0, 1, 1], [], []>} : vector<64x128xf32>, vector<128x128xf32>, vector<64x128xf32> -> vector<64x128xf32>
    %272 = vector.extract_strided_slice %1 {offsets = [4, 0], sizes = [1, 128], strides = [1, 1]} : vector<8x128xf32> to vector<1x128xf32>
    %273 = vector.broadcast %272 : vector<1x128xf32> to vector<64x128xf32>
    %274 = arith.addf %271, %273 : vector<64x128xf32>
    %cst_80 = arith.constant 0.000000e+00 : f32
    %275 = vector.broadcast %cst_80 : f32 to vector<64x128xf32>
    %276 = arith.maximumf %274, %275 : vector<64x128xf32>
    %c4_81 = arith.constant 4 : index
    %c0_82 = arith.constant 0 : index
    %c0_83 = arith.constant 0 : index
    %277 = vector.load %arg6[%c4_81, %c0_82, %c0_83] : memref<5x128x128xf32, #tpu.memory_space<vmem>>, vector<1x128x128xf32>
    %278 = vector.shape_cast %277 : vector<1x128x128xf32> to vector<128x128xf32>
    %cst_84 = arith.constant dense<0.000000e+00> : vector<64x128xf32>
    %279 = tpu.matmul %276, %278, %cst_84 {dimension_numbers = #tpu.dot_dimension_numbers<[1], [0], [0], [1], [0, 0, 1, 1], [], []>} : vector<64x128xf32>, vector<128x128xf32>, vector<64x128xf32> -> vector<64x128xf32>
    %280 = vector.extract_strided_slice %1 {offsets = [5, 0], sizes = [1, 128], strides = [1, 1]} : vector<8x128xf32> to vector<1x128xf32>
    %281 = vector.broadcast %280 : vector<1x128xf32> to vector<64x128xf32>
    %282 = arith.addf %279, %281 : vector<64x128xf32>
    %283 = tpu.iota {dimensions = array<i32: 1>} : vector<64x128xi32>
    %c16_i32 = arith.constant 16 : i32
    %284 = vector.broadcast %c16_i32 : i32 to vector<64x128xi32>
    %285 = arith.cmpi slt, %283, %284 : vector<64x128xi32>
    %cst_85 = arith.constant 0.000000e+00 : f32
    %286 = vector.broadcast %cst_85 : f32 to vector<64x128xf32>
    %287 = arith.maximumf %282, %286 : vector<64x128xf32>
    %288 = vector.broadcast %cst_85 : f32 to vector<64x128xf32>
    %289 = arith.subf %282, %288 : vector<64x128xf32>
    %290 = arith.cmpf one, %289, %289 : vector<64x128xf32>
    %291 = vector.broadcast %cst_85 : f32 to vector<64x128xf32>
    %292 = arith.addf %282, %291 : vector<64x128xf32>
    %293 = math.absf %289 : vector<64x128xf32>
    %cst_86 = arith.constant 0.000000e+00 : f32
    %294 = vector.broadcast %cst_86 : f32 to vector<64x128xf32>
    %295 = arith.subf %294, %293 : vector<64x128xf32>
    %296 = math.exp %295 : vector<64x128xf32>
    %297 = math.log1p %296 : vector<64x128xf32>
    %298 = arith.addf %287, %297 : vector<64x128xf32>
    %299 = arith.select %290, %292, %298 : vector<64x128xi1>, vector<64x128xf32>
    %cst_87 = arith.constant 0.899999976 : f32
    %300 = vector.broadcast %cst_87 : f32 to vector<64x128xf32>
    %301 = arith.mulf %300, %299 : vector<64x128xf32>
    %cst_88 = arith.constant 1.000000e-01 : f32
    %302 = vector.broadcast %cst_88 : f32 to vector<64x128xf32>
    %303 = arith.addf %302, %301 : vector<64x128xf32>
    %304 = arith.select %285, %282, %303 : vector<64x128xi1>, vector<64x128xf32>
    %c0_89 = arith.constant 0 : index
    %c0_90 = arith.constant 0 : index
    %305 = vector.load %arg5[%c0_89, %c0_90] : memref<64x128xf32, #tpu.memory_space<vmem>>, vector<64x128xf32>
    tpu.vector_store %arg5[%c0_89, %c0_90], %304 {strides = array<i32>} : memref<64x128xf32, #tpu.memory_space<vmem>>, vector<64x128xf32>,
    return
  }
}

</mosaic_0001>

<llo_original>
// kernel: _decoder_apply.1
$region0: #{_decoder_apply.1}
  #allocation0 [shape = 'u32[]', space=smem, size = 0x4, offset = 0x4, fixed_abs, tag = 'smem constant byte address 0x4 - core index']
  #allocation1 [shape = 'u32[144,128]{1,0:T(1,128)}', space=vmem, size = 0x12000, scoped, tag = 'internal scratch']
  #allocation2 [shape = 'f32[5,128,128]{2,1,0:T(8,128)}', space=vmem, size = 0x50000, scoped, tag = 'scratch operand']
  #allocation3 [shape = 's32[1]{0}', space=sflag, size = 0x4, scoped, tag = 'scratch operand']
  #allocation8 [shape = 's32[]', space=sflag, size = 0x4, offset = 0, fixed_abs, tag = 'sflag constant byte address 0x0 - dummy sync flag']
  #allocation9 [shape = 's32[]', space=sflag, size = 0x4, offset = 0, fixed_abs, tag = 'sflag constant byte address 0x0 - dummy sync flag']
  #allocation10 [shape = 'u32[]', space=smem, size = 0x4, offset = 0x44, fixed_abs, tag = 'smem constant byte address 0x44 - assertion arg 0']
  #allocation11 [shape = 'u32[]', space=smem, size = 0x4, offset = 0x48, fixed_abs, tag = 'smem constant byte address 0x48 - assertion arg 1']
  %s0 = inlined_call_operand.vmem [shape: f32[7], index: 0, kind: input, shape index: {}]
  %s1 = inlined_call_operand.vmem [shape: f32[8,128], index: 1, kind: input, shape index: {}]
  %s2 = inlined_call_operand.hbm [shape: f32[128,128], index: 2, kind: input, shape index: {}]
  %s3 = inlined_call_operand.vmem [shape: f32[8,128], index: 3, kind: input, shape index: {}]
  %s4 = inlined_call_operand.hbm [shape: f32[5,128,128], index: 4, kind: input, shape index: {}]
  %s5 = inlined_call_operand.vmem [shape: f32[64,128], index: 5, kind: output, shape index: {}]
  %s6 = sld [smem:[#allocation0]]
  $region38: #{_decoder_apply.1} parent=0
    _
  %s8 = ssub.s32 1, %s6
  %s9 = scalar_select 0, %s8, %s6
  $region1: #{_decoder_apply.1} parent=0
    #allocation4 [shape = 'u8[512]{0}', space=smem, size = 0x200, scoped, tag = 'input window, operand 0, single buffered']
    #allocation5 [shape = 's32[1]{0}', space=sflag, size = 0x4, scoped, tag = 'scoped memory for _decoder_apply.1']
    #allocation6 [shape = 's32[1]{0}', space=sflag, size = 0x4, scoped, tag = 'scoped memory for _decoder_apply.1']
    #allocation7 [shape = 'u8[65536]{0}', space=vmem, size = 0x10000, scoped, tag = 'input window, operand 2, single buffered']
    %10 = vsyncpa [#allocation6], 0
    %11 = vsyncpa [#allocation5], 0
    // Predicated region
    $region2: #{_decoder_apply.1} parent=1 // pred_check
      _
    $region3: #{_decoder_apply.1} parent=1 // pred_check_branch
      %13 = sbr.rel (0) target = $region5
    $region4: #{_decoder_apply.1} parent=1 // pred_region
      %s15 = ssub.s32 16, 16
      %16 = vsyncadd [#allocation6], %s15
      %s18 = sshll.u32 %s0, 4
      %s19 = int_to_ptr.vmem [resolvable:$true] %s18
      %21 = dma.vmem_to_smem %s19, 16, [#allocation4], [#allocation6]
    $region5: #{_decoder_apply.1} parent=1 // pred_fallthru
      _
    // Predicated region
    $region6: #{_decoder_apply.1} parent=1 // pred_check
      _
    $region7: #{_decoder_apply.1} parent=1 // pred_check_branch
      %23 = sbr.rel (0) target = $region9
    $region8: #{_decoder_apply.1} parent=1 // pred_region
      _
    $region9: #{_decoder_apply.1} parent=1 // pred_fallthru
      _
    // Predicated region
    $region10: #{_decoder_apply.1} parent=1 // pred_check
      _
    $region11: #{_decoder_apply.1} parent=1 // pred_check_branch
      %25 = sbr.rel (0) target = $region13
    $region12: #{_decoder_apply.1} parent=1 // pred_region
      %s27 = ssub.s32 2048, 2048
      %28 = vsyncadd [#allocation5], %s27
      %s29 = sshll.u32 [#allocation7], 4
      %s30 = int_to_ptr.vmem [resolvable:$true] %s29
      %35 = dma.hbm_to_vmem [thread:$0]  %s2, 2048, %s30, [#allocation5], 128, 128, 8
    $region13: #{_decoder_apply.1} parent=1 // pred_fallthru
      _
    // Predicated region
    $region14: #{_decoder_apply.1} parent=1 // pred_check
      _
    $region15: #{_decoder_apply.1} parent=1 // pred_check_branch
      %37 = sbr.rel (0) target = $region17
    $region16: #{_decoder_apply.1} parent=1 // pred_region
      _
    $region17: #{_decoder_apply.1} parent=1 // pred_fallthru
      _
    // Predicated region
    $region18: #{_decoder_apply.1} parent=1 // pred_check
      _
    $region19: #{_decoder_apply.1} parent=1 // pred_check_branch
      %39 = sbr.rel (0) target = $region21
    $region20: #{_decoder_apply.1} parent=1 // pred_region
      %40 = dma.done [#allocation6], 16
    $region21: #{_decoder_apply.1} parent=1 // pred_fallthru
      _
    // Predicated region
    $region22: #{_decoder_apply.1} parent=1 // pred_check
      _
    $region23: #{_decoder_apply.1} parent=1 // pred_check_branch
      %42 = sbr.rel (0) target = $region25
    $region24: #{_decoder_apply.1} parent=1 // pred_region
      %43 = dma.done [#allocation5], 2048
    $region25: #{_decoder_apply.1} parent=1 // pred_fallthru
      _
    %44 = sfence
    // Predicated region
    $region26: #{_decoder_apply.1} parent=1 // pred_check
      _
    $region27: #{_decoder_apply.1} parent=1 // pred_check_branch
      %46 = sbr.rel target = $region29
    $region28: #{_decoder_apply.1} parent=1 // pred_region
      %47 = sst [smem:[#allocation10]] [#allocation9]
      %48 = sst [smem:[#allocation11]] [#allocation8]
    $region29: #{_decoder_apply.1} parent=1 // pred_fallthru
      _
    %50 = shalt.err (0)
    %s52 = sshll.u32 [#allocation2], 4
    %s53 = int_to_ptr.vmem [resolvable:$true] %s52
    %55 = dma.hbm_to_vmem [thread:$0]  %s4, 10240, %s53, [#allocation3]
    %v56 = vld [vmem:[#allocation7] sm:$0xff]
    %v57 = vld [vmem:[#allocation7 + $0x8] sm:$0xff]
    %v58 = vld [vmem:[#allocation7 + $0x10] sm:$0xff]
    %v59 = vld [vmem:[#allocation7 + $0x18] sm:$0xff]
    %v60 = vld [vmem:[#allocation7 + $0x20] sm:$0xff]
    %v61 = vld [vmem:[#allocation7 + $0x28] sm:$0xff]
    %v62 = vld [vmem:[#allocation7 + $0x30] sm:$0xff]
    %v63 = vld [vmem:[#allocation7 + $0x38] sm:$0xff]
    %v64 = vld [vmem:[#allocation7 + $0x40] sm:$0xff]
    %v65 = vld [vmem:[#allocation7 + $0x48] sm:$0xff]
    %v66 = vld [vmem:[#allocation7 + $0x50] sm:$0xff]
    %v67 = vld [vmem:[#allocation7 + $0x58] sm:$0xff]
    %v68 = vld [vmem:[#allocation7 + $0x60] sm:$0xff]
    %v69 = vld [vmem:[#allocation7 + $0x68] sm:$0xff]
    %v70 = vld [vmem:[#allocation7 + $0x70] sm:$0xff]
    %v71 = vld [vmem:[#allocation7 + $0x78] sm:$0xff]
    %v72 = vld [vmem:[%s3] sm:$0xff]
    %v73 = vlaneseq
    %v74 = vshrl.u32 %v73, 7
    %v75 = vsub.s32 0, %v74
    %v76 = vrot.slane %v72, %v75
    %v77 = vld [vmem:[%s1] sm:$0xff]
    %s78 = sld [smem:[#allocation4]]
    %s79 = smul.f32 %s78, 0.5
    %80 = vmatprep.subr.mxu0 0.0
    %81 = vmatpush1.msra.mxu0 %v56
    %82 = vmatprep.subr.mxu0 0.0
    %83 = vmatpush1.msra.mxu0 %v57
    %84 = vmatprep.subr.mxu0 0.0
    %85 = vmatpush1.msra.mxu0 %v58
    %86 = vmatprep.subr.mxu0 0.0
    %87 = vmatpush1.msra.mxu0 %v59
    %88 = vmatprep.subr.mxu0 0.0
    %89 = vmatpush1.msra.mxu0 %v60
    %90 = vmatprep.subr.mxu0 0.0
    %91 = vmatpush1.msra.mxu0 %v61
    %92 = vmatprep.subr.mxu0 0.0
    %93 = vmatpush1.msra.mxu0 %v62
    %94 = vmatprep.subr.mxu0 0.0
    %95 = vmatpush1.msra.mxu0 %v63
    %96 = vmatprep.subr.mxu0 0.0
    %97 = vmatpush1.msra.mxu0 %v64
    %98 = vmatprep.subr.mxu0 0.0
    %99 = vmatpush1.msra.mxu0 %v65
    %100 = vmatprep.subr.mxu0 0.0
    %101 = vmatpush1.msra.mxu0 %v66
    %102 = vmatprep.subr.mxu0 0.0
    %103 = vmatpush1.msra.mxu0 %v67
    %104 = vmatprep.subr.mxu0 0.0
    %105 = vmatpush1.msra.mxu0 %v68
    %106 = vmatprep.subr.mxu0 0.0
    %107 = vmatpush1.msra.mxu0 %v69
    %108 = vmatprep.subr.mxu0 0.0
    %109 = vmatpush1.msra.mxu0 %v70
    %110 = vmatprep.subr.mxu0 0.0
    %111 = vmatpush1.msra.mxu0 %v71
    %112 = vmatprep.subr.mxu0 0.0
    %113 = vmatpush1.msra.mxu0 0.0
    %114 = vmatprep.subr.mxu0 0.0
    %115 = vmatpush1.msra.mxu0 0.0
    %116 = vmatprep.subr.mxu0 0.0
    %117 = vmatpush1.msra.mxu0 0.0
    %118 = vmatprep.subr.mxu0 0.0
    %119 = vmatpush1.msra.mxu0 0.0
    %120 = vmatprep.subr.mxu0 0.0
    %121 = vmatpush1.msra.mxu0 0.0
    %122 = vmatprep.subr.mxu0 0.0
    %123 = vmatpush1.msra.mxu0 0.0
    %124 = vmatprep.subr.mxu0 0.0
    %125 = vmatpush1.msra.mxu0 0.0
    %126 = vmatprep.subr.mxu0 0.0
    %127 = vmatpush1.msra.mxu0 0.0
    %128 = vmatprep.subr.mxu0 0.0
    %129 = vmatpush1.msra.mxu0 0.0
    %130 = vmatprep.subr.mxu0 0.0
    %131 = vmatpush1.msra.mxu0 0.0
    %132 = vmatprep.subr.mxu0 0.0
    %133 = vmatpush1.msra.mxu0 0.0
    %134 = vmatprep.subr.mxu0 0.0
    %135 = vmatpush1.msra.mxu0 0.0
    %136 = vmatprep.subr.mxu0 0.0
    %137 = vmatpush1.msra.mxu0 0.0
    %138 = vmatprep.subr.mxu0 0.0
    %139 = vmatpush1.msra.mxu0 0.0
    %140 = vmatprep.subr.mxu0 0.0
    %141 = vmatpush1.msra.mxu0 0.0
    %142 = vmatprep.subr.mxu0 0.0
    %143 = vmatpush1.msra.mxu0 0.0
    %144 = vmatprep.mubr.f32.mxu0 0.0
    %145 = vmatmul.mubr.f32.gmra.mrb[0].mxu0 %v77
    %v146 = vpop.f32.mrb[0].mxu0
    %v147 = vadd.f32 %v76, %v146
    %v148 = vpop.f32.mrb[0].mxu0
    %149 = vdwg.mxu0
    %v150 = vtanh.pop %v147
    %v151 = vstv %s79
    %v152 = vmul.f32 %v151, %v150
    %v153 = vadd.f32 %v77, %v152
    %154 = vmatprep.subr.mxu0 0.0
    %155 = vmatpush1.msra.mxu0 %v56
    %156 = vmatprep.subr.mxu0 0.0
    %157 = vmatpush1.msra.mxu0 %v57
    %158 = vmatprep.subr.mxu0 0.0
    %159 = vmatpush1.msra.mxu0 %v58
    %160 = vmatprep.subr.mxu0 0.0
    %161 = vmatpush1.msra.mxu0 %v59
    %162 = vmatprep.subr.mxu0 0.0
    %163 = vmatpush1.msra.mxu0 %v60
    %164 = vmatprep.subr.mxu0 0.0
    %165 = vmatpush1.msra.mxu0 %v61
    %166 = vmatprep.subr.mxu0 0.0
    %167 = vmatpush1.msra.mxu0 %v62
    %168 = vmatprep.subr.mxu0 0.0
    %169 = vmatpush1.msra.mxu0 %v63
    %170 = vmatprep.subr.mxu0 0.0
    %171 = vmatpush1.msra.mxu0 %v64
    %172 = vmatprep.subr.mxu0 0.0
    %173 = vmatpush1.msra.mxu0 %v65
    %174 = vmatprep.subr.mxu0 0.0
    %175 = vmatpush1.msra.mxu0 %v66
    %176 = vmatprep.subr.mxu0 0.0
    %177 = vmatpush1.msra.mxu0 %v67
    %178 = vmatprep.subr.mxu0 0.0
    %179 = vmatpush1.msra.mxu0 %v68
    %180 = vmatprep.subr.mxu0 0.0
    %181 = vmatpush1.msra.mxu0 %v69
    %182 = vmatprep.subr.mxu0 0.0
    %183 = vmatpush1.msra.mxu0 %v70
    %184 = vmatprep.subr.mxu0 0.0
    %185 = vmatpush1.msra.mxu0 %v71
    %186 = vmatprep.subr.mxu0 0.0
    %187 = vmatpush1.msra.mxu0 0.0
    %188 = vmatprep.subr.mxu0 0.0
    %189 = vmatpush1.msra.mxu0 0.0
    %190 = vmatprep.subr.mxu0 0.0
    %191 = vmatpush1.msra.mxu0 0.0
    %192 = vmatprep.subr.mxu0 0.0
    %193 = vmatpush1.msra.mxu0 0.0
    %194 = vmatprep.subr.mxu0 0.0
    %195 = vmatpush1.msra.mxu0 0.0
    %196 = vmatprep.subr.mxu0 0.0
    %197 = vmatpush1.msra.mxu0 0.0
    %198 = vmatprep.subr.mxu0 0.0
    %199 = vmatpush1.msra.mxu0 0.0
    %200 = vmatprep.subr.mxu0 0.0
    %201 = vmatpush1.msra.mxu0 0.0
    %202 = vmatprep.subr.mxu0 0.0
    %203 = vmatpush1.msra.mxu0 0.0
    %204 = vmatprep.subr.mxu0 0.0
    %205 = vmatpush1.msra.mxu0 0.0
    %206 = vmatprep.subr.mxu0 0.0
    %207 = vmatpush1.msra.mxu0 0.0
    %208 = vmatprep.subr.mxu0 0.0
    %209 = vmatpush1.msra.mxu0 0.0
    %210 = vmatprep.subr.mxu0 0.0
    %211 = vmatpush1.msra.mxu0 0.0
    %212 = vmatprep.subr.mxu0 0.0
    %213 = vmatpush1.msra.mxu0 0.0
    %214 = vmatprep.subr.mxu0 0.0
    %215 = vmatpush1.msra.mxu0 0.0
    %216 = vmatprep.subr.mxu0 0.0
    %217 = vmatpush1.msra.mxu0 0.0
    %218 = vmatprep.mubr.f32.mxu0 0.0
    %219 = vmatmul.mubr.f32.gmra.mrb[0].mxu0 %v153
    %v220 = vpop.f32.mrb[0].mxu0
    %v221 = vadd.f32 %v76, %v220
    %v222 = vpop.f32.mrb[0].mxu0
    %223 = vdwg.mxu0
    %v224 = vtanh.pop %v221
    %v225 = vmul.f32 %v151, %v224
    %v226 = vadd.f32 %v77, %v225
    %227 = vmatprep.subr.mxu0 0.0
    %228 = vmatpush1.msra.mxu0 %v56
    %229 = vmatprep.subr.mxu0 0.0
    %230 = vmatpush1.msra.mxu0 %v57
    %231 = vmatprep.subr.mxu0 0.0
    %232 = vmatpush1.msra.mxu0 %v58
    %233 = vmatprep.subr.mxu0 0.0
    %234 = vmatpush1.msra.mxu0 %v59
    %235 = vmatprep.subr.mxu0 0.0
    %236 = vmatpush1.msra.mxu0 %v60
    %237 = vmatprep.subr.mxu0 0.0
    %238 = vmatpush1.msra.mxu0 %v61
    %239 = vmatprep.subr.mxu0 0.0
    %240 = vmatpush1.msra.mxu0 %v62
    %241 = vmatprep.subr.mxu0 0.0
    %242 = vmatpush1.msra.mxu0 %v63
    %243 = vmatprep.subr.mxu0 0.0
    %244 = vmatpush1.msra.mxu0 %v64
    %245 = vmatprep.subr.mxu0 0.0
    %246 = vmatpush1.msra.mxu0 %v65
    %247 = vmatprep.subr.mxu0 0.0
    %248 = vmatpush1.msra.mxu0 %v66
    %249 = vmatprep.subr.mxu0 0.0
    %250 = vmatpush1.msra.mxu0 %v67
    %251 = vmatprep.subr.mxu0 0.0
    %252 = vmatpush1.msra.mxu0 %v68
    %253 = vmatprep.subr.mxu0 0.0
    %254 = vmatpush1.msra.mxu0 %v69
    %255 = vmatprep.subr.mxu0 0.0
    %256 = vmatpush1.msra.mxu0 %v70
    %257 = vmatprep.subr.mxu0 0.0
    %258 = vmatpush1.msra.mxu0 %v71
    %259 = vmatprep.subr.mxu0 0.0
    %260 = vmatpush1.msra.mxu0 0.0
    %261 = vmatprep.subr.mxu0 0.0
    %262 = vmatpush1.msra.mxu0 0.0
    %263 = vmatprep.subr.mxu0 0.0
    %264 = vmatpush1.msra.mxu0 0.0
    %265 = vmatprep.subr.mxu0 0.0
    %266 = vmatpush1.msra.mxu0 0.0
    %267 = vmatprep.subr.mxu0 0.0
    %268 = vmatpush1.msra.mxu0 0.0
    %269 = vmatprep.subr.mxu0 0.0
    %270 = vmatpush1.msra.mxu0 0.0
    %271 = vmatprep.subr.mxu0 0.0
    %272 = vmatpush1.msra.mxu0 0.0
    %273 = vmatprep.subr.mxu0 0.0
    %274 = vmatpush1.msra.mxu0 0.0
    %275 = vmatprep.subr.mxu0 0.0
    %276 = vmatpush1.msra.mxu0 0.0
    %277 = vmatprep.subr.mxu0 0.0
    %278 = vmatpush1.msra.mxu0 0.0
    %279 = vmatprep.subr.mxu0 0.0
    %280 = vmatpush1.msra.mxu0 0.0
    %281 = vmatprep.subr.mxu0 0.0
    %282 = vmatpush1.msra.mxu0 0.0
    %283 = vmatprep.subr.mxu0 0.0
    %284 = vmatpush1.msra.mxu0 0.0
    %285 = vmatprep.subr.mxu0 0.0
    %286 = vmatpush1.msra.mxu0 0.0
    %287 = vmatprep.subr.mxu0 0.0
    %288 = vmatpush1.msra.mxu0 0.0
    %289 = vmatprep.subr.mxu0 0.0
    %290 = vmatpush1.msra.mxu0 0.0
    %291 = vmatprep.mubr.f32.mxu0 0.0
    %292 = vmatmul.mubr.f32.gmra.mrb[0].mxu0 %v226
    %v293 = vpop.f32.mrb[0].mxu0
    %v294 = vadd.f32 %v76, %v293
    %v295 = vpop.f32.mrb[0].mxu0
    %296 = vdwg.mxu0
    %v297 = vtanh.pop %v294
    %v298 = vstv %s78
    %v299 = vmul.f32 %v298, %v297
    %v300 = vadd.f32 %v77, %v299
    %301 = vmatprep.subr.mxu0 0.0
    %302 = vmatpush1.msra.mxu0 %v56
    %303 = vmatprep.subr.mxu0 0.0
    %304 = vmatpush1.msra.mxu0 %v57
    %305 = vmatprep.subr.mxu0 0.0
    %306 = vmatpush1.msra.mxu0 %v58
    %307 = vmatprep.subr.mxu0 0.0
    %308 = vmatpush1.msra.mxu0 %v59
    %309 = vmatprep.subr.mxu0 0.0
    %310 = vmatpush1.msra.mxu0 %v60
    %311 = vmatprep.subr.mxu0 0.0
    %312 = vmatpush1.msra.mxu0 %v61
    %313 = vmatprep.subr.mxu0 0.0
    %314 = vmatpush1.msra.mxu0 %v62
    %315 = vmatprep.subr.mxu0 0.0
    %316 = vmatpush1.msra.mxu0 %v63
    %317 = vmatprep.subr.mxu0 0.0
    %318 = vmatpush1.msra.mxu0 %v64
    %319 = vmatprep.subr.mxu0 0.0
    %320 = vmatpush1.msra.mxu0 %v65
    %321 = vmatprep.subr.mxu0 0.0
    %322 = vmatpush1.msra.mxu0 %v66
    %323 = vmatprep.subr.mxu0 0.0
    %324 = vmatpush1.msra.mxu0 %v67
    %325 = vmatprep.subr.mxu0 0.0
    %326 = vmatpush1.msra.mxu0 %v68
    %327 = vmatprep.subr.mxu0 0.0
    %328 = vmatpush1.msra.mxu0 %v69
    %329 = vmatprep.subr.mxu0 0.0
    %330 = vmatpush1.msra.mxu0 %v70
    %331 = vmatprep.subr.mxu0 0.0
    %332 = vmatpush1.msra.mxu0 %v71
    %333 = vmatprep.subr.mxu0 0.0
    %334 = vmatpush1.msra.mxu0 0.0
    %335 = vmatprep.subr.mxu0 0.0
    %336 = vmatpush1.msra.mxu0 0.0
    %337 = vmatprep.subr.mxu0 0.0
    %338 = vmatpush1.msra.mxu0 0.0
    %339 = vmatprep.subr.mxu0 0.0
    %340 = vmatpush1.msra.mxu0 0.0
    %341 = vmatprep.subr.mxu0 0.0
    %342 = vmatpush1.msra.mxu0 0.0
    %343 = vmatprep.subr.mxu0 0.0
    %344 = vmatpush1.msra.mxu0 0.0
    %345 = vmatprep.subr.mxu0 0.0
    %346 = vmatpush1.msra.mxu0 0.0
    %347 = vmatprep.subr.mxu0 0.0
    %348 = vmatpush1.msra.mxu0 0.0
    %349 = vmatprep.subr.mxu0 0.0
    %350 = vmatpush1.msra.mxu0 0.0
    %351 = vmatprep.subr.mxu0 0.0
    %352 = vmatpush1.msra.mxu0 0.0
    %353 = vmatprep.subr.mxu0 0.0
    %354 = vmatpush1.msra.mxu0 0.0
    %355 = vmatprep.subr.mxu0 0.0
    %356 = vmatpush1.msra.mxu0 0.0
    %357 = vmatprep.subr.mxu0 0.0
    %358 = vmatpush1.msra.mxu0 0.0
    %359 = vmatprep.subr.mxu0 0.0
    %360 = vmatpush1.msra.mxu0 0.0
    %361 = vmatprep.subr.mxu0 0.0
    %362 = vmatpush1.msra.mxu0 0.0
    %363 = vmatprep.subr.mxu0 0.0
    %364 = vmatpush1.msra.mxu0 0.0
    %365 = vmatprep.mubr.f32.mxu0 0.0
    %366 = vmatmul.mubr.f32.gmra.mrb[0].mxu0 %v300
    %v367 = vpop.f32.mrb[0].mxu0
    %v368 = vadd.f32 %v76, %v367
    %v369 = vpop.f32.mrb[0].mxu0
    %370 = vdwg.mxu0
    %v371 = vtanh.pop %v368
    %s372 = smul.f32 %s78, 0.16666667
    %v373 = vmul.f32 %v224, 2.0
    %v374 = vadd.f32 %v150, %v373
    %v375 = vmul.f32 %v297, 2.0
    %v376 = vadd.f32 %v374, %v375
    %v377 = vadd.f32 %v376, %v371
    %v378 = vstv %s372
    %v379 = vmul.f32 %v378, %v377
    %v380 = vadd.f32 %v77, %v379
    %s381 = sld [smem:[#allocation4 + $0x1]]
    %s382 = smul.f32 %s381, 0.5
    %383 = vmatprep.subr.mxu0 0.0
    %384 = vmatpush1.msra.mxu0 %v56
    %385 = vmatprep.subr.mxu0 0.0
    %386 = vmatpush1.msra.mxu0 %v57
    %387 = vmatprep.subr.mxu0 0.0
    %388 = vmatpush1.msra.mxu0 %v58
    %389 = vmatprep.subr.mxu0 0.0
    %390 = vmatpush1.msra.mxu0 %v59
    %391 = vmatprep.subr.mxu0 0.0
    %392 = vmatpush1.msra.mxu0 %v60
    %393 = vmatprep.subr.mxu0 0.0
    %394 = vmatpush1.msra.mxu0 %v61
    %395 = vmatprep.subr.mxu0 0.0
    %396 = vmatpush1.msra.mxu0 %v62
    %397 = vmatprep.subr.mxu0 0.0
    %398 = vmatpush1.msra.mxu0 %v63
    %399 = vmatprep.subr.mxu0 0.0
    %400 = vmatpush1.msra.mxu0 %v64
    %401 = vmatprep.subr.mxu0 0.0
    %402 = vmatpush1.msra.mxu0 %v65
    %403 = vmatprep.subr.mxu0 0.0
    %404 = vmatpush1.msra.mxu0 %v66
    %405 = vmatprep.subr.mxu0 0.0
    %406 = vmatpush1.msra.mxu0 %v67
    %407 = vmatprep.subr.mxu0 0.0
    %408 = vmatpush1.msra.mxu0 %v68
    %409 = vmatprep.subr.mxu0 0.0
    %410 = vmatpush1.msra.mxu0 %v69
    %411 = vmatprep.subr.mxu0 0.0
    %412 = vmatpush1.msra.mxu0 %v70
    %413 = vmatprep.subr.mxu0 0.0
    %414 = vmatpush1.msra.mxu0 %v71
    %415 = vmatprep.subr.mxu0 0.0
    %416 = vmatpush1.msra.mxu0 0.0
    %417 = vmatprep.subr.mxu0 0.0
    %418 = vmatpush1.msra.mxu0 0.0
    %419 = vmatprep.subr.mxu0 0.0
    %420 = vmatpush1.msra.mxu0 0.0
    %421 = vmatprep.subr.mxu0 0.0
    %422 = vmatpush1.msra.mxu0 0.0
    %423 = vmatprep.subr.mxu0 0.0
    %424 = vmatpush1.msra.mxu0 0.0
    %425 = vmatprep.subr.mxu0 0.0
    %426 = vmatpush1.msra.mxu0 0.0
    %427 = vmatprep.subr.mxu0 0.0
    %428 = vmatpush1.msra.mxu0 0.0
    %429 = vmatprep.subr.mxu0 0.0
    %430 = vmatpush1.msra.mxu0 0.0
    %431 = vmatprep.subr.mxu0 0.0
    %432 = vmatpush1.msra.mxu0 0.0
    %433 = vmatprep.subr.mxu0 0.0
    %434 = vmatpush1.msra.mxu0 0.0
    %435 = vmatprep.subr.mxu0 0.0
    %436 = vmatpush1.msra.mxu0 0.0
    %437 = vmatprep.subr.mxu0 0.0
    %438 = vmatpush1.msra.mxu0 0.0
    %439 = vmatprep.subr.mxu0 0.0
    %440 = vmatpush1.msra.mxu0 0.0
    %441 = vmatprep.subr.mxu0 0.0
    %442 = vmatpush1.msra.mxu0 0.0
    %443 = vmatprep.subr.mxu0 0.0
    %444 = vmatpush1.msra.mxu0 0.0
    %445 = vmatprep.subr.mxu0 0.0
    %446 = vmatpush1.msra.mxu0 0.0
    %447 = vmatprep.mubr.f32.mxu0 0.0
    %448 = vmatmul.mubr.f32.gmra.mrb[0].mxu0 %v380
    %v449 = vpop.f32.mrb[0].mxu0
    %v450 = vadd.f32 %v76, %v449
    %v451 = vpop.f32.mrb[0].mxu0
    %452 = vdwg.mxu0
    %v453 = vtanh.pop %v450
    %v454 = vstv %s382
    %v455 = vmul.f32 %v454, %v453
    %v456 = vadd.f32 %v380, %v455
    %457 = vmatprep.subr.mxu0 0.0
    %458 = vmatpush1.msra.mxu0 %v56
    %459 = vmatprep.subr.mxu0 0.0
    %460 = vmatpush1.msra.mxu0 %v57
    %461 = vmatprep.subr.mxu0 0.0
    %462 = vmatpush1.msra.mxu0 %v58
    %463 = vmatprep.subr.mxu0 0.0
    %464 = vmatpush1.msra.mxu0 %v59
    %465 = vmatprep.subr.mxu0 0.0
    %466 = vmatpush1.msra.mxu0 %v60
    %467 = vmatprep.subr.mxu0 0.0
    %468 = vmatpush1.msra.mxu0 %v61
    %469 = vmatprep.subr.mxu0 0.0
    %470 = vmatpush1.msra.mxu0 %v62
    %471 = vmatprep.subr.mxu0 0.0
    %472 = vmatpush1.msra.mxu0 %v63
    %473 = vmatprep.subr.mxu0 0.0
    %474 = vmatpush1.msra.mxu0 %v64
    %475 = vmatprep.subr.mxu0 0.0
    %476 = vmatpush1.msra.mxu0 %v65
    %477 = vmatprep.subr.mxu0 0.0
    %478 = vmatpush1.msra.mxu0 %v66
    %479 = vmatprep.subr.mxu0 0.0
    %480 = vmatpush1.msra.mxu0 %v67
    %481 = vmatprep.subr.mxu0 0.0
    %482 = vmatpush1.msra.mxu0 %v68
    %483 = vmatprep.subr.mxu0 0.0
    %484 = vmatpush1.msra.mxu0 %v69
    %485 = vmatprep.subr.mxu0 0.0
    %486 = vmatpush1.msra.mxu0 %v70
    %487 = vmatprep.subr.mxu0 0.0
    %488 = vmatpush1.msra.mxu0 %v71
    %489 = vmatprep.subr.mxu0 0.0
    %490 = vmatpush1.msra.mxu0 0.0
    %491 = vmatprep.subr.mxu0 0.0
    %492 = vmatpush1.msra.mxu0 0.0
    %493 = vmatprep.subr.mxu0 0.0
    %494 = vmatpush1.msra.mxu0 0.0
    %495 = vmatprep.subr.mxu0 0.0
    %496 = vmatpush1.msra.mxu0 0.0
    %497 = vmatprep.subr.mxu0 0.0
    %498 = vmatpush1.msra.mxu0 0.0
    %499 = vmatprep.subr.mxu0 0.0
    %500 = vmatpush1.msra.mxu0 0.0
    %501 = vmatprep.subr.mxu0 0.0
    %502 = vmatpush1.msra.mxu0 0.0
    %503 = vmatprep.subr.mxu0 0.0
    %504 = vmatpush1.msra.mxu0 0.0
    %505 = vmatprep.subr.mxu0 0.0
    %506 = vmatpush1.msra.mxu0 0.0
    %507 = vmatprep.subr.mxu0 0.0
    %508 = vmatpush1.msra.mxu0 0.0
    %509 = vmatprep.subr.mxu0 0.0
    %510 = vmatpush1.msra.mxu0 0.0
    %511 = vmatprep.subr.mxu0 0.0
    %512 = vmatpush1.msra.mxu0 0.0
    %513 = vmatprep.subr.mxu0 0.0
    %514 = vmatpush1.msra.mxu0 0.0
    %515 = vmatprep.subr.mxu0 0.0
    %516 = vmatpush1.msra.mxu0 0.0
    %517 = vmatprep.subr.mxu0 0.0
    %518 = vmatpush1.msra.mxu0 0.0
    %519 = vmatprep.subr.mxu0 0.0
    %520 = vmatpush1.msra.mxu0 0.0
    %521 = vmatprep.mubr.f32.mxu0 0.0
    %522 = vmatmul.mubr.f32.gmra.mrb[0].mxu0 %v456
    %v523 = vpop.f32.mrb[0].mxu0
    %v524 = vadd.f32 %v76, %v523
    %v525 = vpop.f32.mrb[0].mxu0
    %526 = vdwg.mxu0
    %v527 = vtanh.pop %v524
    %v528 = vmul.f32 %v454, %v527
    %v529 = vadd.f32 %v380, %v528
    %530 = vmatprep.subr.mxu0 0.0
    %531 = vmatpush1.msra.mxu0 %v56
    %532 = vmatprep.subr.mxu0 0.0
    %533 = vmatpush1.msra.mxu0 %v57
    %534 = vmatprep.subr.mxu0 0.0
    %535 = vmatpush1.msra.mxu0 %v58
    %536 = vmatprep.subr.mxu0 0.0
    %537 = vmatpush1.msra.mxu0 %v59
    %538 = vmatprep.subr.mxu0 0.0
    %539 = vmatpush1.msra.mxu0 %v60
    %540 = vmatprep.subr.mxu0 0.0
    %541 = vmatpush1.msra.mxu0 %v61
    %542 = vmatprep.subr.mxu0 0.0
    %543 = vmatpush1.msra.mxu0 %v62
    %544 = vmatprep.subr.mxu0 0.0
    %545 = vmatpush1.msra.mxu0 %v63
    %546 = vmatprep.subr.mxu0 0.0
    %547 = vmatpush1.msra.mxu0 %v64
    %548 = vmatprep.subr.mxu0 0.0
    %549 = vmatpush1.msra.mxu0 %v65
    %550 = vmatprep.subr.mxu0 0.0
    %551 = vmatpush1.msra.mxu0 %v66
    %552 = vmatprep.subr.mxu0 0.0
    %553 = vmatpush1.msra.mxu0 %v67
    %554 = vmatprep.subr.mxu0 0.0
    %555 = vmatpush1.msra.mxu0 %v68
    %556 = vmatprep.subr.mxu0 0.0
    %557 = vmatpush1.msra.mxu0 %v69
    %558 = vmatprep.subr.mxu0 0.0
    %559 = vmatpush1.msra.mxu0 %v70
    %560 = vmatprep.subr.mxu0 0.0
    %561 = vmatpush1.msra.mxu0 %v71
    %562 = vmatprep.subr.mxu0 0.0
    %563 = vmatpush1.msra.mxu0 0.0
    %564 = vmatprep.subr.mxu0 0.0
    %565 = vmatpush1.msra.mxu0 0.0
    %566 = vmatprep.subr.mxu0 0.0
    %567 = vmatpush1.msra.mxu0 0.0
    %568 = vmatprep.subr.mxu0 0.0
    %569 = vmatpush1.msra.mxu0 0.0
    %570 = vmatprep.subr.mxu0 0.0
    %571 = vmatpush1.msra.mxu0 0.0
    %572 = vmatprep.subr.mxu0 0.0
    %573 = vmatpush1.msra.mxu0 0.0
    %574 = vmatprep.subr.mxu0 0.0
    %575 = vmatpush1.msra.mxu0 0.0
    %576 = vmatprep.subr.mxu0 0.0
    %577 = vmatpush1.msra.mxu0 0.0
    %578 = vmatprep.subr.mxu0 0.0
    %579 = vmatpush1.msra.mxu0 0.0
    %580 = vmatprep.subr.mxu0 0.0
    %581 = vmatpush1.msra.mxu0 0.0
    %582 = vmatprep.subr.mxu0 0.0
    %583 = vmatpush1.msra.mxu0 0.0
    %584 = vmatprep.subr.mxu0 0.0
    %585 = vmatpush1.msra.mxu0 0.0
    %586 = vmatprep.subr.mxu0 0.0
    %587 = vmatpush1.msra.mxu0 0.0
    %588 = vmatprep.subr.mxu0 0.0
    %589 = vmatpush1.msra.mxu0 0.0
    %590 = vmatprep.subr.mxu0 0.0
    %591 = vmatpush1.msra.mxu0 0.0
    %592 = vmatprep.subr.mxu0 0.0
    %593 = vmatpush1.msra.mxu0 0.0
    %594 = vmatprep.mubr.f32.mxu0 0.0
    %595 = vmatmul.mubr.f32.gmra.mrb[0].mxu0 %v529
    %v596 = vpop.f32.mrb[0].mxu0
    %v597 = vadd.f32 %v76, %v596
    %v598 = vpop.f32.mrb[0].mxu0
    %599 = vdwg.mxu0
    %v600 = vtanh.pop %v597
    %v601 = vstv %s381
    %v602 = vmul.f32 %v601, %v600
    %v603 = vadd.f32 %v380, %v602
    %604 = vmatprep.subr.mxu0 0.0
    %605 = vmatpush1.msra.mxu0 %v56
    %606 = vmatprep.subr.mxu0 0.0
    %607 = vmatpush1.msra.mxu0 %v57
    %608 = vmatprep.subr.mxu0 0.0
    %609 = vmatpush1.msra.mxu0 %v58
    %610 = vmatprep.subr.mxu0 0.0
    %611 = vmatpush1.msra.mxu0 %v59
    %612 = vmatprep.subr.mxu0 0.0
    %613 = vmatpush1.msra.mxu0 %v60
    %614 = vmatprep.subr.mxu0 0.0
    %615 = vmatpush1.msra.mxu0 %v61
    %616 = vmatprep.subr.mxu0 0.0
    %617 = vmatpush1.msra.mxu0 %v62
    %618 = vmatprep.subr.mxu0 0.0
    %619 = vmatpush1.msra.mxu0 %v63
    %620 = vmatprep.subr.mxu0 0.0
    %621 = vmatpush1.msra.mxu0 %v64
    %622 = vmatprep.subr.mxu0 0.0
    %623 = vmatpush1.msra.mxu0 %v65
    %624 = vmatprep.subr.mxu0 0.0
    %625 = vmatpush1.msra.mxu0 %v66
    %626 = vmatprep.subr.mxu0 0.0
    %627 = vmatpush1.msra.mxu0 %v67
    %628 = vmatprep.subr.mxu0 0.0
    %629 = vmatpush1.msra.mxu0 %v68
    %630 = vmatprep.subr.mxu0 0.0
    %631 = vmatpush1.msra.mxu0 %v69
    %632 = vmatprep.subr.mxu0 0.0
    %633 = vmatpush1.msra.mxu0 %v70
    %634 = vmatprep.subr.mxu0 0.0
    %635 = vmatpush1.msra.mxu0 %v71
    %636 = vmatprep.subr.mxu0 0.0
    %637 = vmatpush1.msra.mxu0 0.0
    %638 = vmatprep.subr.mxu0 0.0
    %639 = vmatpush1.msra.mxu0 0.0
    %640 = vmatprep.subr.mxu0 0.0
    %641 = vmatpush1.msra.mxu0 0.0
    %642 = vmatprep.subr.mxu0 0.0
    %643 = vmatpush1.msra.mxu0 0.0
    %644 = vmatprep.subr.mxu0 0.0
    %645 = vmatpush1.msra.mxu0 0.0
    %646 = vmatprep.subr.mxu0 0.0
    %647 = vmatpush1.msra.mxu0 0.0
    %648 = vmatprep.subr.mxu0 0.0
    %649 = vmatpush1.msra.mxu0 0.0
    %650 = vmatprep.subr.mxu0 0.0
    %651 = vmatpush1.msra.mxu0 0.0
    %652 = vmatprep.subr.mxu0 0.0
    %653 = vmatpush1.msra.mxu0 0.0
    %654 = vmatprep.subr.mxu0 0.0
    %655 = vmatpush1.msra.mxu0 0.0
    %656 = vmatprep.subr.mxu0 0.0
    %657 = vmatpush1.msra.mxu0 0.0
    %658 = vmatprep.subr.mxu0 0.0
    %659 = vmatpush1.msra.mxu0 0.0
    %660 = vmatprep.subr.mxu0 0.0
    %661 = vmatpush1.msra.mxu0 0.0
    %662 = vmatprep.subr.mxu0 0.0
    %663 = vmatpush1.msra.mxu0 0.0
    %664 = vmatprep.subr.mxu0 0.0
    %665 = vmatpush1.msra.mxu0 0.0
    %666 = vmatprep.subr.mxu0 0.0
    %667 = vmatpush1.msra.mxu0 0.0
    %668 = vmatprep.mubr.f32.mxu0 0.0
    %669 = vmatmul.mubr.f32.gmra.mrb[0].mxu0 %v603
    %v670 = vpop.f32.mrb[0].mxu0
    %v671 = vadd.f32 %v76, %v670
    %v672 = vpop.f32.mrb[0].mxu0
    %673 = vdwg.mxu0
    %v674 = vtanh.pop %v671
    %s675 = smul.f32 %s381, 0.16666667
    %v676 = vmul.f32 %v527, 2.0
    %v677 = vadd.f32 %v453, %v676
    %v678 = vmul.f32 %v600, 2.0
    %v679 = vadd.f32 %v677, %v678
    %v680 = vadd.f32 %v679, %v674
    %v681 = vstv %s675
    %v682 = vmul.f32 %v681, %v680
    %v683 = vadd.f32 %v380, %v682
    %s684 = sld [smem:[#allocation4 + $0x2]]
    %s685 = smul.f32 %s684, 0.5
    %686 = vmatprep.subr.mxu0 0.0
    %687 = vmatpush1.msra.mxu0 %v56
    %688 = vmatprep.subr.mxu0 0.0
    %689 = vmatpush1.msra.mxu0 %v57
    %690 = vmatprep.subr.mxu0 0.0
    %691 = vmatpush1.msra.mxu0 %v58
    %692 = vmatprep.subr.mxu0 0.0
    %693 = vmatpush1.msra.mxu0 %v59
    %694 = vmatprep.subr.mxu0 0.0
    %695 = vmatpush1.msra.mxu0 %v60
    %696 = vmatprep.subr.mxu0 0.0
    %697 = vmatpush1.msra.mxu0 %v61
    %698 = vmatprep.subr.mxu0 0.0
    %699 = vmatpush1.msra.mxu0 %v62
    %700 = vmatprep.subr.mxu0 0.0
    %701 = vmatpush1.msra.mxu0 %v63
    %702 = vmatprep.subr.mxu0 0.0
    %703 = vmatpush1.msra.mxu0 %v64
    %704 = vmatprep.subr.mxu0 0.0
    %705 = vmatpush1.msra.mxu0 %v65
    %706 = vmatprep.subr.mxu0 0.0
    %707 = vmatpush1.msra.mxu0 %v66
    %708 = vmatprep.subr.mxu0 0.0
    %709 = vmatpush1.msra.mxu0 %v67
    %710 = vmatprep.subr.mxu0 0.0
    %711 = vmatpush1.msra.mxu0 %v68
    %712 = vmatprep.subr.mxu0 0.0
    %713 = vmatpush1.msra.mxu0 %v69
    %714 = vmatprep.subr.mxu0 0.0
    %715 = vmatpush1.msra.mxu0 %v70
    %716 = vmatprep.subr.mxu0 0.0
    %717 = vmatpush1.msra.mxu0 %v71
    %718 = vmatprep.subr.mxu0 0.0
    %719 = vmatpush1.msra.mxu0 0.0
    %720 = vmatprep.subr.mxu0 0.0
    %721 = vmatpush1.msra.mxu0 0.0
    %722 = vmatprep.subr.mxu0 0.0
    %723 = vmatpush1.msra.mxu0 0.0
    %724 = vmatprep.subr.mxu0 0.0
    %725 = vmatpush1.msra.mxu0 0.0
    %726 = vmatprep.subr.mxu0 0.0
    %727 = vmatpush1.msra.mxu0 0.0
    %728 = vmatprep.subr.mxu0 0.0
    %729 = vmatpush1.msra.mxu0 0.0
    %730 = vmatprep.subr.mxu0 0.0
    %731 = vmatpush1.msra.mxu0 0.0
    %732 = vmatprep.subr.mxu0 0.0
    %733 = vmatpush1.msra.mxu0 0.0
    %734 = vmatprep.subr.mxu0 0.0
    %735 = vmatpush1.msra.mxu0 0.0
    %736 = vmatprep.subr.mxu0 0.0
    %737 = vmatpush1.msra.mxu0 0.0
    %738 = vmatprep.subr.mxu0 0.0
    %739 = vmatpush1.msra.mxu0 0.0
    %740 = vmatprep.subr.mxu0 0.0
    %741 = vmatpush1.msra.mxu0 0.0
    %742 = vmatprep.subr.mxu0 0.0
    %743 = vmatpush1.msra.mxu0 0.0
    %744 = vmatprep.subr.mxu0 0.0
    %745 = vmatpush1.msra.mxu0 0.0
    %746 = vmatprep.subr.mxu0 0.0
    %747 = vmatpush1.msra.mxu0 0.0
    %748 = vmatprep.subr.mxu0 0.0
    %749 = vmatpush1.msra.mxu0 0.0
    %750 = vmatprep.mubr.f32.mxu0 0.0
    %751 = vmatmul.mubr.f32.gmra.mrb[0].mxu0 %v683
    %v752 = vpop.f32.mrb[0].mxu0
    %v753 = vadd.f32 %v76, %v752
    %v754 = vpop.f32.mrb[0].mxu0
    %755 = vdwg.mxu0
    %v756 = vtanh.pop %v753
    %v757 = vstv %s685
    %v758 = vmul.f32 %v757, %v756
    %v759 = vadd.f32 %v683, %v758
    %760 = vmatprep.subr.mxu0 0.0
    %761 = vmatpush1.msra.mxu0 %v56
    %762 = vmatprep.subr.mxu0 0.0
    %763 = vmatpush1.msra.mxu0 %v57
    %764 = vmatprep.subr.mxu0 0.0
    %765 = vmatpush1.msra.mxu0 %v58
    %766 = vmatprep.subr.mxu0 0.0
    %767 = vmatpush1.msra.mxu0 %v59
    %768 = vmatprep.subr.mxu0 0.0
    %769 = vmatpush1.msra.mxu0 %v60
    %770 = vmatprep.subr.mxu0 0.0
    %771 = vmatpush1.msra.mxu0 %v61
    %772 = vmatprep.subr.mxu0 0.0
    %773 = vmatpush1.msra.mxu0 %v62
    %774 = vmatprep.subr.mxu0 0.0
    %775 = vmatpush1.msra.mxu0 %v63
    %776 = vmatprep.subr.mxu0 0.0
    %777 = vmatpush1.msra.mxu0 %v64
    %778 = vmatprep.subr.mxu0 0.0
    %779 = vmatpush1.msra.mxu0 %v65
    %780 = vmatprep.subr.mxu0 0.0
    %781 = vmatpush1.msra.mxu0 %v66
    %782 = vmatprep.subr.mxu0 0.0
    %783 = vmatpush1.msra.mxu0 %v67
    %784 = vmatprep.subr.mxu0 0.0
    %785 = vmatpush1.msra.mxu0 %v68
    %786 = vmatprep.subr.mxu0 0.0
    %787 = vmatpush1.msra.mxu0 %v69
    %788 = vmatprep.subr.mxu0 0.0
    %789 = vmatpush1.msra.mxu0 %v70
    %790 = vmatprep.subr.mxu0 0.0
    %791 = vmatpush1.msra.mxu0 %v71
    %792 = vmatprep.subr.mxu0 0.0
    %793 = vmatpush1.msra.mxu0 0.0
    %794 = vmatprep.subr.mxu0 0.0
    %795 = vmatpush1.msra.mxu0 0.0
    %796 = vmatprep.subr.mxu0 0.0
    %797 = vmatpush1.msra.mxu0 0.0
    %798 = vmatprep.subr.mxu0 0.0
    %799 = vmatpush1.msra.mxu0 0.0
    %800 = vmatprep.subr.mxu0 0.0
    %801 = vmatpush1.msra.mxu0 0.0
    %802 = vmatprep.subr.mxu0 0.0
    %803 = vmatpush1.msra.mxu0 0.0
    %804 = vmatprep.subr.mxu0 0.0
    %805 = vmatpush1.msra.mxu0 0.0
    %806 = vmatprep.subr.mxu0 0.0
    %807 = vmatpush1.msra.mxu0 0.0
    %808 = vmatprep.subr.mxu0 0.0
    %809 = vmatpush1.msra.mxu0 0.0
    %810 = vmatprep.subr.mxu0 0.0
    %811 = vmatpush1.msra.mxu0 0.0
    %812 = vmatprep.subr.mxu0 0.0
    %813 = vmatpush1.msra.mxu0 0.0
    %814 = vmatprep.subr.mxu0 0.0
    %815 = vmatpush1.msra.mxu0 0.0
    %816 = vmatprep.subr.mxu0 0.0
    %817 = vmatpush1.msra.mxu0 0.0
    %818 = vmatprep.subr.mxu0 0.0
    %819 = vmatpush1.msra.mxu0 0.0
    %820 = vmatprep.subr.mxu0 0.0
    %821 = vmatpush1.msra.mxu0 0.0
    %822 = vmatprep.subr.mxu0 0.0
    %823 = vmatpush1.msra.mxu0 0.0
    %824 = vmatprep.mubr.f32.mxu0 0.0
    %825 = vmatmul.mubr.f32.gmra.mrb[0].mxu0 %v759
    %v826 = vpop.f32.mrb[0].mxu0
    %v827 = vadd.f32 %v76, %v826
    %v828 = vpop.f32.mrb[0].mxu0
    %829 = vdwg.mxu0
    %v830 = vtanh.pop %v827
    %v831 = vmul.f32 %v757, %v830
    %v832 = vadd.f32 %v683, %v831
    %833 = vmatprep.subr.mxu0 0.0
    %834 = vmatpush1.msra.mxu0 %v56
    %835 = vmatprep.subr.mxu0 0.0
    %836 = vmatpush1.msra.mxu0 %v57
    %837 = vmatprep.subr.mxu0 0.0
    %838 = vmatpush1.msra.mxu0 %v58
    %839 = vmatprep.subr.mxu0 0.0
    %840 = vmatpush1.msra.mxu0 %v59
    %841 = vmatprep.subr.mxu0 0.0
    %842 = vmatpush1.msra.mxu0 %v60
    %843 = vmatprep.subr.mxu0 0.0
    %844 = vmatpush1.msra.mxu0 %v61
    %845 = vmatprep.subr.mxu0 0.0
    %846 = vmatpush1.msra.mxu0 %v62
    %847 = vmatprep.subr.mxu0 0.0
    %848 = vmatpush1.msra.mxu0 %v63
    %849 = vmatprep.subr.mxu0 0.0
    %850 = vmatpush1.msra.mxu0 %v64
    %851 = vmatprep.subr.mxu0 0.0
    %852 = vmatpush1.msra.mxu0 %v65
    %853 = vmatprep.subr.mxu0 0.0
    %854 = vmatpush1.msra.mxu0 %v66
    %855 = vmatprep.subr.mxu0 0.0
    %856 = vmatpush1.msra.mxu0 %v67
    %857 = vmatprep.subr.mxu0 0.0
    %858 = vmatpush1.msra.mxu0 %v68
    %859 = vmatprep.subr.mxu0 0.0
    %860 = vmatpush1.msra.mxu0 %v69
    %861 = vmatprep.subr.mxu0 0.0
    %862 = vmatpush1.msra.mxu0 %v70
    %863 = vmatprep.subr.mxu0 0.0
    %864 = vmatpush1.msra.mxu0 %v71
    %865 = vmatprep.subr.mxu0 0.0
    %866 = vmatpush1.msra.mxu0 0.0
    %867 = vmatprep.subr.mxu0 0.0
    %868 = vmatpush1.msra.mxu0 0.0
    %869 = vmatprep.subr.mxu0 0.0
    %870 = vmatpush1.msra.mxu0 0.0
    %871 = vmatprep.subr.mxu0 0.0
    %872 = vmatpush1.msra.mxu0 0.0
    %873 = vmatprep.subr.mxu0 0.0
    %874 = vmatpush1.msra.mxu0 0.0
    %875 = vmatprep.subr.mxu0 0.0
    %876 = vmatpush1.msra.mxu0 0.0
    %877 = vmatprep.subr.mxu0 0.0
    %878 = vmatpush1.msra.mxu0 0.0
    %879 = vmatprep.subr.mxu0 0.0
    %880 = vmatpush1.msra.mxu0 0.0
    %881 = vmatprep.subr.mxu0 0.0
    %882 = vmatpush1.msra.mxu0 0.0
    %883 = vmatprep.subr.mxu0 0.0
    %884 = vmatpush1.msra.mxu0 0.0
    %885 = vmatprep.subr.mxu0 0.0
    %886 = vmatpush1.msra.mxu0 0.0
    %887 = vmatprep.subr.mxu0 0.0
    %888 = vmatpush1.msra.mxu0 0.0
    %889 = vmatprep.subr.mxu0 0.0
    %890 = vmatpush1.msra.mxu0 0.0
    %891 = vmatprep.subr.mxu0 0.0
    %892 = vmatpush1.msra.mxu0 0.0
    %893 = vmatprep.subr.mxu0 0.0
    %894 = vmatpush1.msra.mxu0 0.0
    %895 = vmatprep.subr.mxu0 0.0
    %896 = vmatpush1.msra.mxu0 0.0
    %897 = vmatprep.mubr.f32.mxu0 0.0
    %898 = vmatmul.mubr.f32.gmra.mrb[0].mxu0 %v832
    %v899 = vpop.f32.mrb[0].mxu0
    %v900 = vadd.f32 %v76, %v899
    %v901 = vpop.f32.mrb[0].mxu0
    %902 = vdwg.mxu0
    %v903 = vtanh.pop %v900
    %v904 = vstv %s684
    %v905 = vmul.f32 %v904, %v903
    %v906 = vadd.f32 %v683, %v905
    %907 = vmatprep.subr.mxu0 0.0
    %908 = vmatpush1.msra.mxu0 %v56
    %909 = vmatprep.subr.mxu0 0.0
    %910 = vmatpush1.msra.mxu0 %v57
    %911 = vmatprep.subr.mxu0 0.0
    %912 = vmatpush1.msra.mxu0 %v58
    %913 = vmatprep.subr.mxu0 0.0
    %914 = vmatpush1.msra.mxu0 %v59
    %915 = vmatprep.subr.mxu0 0.0
    %916 = vmatpush1.msra.mxu0 %v60
    %917 = vmatprep.subr.mxu0 0.0
    %918 = vmatpush1.msra.mxu0 %v61
    %919 = vmatprep.subr.mxu0 0.0
    %920 = vmatpush1.msra.mxu0 %v62
    %921 = vmatprep.subr.mxu0 0.0
    %922 = vmatpush1.msra.mxu0 %v63
    %923 = vmatprep.subr.mxu0 0.0
    %924 = vmatpush1.msra.mxu0 %v64
    %925 = vmatprep.subr.mxu0 0.0
    %926 = vmatpush1.msra.mxu0 %v65
    %927 = vmatprep.subr.mxu0 0.0
    %928 = vmatpush1.msra.mxu0 %v66
    %929 = vmatprep.subr.mxu0 0.0
    %930 = vmatpush1.msra.mxu0 %v67
    %931 = vmatprep.subr.mxu0 0.0
    %932 = vmatpush1.msra.mxu0 %v68
    %933 = vmatprep.subr.mxu0 0.0
    %934 = vmatpush1.msra.mxu0 %v69
    %935 = vmatprep.subr.mxu0 0.0
    %936 = vmatpush1.msra.mxu0 %v70
    %937 = vmatprep.subr.mxu0 0.0
    %938 = vmatpush1.msra.mxu0 %v71
    %939 = vmatprep.subr.mxu0 0.0
    %940 = vmatpush1.msra.mxu0 0.0
    %941 = vmatprep.subr.mxu0 0.0
    %942 = vmatpush1.msra.mxu0 0.0
    %943 = vmatprep.subr.mxu0 0.0
    %944 = vmatpush1.msra.mxu0 0.0
    %945 = vmatprep.subr.mxu0 0.0
    %946 = vmatpush1.msra.mxu0 0.0
    %947 = vmatprep.subr.mxu0 0.0
    %948 = vmatpush1.msra.mxu0 0.0
    %949 = vmatprep.subr.mxu0 0.0
    %950 = vmatpush1.msra.mxu0 0.0
    %951 = vmatprep.subr.mxu0 0.0
    %952 = vmatpush1.msra.mxu0 0.0
    %953 = vmatprep.subr.mxu0 0.0
    %954 = vmatpush1.msra.mxu0 0.0
    %955 = vmatprep.subr.mxu0 0.0
    %956 = vmatpush1.msra.mxu0 0.0
    %957 = vmatprep.subr.mxu0 0.0
    %958 = vmatpush1.msra.mxu0 0.0
    %959 = vmatprep.subr.mxu0 0.0
    %960 = vmatpush1.msra.mxu0 0.0
    %961 = vmatprep.subr.mxu0 0.0
    %962 = vmatpush1.msra.mxu0 0.0
    %963 = vmatprep.subr.mxu0 0.0
    %964 = vmatpush1.msra.mxu0 0.0
    %965 = vmatprep.subr.mxu0 0.0
    %966 = vmatpush1.msra.mxu0 0.0
    %967 = vmatprep.subr.mxu0 0.0
    %968 = vmatpush1.msra.mxu0 0.0
    %969 = vmatprep.subr.mxu0 0.0
    %970 = vmatpush1.msra.mxu0 0.0
    %971 = vmatprep.mubr.f32.mxu0 0.0
    %972 = vmatmul.mubr.f32.gmra.mrb[0].mxu0 %v906
    %v973 = vpop.f32.mrb[0].mxu0
    %v974 = vadd.f32 %v76, %v973
    %v975 = vpop.f32.mrb[0].mxu0
    %976 = vdwg.mxu0
    %v977 = vtanh.pop %v974
    %s978 = smul.f32 %s684, 0.16666667
    %v979 = vmul.f32 %v830, 2.0
    %v980 = vadd.f32 %v756, %v979
    %v981 = vmul.f32 %v903, 2.0
    %v982 = vadd.f32 %v980, %v981
    %v983 = vadd.f32 %v982, %v977
    %v984 = vstv %s978
    %v985 = vmul.f32 %v984, %v983
    %v986 = vadd.f32 %v683, %v985
    %s987 = sld [smem:[#allocation4 + $0x3]]
    %s988 = smul.f32 %s987, 0.5
    %989 = vmatprep.subr.mxu0 0.0
    %990 = vmatpush1.msra.mxu0 %v56
    %991 = vmatprep.subr.mxu0 0.0
    %992 = vmatpush1.msra.mxu0 %v57
    %993 = vmatprep.subr.mxu0 0.0
    %994 = vmatpush1.msra.mxu0 %v58
    %995 = vmatprep.subr.mxu0 0.0
    %996 = vmatpush1.msra.mxu0 %v59
    %997 = vmatprep.subr.mxu0 0.0
    %998 = vmatpush1.msra.mxu0 %v60
    %999 = vmatprep.subr.mxu0 0.0
    %1000 = vmatpush1.msra.mxu0 %v61
    %1001 = vmatprep.subr.mxu0 0.0
    %1002 = vmatpush1.msra.mxu0 %v62
    %1003 = vmatprep.subr.mxu0 0.0
    %1004 = vmatpush1.msra.mxu0 %v63
    %1005 = vmatprep.subr.mxu0 0.0
    %1006 = vmatpush1.msra.mxu0 %v64
    %1007 = vmatprep.subr.mxu0 0.0
    %1008 = vmatpush1.msra.mxu0 %v65
    %1009 = vmatprep.subr.mxu0 0.0
    %1010 = vmatpush1.msra.mxu0 %v66
    %1011 = vmatprep.subr.mxu0 0.0
    %1012 = vmatpush1.msra.mxu0 %v67
    %1013 = vmatprep.subr.mxu0 0.0
    %1014 = vmatpush1.msra.mxu0 %v68
    %1015 = vmatprep.subr.mxu0 0.0
    %1016 = vmatpush1.msra.mxu0 %v69
    %1017 = vmatprep.subr.mxu0 0.0
    %1018 = vmatpush1.msra.mxu0 %v70
    %1019 = vmatprep.subr.mxu0 0.0
    %1020 = vmatpush1.msra.mxu0 %v71
    %1021 = vmatprep.subr.mxu0 0.0
    %1022 = vmatpush1.msra.mxu0 0.0
    %1023 = vmatprep.subr.mxu0 0.0
    %1024 = vmatpush1.msra.mxu0 0.0
    %1025 = vmatprep.subr.mxu0 0.0
    %1026 = vmatpush1.msra.mxu0 0.0
    %1027 = vmatprep.subr.mxu0 0.0
    %1028 = vmatpush1.msra.mxu0 0.0
    %1029 = vmatprep.subr.mxu0 0.0
    %1030 = vmatpush1.msra.mxu0 0.0
    %1031 = vmatprep.subr.mxu0 0.0
    %1032 = vmatpush1.msra.mxu0 0.0
    %1033 = vmatprep.subr.mxu0 0.0
    %1034 = vmatpush1.msra.mxu0 0.0
    %1035 = vmatprep.subr.mxu0 0.0
    %1036 = vmatpush1.msra.mxu0 0.0
    %1037 = vmatprep.subr.mxu0 0.0
    %1038 = vmatpush1.msra.mxu0 0.0
    %1039 = vmatprep.subr.mxu0 0.0
    %1040 = vmatpush1.msra.mxu0 0.0
    %1041 = vmatprep.subr.mxu0 0.0
    %1042 = vmatpush1.msra.mxu0 0.0
    %1043 = vmatprep.subr.mxu0 0.0
    %1044 = vmatpush1.msra.mxu0 0.0
    %1045 = vmatprep.subr.mxu0 0.0
    %1046 = vmatpush1.msra.mxu0 0.0
    %1047 = vmatprep.subr.mxu0 0.0
    %1048 = vmatpush1.msra.mxu0 0.0
    %1049 = vmatprep.subr.mxu0 0.0
    %1050 = vmatpush1.msra.mxu0 0.0
    %1051 = vmatprep.subr.mxu0 0.0
    %1052 = vmatpush1.msra.mxu0 0.0
    %1053 = vmatprep.mubr.f32.mxu0 0.0
    %1054 = vmatmul.mubr.f32.gmra.mrb[0].mxu0 %v986
    %v1055 = vpop.f32.mrb[0].mxu0
    %v1056 = vadd.f32 %v76, %v1055
    %v1057 = vpop.f32.mrb[0].mxu0
    %1058 = vdwg.mxu0
    %v1059 = vtanh.pop %v1056
    %v1060 = vstv %s988
    %v1061 = vmul.f32 %v1060, %v1059
    %v1062 = vadd.f32 %v986, %v1061
    %1063 = vmatprep.subr.mxu0 0.0
    %1064 = vmatpush1.msra.mxu0 %v56
    %1065 = vmatprep.subr.mxu0 0.0
    %1066 = vmatpush1.msra.mxu0 %v57
    %1067 = vmatprep.subr.mxu0 0.0
    %1068 = vmatpush1.msra.mxu0 %v58
    %1069 = vmatprep.subr.mxu0 0.0
    %1070 = vmatpush1.msra.mxu0 %v59
    %1071 = vmatprep.subr.mxu0 0.0
    %1072 = vmatpush1.msra.mxu0 %v60
    %1073 = vmatprep.subr.mxu0 0.0
    %1074 = vmatpush1.msra.mxu0 %v61
    %1075 = vmatprep.subr.mxu0 0.0
    %1076 = vmatpush1.msra.mxu0 %v62
    %1077 = vmatprep.subr.mxu0 0.0
    %1078 = vmatpush1.msra.mxu0 %v63
    %1079 = vmatprep.subr.mxu0 0.0
    %1080 = vmatpush1.msra.mxu0 %v64
    %1081 = vmatprep.subr.mxu0 0.0
    %1082 = vmatpush1.msra.mxu0 %v65
    %1083 = vmatprep.subr.mxu0 0.0
    %1084 = vmatpush1.msra.mxu0 %v66
    %1085 = vmatprep.subr.mxu0 0.0
    %1086 = vmatpush1.msra.mxu0 %v67
    %1087 = vmatprep.subr.mxu0 0.0
    %1088 = vmatpush1.msra.mxu0 %v68
    %1089 = vmatprep.subr.mxu0 0.0
    %1090 = vmatpush1.msra.mxu0 %v69
    %1091 = vmatprep.subr.mxu0 0.0
    %1092 = vmatpush1.msra.mxu0 %v70
    %1093 = vmatprep.subr.mxu0 0.0
    %1094 = vmatpush1.msra.mxu0 %v71
    %1095 = vmatprep.subr.mxu0 0.0
    %1096 = vmatpush1.msra.mxu0 0.0
    %1097 = vmatprep.subr.mxu0 0.0
    %1098 = vmatpush1.msra.mxu0 0.0
    %1099 = vmatprep.subr.mxu0 0.0
    %1100 = vmatpush1.msra.mxu0 0.0
    %1101 = vmatprep.subr.mxu0 0.0
    %1102 = vmatpush1.msra.mxu0 0.0
    %1103 = vmatprep.subr.mxu0 0.0
    %1104 = vmatpush1.msra.mxu0 0.0
    %1105 = vmatprep.subr.mxu0 0.0
    %1106 = vmatpush1.msra.mxu0 0.0
    %1107 = vmatprep.subr.mxu0 0.0
    %1108 = vmatpush1.msra.mxu0 0.0
    %1109 = vmatprep.subr.mxu0 0.0
    %1110 = vmatpush1.msra.mxu0 0.0
    %1111 = vmatprep.subr.mxu0 0.0
    %1112 = vmatpush1.msra.mxu0 0.0
    %1113 = vmatprep.subr.mxu0 0.0
    %1114 = vmatpush1.msra.mxu0 0.0
    %1115 = vmatprep.subr.mxu0 0.0
    %1116 = vmatpush1.msra.mxu0 0.0
    %1117 = vmatprep.subr.mxu0 0.0
    %1118 = vmatpush1.msra.mxu0 0.0
    %1119 = vmatprep.subr.mxu0 0.0
    %1120 = vmatpush1.msra.mxu0 0.0
    %1121 = vmatprep.subr.mxu0 0.0
    %1122 = vmatpush1.msra.mxu0 0.0
    %1123 = vmatprep.subr.mxu0 0.0
    %1124 = vmatpush1.msra.mxu0 0.0
    %1125 = vmatprep.subr.mxu0 0.0
    %1126 = vmatpush1.msra.mxu0 0.0
    %1127 = vmatprep.mubr.f32.mxu0 0.0
    %1128 = vmatmul.mubr.f32.gmra.mrb[0].mxu0 %v1062
    %v1129 = vpop.f32.mrb[0].mxu0
    %v1130 = vadd.f32 %v76, %v1129
    %v1131 = vpop.f32.mrb[0].mxu0
    %1132 = vdwg.mxu0
    %v1133 = vtanh.pop %v1130
    %v1134 = vmul.f32 %v1060, %v1133
    %v1135 = vadd.f32 %v986, %v1134
    %1136 = vmatprep.subr.mxu0 0.0
    %1137 = vmatpush1.msra.mxu0 %v56
    %1138 = vmatprep.subr.mxu0 0.0
    %1139 = vmatpush1.msra.mxu0 %v57
    %1140 = vmatprep.subr.mxu0 0.0
    %1141 = vmatpush1.msra.mxu0 %v58
    %1142 = vmatprep.subr.mxu0 0.0
    %1143 = vmatpush1.msra.mxu0 %v59
    %1144 = vmatprep.subr.mxu0 0.0
    %1145 = vmatpush1.msra.mxu0 %v60
    %1146 = vmatprep.subr.mxu0 0.0
    %1147 = vmatpush1.msra.mxu0 %v61
    %1148 = vmatprep.subr.mxu0 0.0
    %1149 = vmatpush1.msra.mxu0 %v62
    %1150 = vmatprep.subr.mxu0 0.0
    %1151 = vmatpush1.msra.mxu0 %v63
    %1152 = vmatprep.subr.mxu0 0.0
    %1153 = vmatpush1.msra.mxu0 %v64
    %1154 = vmatprep.subr.mxu0 0.0
    %1155 = vmatpush1.msra.mxu0 %v65
    %1156 = vmatprep.subr.mxu0 0.0
    %1157 = vmatpush1.msra.mxu0 %v66
    %1158 = vmatprep.subr.mxu0 0.0
    %1159 = vmatpush1.msra.mxu0 %v67
    %1160 = vmatprep.subr.mxu0 0.0
    %1161 = vmatpush1.msra.mxu0 %v68
    %1162 = vmatprep.subr.mxu0 0.0
    %1163 = vmatpush1.msra.mxu0 %v69
    %1164 = vmatprep.subr.mxu0 0.0
    %1165 = vmatpush1.msra.mxu0 %v70
    %1166 = vmatprep.subr.mxu0 0.0
    %1167 = vmatpush1.msra.mxu0 %v71
    %1168 = vmatprep.subr.mxu0 0.0
    %1169 = vmatpush1.msra.mxu0 0.0
    %1170 = vmatprep.subr.mxu0 0.0
    %1171 = vmatpush1.msra.mxu0 0.0
    %1172 = vmatprep.subr.mxu0 0.0
    %1173 = vmatpush1.msra.mxu0 0.0
    %1174 = vmatprep.subr.mxu0 0.0
    %1175 = vmatpush1.msra.mxu0 0.0
    %1176 = vmatprep.subr.mxu0 0.0
    %1177 = vmatpush1.msra.mxu0 0.0
    %1178 = vmatprep.subr.mxu0 0.0
    %1179 = vmatpush1.msra.mxu0 0.0
    %1180 = vmatprep.subr.mxu0 0.0
    %1181 = vmatpush1.msra.mxu0 0.0
    %1182 = vmatprep.subr.mxu0 0.0
    %1183 = vmatpush1.msra.mxu0 0.0
    %1184 = vmatprep.subr.mxu0 0.0
    %1185 = vmatpush1.msra.mxu0 0.0
    %1186 = vmatprep.subr.mxu0 0.0
    %1187 = vmatpush1.msra.mxu0 0.0
    %1188 = vmatprep.subr.mxu0 0.0
    %1189 = vmatpush1.msra.mxu0 0.0
    %1190 = vmatprep.subr.mxu0 0.0
    %1191 = vmatpush1.msra.mxu0 0.0
    %1192 = vmatprep.subr.mxu0 0.0
    %1193 = vmatpush1.msra.mxu0 0.0
    %1194 = vmatprep.subr.mxu0 0.0
    %1195 = vmatpush1.msra.mxu0 0.0
    %1196 = vmatprep.subr.mxu0 0.0
    %1197 = vmatpush1.msra.mxu0 0.0
    %1198 = vmatprep.subr.mxu0 0.0
    %1199 = vmatpush1.msra.mxu0 0.0
    %1200 = vmatprep.mubr.f32.mxu0 0.0
    %1201 = vmatmul.mubr.f32.gmra.mrb[0].mxu0 %v1135
    %v1202 = vpop.f32.mrb[0].mxu0
    %v1203 = vadd.f32 %v76, %v1202
    %v1204 = vpop.f32.mrb[0].mxu0
    %1205 = vdwg.mxu0
    %v1206 = vtanh.pop %v1203
    %v1207 = vstv %s987
    %v1208 = vmul.f32 %v1207, %v1206
    %v1209 = vadd.f32 %v986, %v1208
    %1210 = vmatprep.subr.mxu0 0.0
    %1211 = vmatpush1.msra.mxu0 %v56
    %1212 = vmatprep.subr.mxu0 0.0
    %1213 = vmatpush1.msra.mxu0 %v57
    %1214 = vmatprep.subr.mxu0 0.0
    %1215 = vmatpush1.msra.mxu0 %v58
    %1216 = vmatprep.subr.mxu0 0.0
    %1217 = vmatpush1.msra.mxu0 %v59
    %1218 = vmatprep.subr.mxu0 0.0
    %1219 = vmatpush1.msra.mxu0 %v60
    %1220 = vmatprep.subr.mxu0 0.0
    %1221 = vmatpush1.msra.mxu0 %v61
    %1222 = vmatprep.subr.mxu0 0.0
    %1223 = vmatpush1.msra.mxu0 %v62
    %1224 = vmatprep.subr.mxu0 0.0
    %1225 = vmatpush1.msra.mxu0 %v63
    %1226 = vmatprep.subr.mxu0 0.0
    %1227 = vmatpush1.msra.mxu0 %v64
    %1228 = vmatprep.subr.mxu0 0.0
    %1229 = vmatpush1.msra.mxu0 %v65
    %1230 = vmatprep.subr.mxu0 0.0
    %1231 = vmatpush1.msra.mxu0 %v66
    %1232 = vmatprep.subr.mxu0 0.0
    %1233 = vmatpush1.msra.mxu0 %v67
    %1234 = vmatprep.subr.mxu0 0.0
    %1235 = vmatpush1.msra.mxu0 %v68
    %1236 = vmatprep.subr.mxu0 0.0
    %1237 = vmatpush1.msra.mxu0 %v69
    %1238 = vmatprep.subr.mxu0 0.0
    %1239 = vmatpush1.msra.mxu0 %v70
    %1240 = vmatprep.subr.mxu0 0.0
    %1241 = vmatpush1.msra.mxu0 %v71
    %1242 = vmatprep.subr.mxu0 0.0
    %1243 = vmatpush1.msra.mxu0 0.0
    %1244 = vmatprep.subr.mxu0 0.0
    %1245 = vmatpush1.msra.mxu0 0.0
    %1246 = vmatprep.subr.mxu0 0.0
    %1247 = vmatpush1.msra.mxu0 0.0
    %1248 = vmatprep.subr.mxu0 0.0
    %1249 = vmatpush1.msra.mxu0 0.0
    %1250 = vmatprep.subr.mxu0 0.0
    %1251 = vmatpush1.msra.mxu0 0.0
    %1252 = vmatprep.subr.mxu0 0.0
    %1253 = vmatpush1.msra.mxu0 0.0
    %1254 = vmatprep.subr.mxu0 0.0
    %1255 = vmatpush1.msra.mxu0 0.0
    %1256 = vmatprep.subr.mxu0 0.0
    %1257 = vmatpush1.msra.mxu0 0.0
    %1258 = vmatprep.subr.mxu0 0.0
    %1259 = vmatpush1.msra.mxu0 0.0
    %1260 = vmatprep.subr.mxu0 0.0
    %1261 = vmatpush1.msra.mxu0 0.0
    %1262 = vmatprep.subr.mxu0 0.0
    %1263 = vmatpush1.msra.mxu0 0.0
    %1264 = vmatprep.subr.mxu0 0.0
    %1265 = vmatpush1.msra.mxu0 0.0
    %1266 = vmatprep.subr.mxu0 0.0
    %1267 = vmatpush1.msra.mxu0 0.0
    %1268 = vmatprep.subr.mxu0 0.0
    %1269 = vmatpush1.msra.mxu0 0.0
    %1270 = vmatprep.subr.mxu0 0.0
    %1271 = vmatpush1.msra.mxu0 0.0
    %1272 = vmatprep.subr.mxu0 0.0
    %1273 = vmatpush1.msra.mxu0 0.0
    %1274 = vmatprep.mubr.f32.mxu0 0.0
    %1275 = vmatmul.mubr.f32.gmra.mrb[0].mxu0 %v1209
    %v1276 = vpop.f32.mrb[0].mxu0
    %v1277 = vadd.f32 %v76, %v1276
    %v1278 = vpop.f32.mrb[0].mxu0
    %1279 = vdwg.mxu0
    %v1280 = vtanh.pop %v1277
    %s1281 = smul.f32 %s987, 0.16666667
    %v1282 = vmul.f32 %v1133, 2.0
    %v1283 = vadd.f32 %v1059, %v1282
    %v1284 = vmul.f32 %v1206, 2.0
    %v1285 = vadd.f32 %v1283, %v1284
    %v1286 = vadd.f32 %v1285, %v1280
    %v1287 = vstv %s1281
    %v1288 = vmul.f32 %v1287, %v1286
    %v1289 = vadd.f32 %v986, %v1288
    %s1290 = sld [smem:[#allocation4 + $0x4]]
    %s1291 = smul.f32 %s1290, 0.5
    %1292 = vmatprep.subr.mxu0 0.0
    %1293 = vmatpush1.msra.mxu0 %v56
    %1294 = vmatprep.subr.mxu0 0.0
    %1295 = vmatpush1.msra.mxu0 %v57
    %1296 = vmatprep.subr.mxu0 0.0
    %1297 = vmatpush1.msra.mxu0 %v58
    %1298 = vmatprep.subr.mxu0 0.0
    %1299 = vmatpush1.msra.mxu0 %v59
    %1300 = vmatprep.subr.mxu0 0.0
    %1301 = vmatpush1.msra.mxu0 %v60
    %1302 = vmatprep.subr.mxu0 0.0
    %1303 = vmatpush1.msra.mxu0 %v61
    %1304 = vmatprep.subr.mxu0 0.0
    %1305 = vmatpush1.msra.mxu0 %v62
    %1306 = vmatprep.subr.mxu0 0.0
    %1307 = vmatpush1.msra.mxu0 %v63
    %1308 = vmatprep.subr.mxu0 0.0
    %1309 = vmatpush1.msra.mxu0 %v64
    %1310 = vmatprep.subr.mxu0 0.0
    %1311 = vmatpush1.msra.mxu0 %v65
    %1312 = vmatprep.subr.mxu0 0.0
    %1313 = vmatpush1.msra.mxu0 %v66
    %1314 = vmatprep.subr.mxu0 0.0
    %1315 = vmatpush1.msra.mxu0 %v67
    %1316 = vmatprep.subr.mxu0 0.0
    %1317 = vmatpush1.msra.mxu0 %v68
    %1318 = vmatprep.subr.mxu0 0.0
    %1319 = vmatpush1.msra.mxu0 %v69
    %1320 = vmatprep.subr.mxu0 0.0
    %1321 = vmatpush1.msra.mxu0 %v70
    %1322 = vmatprep.subr.mxu0 0.0
    %1323 = vmatpush1.msra.mxu0 %v71
    %1324 = vmatprep.subr.mxu0 0.0
    %1325 = vmatpush1.msra.mxu0 0.0
    %1326 = vmatprep.subr.mxu0 0.0
    %1327 = vmatpush1.msra.mxu0 0.0
    %1328 = vmatprep.subr.mxu0 0.0
    %1329 = vmatpush1.msra.mxu0 0.0
    %1330 = vmatprep.subr.mxu0 0.0
    %1331 = vmatpush1.msra.mxu0 0.0
    %1332 = vmatprep.subr.mxu0 0.0
    %1333 = vmatpush1.msra.mxu0 0.0
    %1334 = vmatprep.subr.mxu0 0.0
    %1335 = vmatpush1.msra.mxu0 0.0
    %1336 = vmatprep.subr.mxu0 0.0
    %1337 = vmatpush1.msra.mxu0 0.0
    %1338 = vmatprep.subr.mxu0 0.0
    %1339 = vmatpush1.msra.mxu0 0.0
    %1340 = vmatprep.subr.mxu0 0.0
    %1341 = vmatpush1.msra.mxu0 0.0
    %1342 = vmatprep.subr.mxu0 0.0
    %1343 = vmatpush1.msra.mxu0 0.0
    %1344 = vmatprep.subr.mxu0 0.0
    %1345 = vmatpush1.msra.mxu0 0.0
    %1346 = vmatprep.subr.mxu0 0.0
    %1347 = vmatpush1.msra.mxu0 0.0
    %1348 = vmatprep.subr.mxu0 0.0
    %1349 = vmatpush1.msra.mxu0 0.0
    %1350 = vmatprep.subr.mxu0 0.0
    %1351 = vmatpush1.msra.mxu0 0.0
    %1352 = vmatprep.subr.mxu0 0.0
    %1353 = vmatpush1.msra.mxu0 0.0
    %1354 = vmatprep.subr.mxu0 0.0
    %1355 = vmatpush1.msra.mxu0 0.0
    %1356 = vmatprep.mubr.f32.mxu0 0.0
    %1357 = vmatmul.mubr.f32.gmra.mrb[0].mxu0 %v1289
    %v1358 = vpop.f32.mrb[0].mxu0
    %v1359 = vadd.f32 %v76, %v1358
    %v1360 = vpop.f32.mrb[0].mxu0
    %1361 = vdwg.mxu0
    %v1362 = vtanh.pop %v1359
    %v1363 = vstv %s1291
    %v1364 = vmul.f32 %v1363, %v1362
    %v1365 = vadd.f32 %v1289, %v1364
    %1366 = vmatprep.subr.mxu0 0.0
    %1367 = vmatpush1.msra.mxu0 %v56
    %1368 = vmatprep.subr.mxu0 0.0
    %1369 = vmatpush1.msra.mxu0 %v57
    %1370 = vmatprep.subr.mxu0 0.0
    %1371 = vmatpush1.msra.mxu0 %v58
    %1372 = vmatprep.subr.mxu0 0.0
    %1373 = vmatpush1.msra.mxu0 %v59
    %1374 = vmatprep.subr.mxu0 0.0
    %1375 = vmatpush1.msra.mxu0 %v60
    %1376 = vmatprep.subr.mxu0 0.0
    %1377 = vmatpush1.msra.mxu0 %v61
    %1378 = vmatprep.subr.mxu0 0.0
    %1379 = vmatpush1.msra.mxu0 %v62
    %1380 = vmatprep.subr.mxu0 0.0
    %1381 = vmatpush1.msra.mxu0 %v63
    %1382 = vmatprep.subr.mxu0 0.0
    %1383 = vmatpush1.msra.mxu0 %v64
    %1384 = vmatprep.subr.mxu0 0.0
    %1385 = vmatpush1.msra.mxu0 %v65
    %1386 = vmatprep.subr.mxu0 0.0
    %1387 = vmatpush1.msra.mxu0 %v66
    %1388 = vmatprep.subr.mxu0 0.0
    %1389 = vmatpush1.msra.mxu0 %v67
    %1390 = vmatprep.subr.mxu0 0.0
    %1391 = vmatpush1.msra.mxu0 %v68
    %1392 = vmatprep.subr.mxu0 0.0
    %1393 = vmatpush1.msra.mxu0 %v69
    %1394 = vmatprep.subr.mxu0 0.0
    %1395 = vmatpush1.msra.mxu0 %v70
    %1396 = vmatprep.subr.mxu0 0.0
    %1397 = vmatpush1.msra.mxu0 %v71
    %1398 = vmatprep.subr.mxu0 0.0
    %1399 = vmatpush1.msra.mxu0 0.0
    %1400 = vmatprep.subr.mxu0 0.0
    %1401 = vmatpush1.msra.mxu0 0.0
    %1402 = vmatprep.subr.mxu0 0.0
    %1403 = vmatpush1.msra.mxu0 0.0
    %1404 = vmatprep.subr.mxu0 0.0
    %1405 = vmatpush1.msra.mxu0 0.0
    %1406 = vmatprep.subr.mxu0 0.0
    %1407 = vmatpush1.msra.mxu0 0.0
    %1408 = vmatprep.subr.mxu0 0.0
    %1409 = vmatpush1.msra.mxu0 0.0
    %1410 = vmatprep.subr.mxu0 0.0
    %1411 = vmatpush1.msra.mxu0 0.0
    %1412 = vmatprep.subr.mxu0 0.0
    %1413 = vmatpush1.msra.mxu0 0.0
    %1414 = vmatprep.subr.mxu0 0.0
    %1415 = vmatpush1.msra.mxu0 0.0
    %1416 = vmatprep.subr.mxu0 0.0
    %1417 = vmatpush1.msra.mxu0 0.0
    %1418 = vmatprep.subr.mxu0 0.0
    %1419 = vmatpush1.msra.mxu0 0.0
    %1420 = vmatprep.subr.mxu0 0.0
    %1421 = vmatpush1.msra.mxu0 0.0
    %1422 = vmatprep.subr.mxu0 0.0
    %1423 = vmatpush1.msra.mxu0 0.0
    %1424 = vmatprep.subr.mxu0 0.0
    %1425 = vmatpush1.msra.mxu0 0.0
    %1426 = vmatprep.subr.mxu0 0.0
    %1427 = vmatpush1.msra.mxu0 0.0
    %1428 = vmatprep.subr.mxu0 0.0
    %1429 = vmatpush1.msra.mxu0 0.0
    %1430 = vmatprep.mubr.f32.mxu0 0.0
    %1431 = vmatmul.mubr.f32.gmra.mrb[0].mxu0 %v1365
    %v1432 = vpop.f32.mrb[0].mxu0
    %v1433 = vadd.f32 %v76, %v1432
    %v1434 = vpop.f32.mrb[0].mxu0
    %1435 = vdwg.mxu0
    %v1436 = vtanh.pop %v1433
    %v1437 = vmul.f32 %v1363, %v1436
    %v1438 = vadd.f32 %v1289, %v1437
    %1439 = vmatprep.subr.mxu0 0.0
    %1440 = vmatpush1.msra.mxu0 %v56
    %1441 = vmatprep.subr.mxu0 0.0
    %1442 = vmatpush1.msra.mxu0 %v57
    %1443 = vmatprep.subr.mxu0 0.0
    %1444 = vmatpush1.msra.mxu0 %v58
    %1445 = vmatprep.subr.mxu0 0.0
    %1446 = vmatpush1.msra.mxu0 %v59
    %1447 = vmatprep.subr.mxu0 0.0
    %1448 = vmatpush1.msra.mxu0 %v60
    %1449 = vmatprep.subr.mxu0 0.0
    %1450 = vmatpush1.msra.mxu0 %v61
    %1451 = vmatprep.subr.mxu0 0.0
    %1452 = vmatpush1.msra.mxu0 %v62
    %1453 = vmatprep.subr.mxu0 0.0
    %1454 = vmatpush1.msra.mxu0 %v63
    %1455 = vmatprep.subr.mxu0 0.0
    %1456 = vmatpush1.msra.mxu0 %v64
    %1457 = vmatprep.subr.mxu0 0.0
    %1458 = vmatpush1.msra.mxu0 %v65
    %1459 = vmatprep.subr.mxu0 0.0
    %1460 = vmatpush1.msra.mxu0 %v66
    %1461 = vmatprep.subr.mxu0 0.0
    %1462 = vmatpush1.msra.mxu0 %v67
    %1463 = vmatprep.subr.mxu0 0.0
    %1464 = vmatpush1.msra.mxu0 %v68
    %1465 = vmatprep.subr.mxu0 0.0
    %1466 = vmatpush1.msra.mxu0 %v69
    %1467 = vmatprep.subr.mxu0 0.0
    %1468 = vmatpush1.msra.mxu0 %v70
    %1469 = vmatprep.subr.mxu0 0.0
    %1470 = vmatpush1.msra.mxu0 %v71
    %1471 = vmatprep.subr.mxu0 0.0
    %1472 = vmatpush1.msra.mxu0 0.0
    %1473 = vmatprep.subr.mxu0 0.0
    %1474 = vmatpush1.msra.mxu0 0.0
    %1475 = vmatprep.subr.mxu0 0.0
    %1476 = vmatpush1.msra.mxu0 0.0
    %1477 = vmatprep.subr.mxu0 0.0
    %1478 = vmatpush1.msra.mxu0 0.0
    %1479 = vmatprep.subr.mxu0 0.0
    %1480 = vmatpush1.msra.mxu0 0.0
    %1481 = vmatprep.subr.mxu0 0.0
    %1482 = vmatpush1.msra.mxu0 0.0
    %1483 = vmatprep.subr.mxu0 0.0
    %1484 = vmatpush1.msra.mxu0 0.0
    %1485 = vmatprep.subr.mxu0 0.0
    %1486 = vmatpush1.msra.mxu0 0.0
    %1487 = vmatprep.subr.mxu0 0.0
    %1488 = vmatpush1.msra.mxu0 0.0
    %1489 = vmatprep.subr.mxu0 0.0
    %1490 = vmatpush1.msra.mxu0 0.0
    %1491 = vmatprep.subr.mxu0 0.0
    %1492 = vmatpush1.msra.mxu0 0.0
    %1493 = vmatprep.subr.mxu0 0.0
    %1494 = vmatpush1.msra.mxu0 0.0
    %1495 = vmatprep.subr.mxu0 0.0
    %1496 = vmatpush1.msra.mxu0 0.0
    %1497 = vmatprep.subr.mxu0 0.0
    %1498 = vmatpush1.msra.mxu0 0.0
    %1499 = vmatprep.subr.mxu0 0.0
    %1500 = vmatpush1.msra.mxu0 0.0
    %1501 = vmatprep.subr.mxu0 0.0
    %1502 = vmatpush1.msra.mxu0 0.0
    %1503 = vmatprep.mubr.f32.mxu0 0.0
    %1504 = vmatmul.mubr.f32.gmra.mrb[0].mxu0 %v1438
    %v1505 = vpop.f32.mrb[0].mxu0
    %v1506 = vadd.f32 %v76, %v1505
    %v1507 = vpop.f32.mrb[0].mxu0
    %1508 = vdwg.mxu0
    %v1509 = vtanh.pop %v1506
    %v1510 = vstv %s1290
    %v1511 = vmul.f32 %v1510, %v1509
    %v1512 = vadd.f32 %v1289, %v1511
    %1513 = vmatprep.subr.mxu0 0.0
    %1514 = vmatpush1.msra.mxu0 %v56
    %1515 = vmatprep.subr.mxu0 0.0
    %1516 = vmatpush1.msra.mxu0 %v57
    %1517 = vmatprep.subr.mxu0 0.0
    %1518 = vmatpush1.msra.mxu0 %v58
    %1519 = vmatprep.subr.mxu0 0.0
    %1520 = vmatpush1.msra.mxu0 %v59
    %1521 = vmatprep.subr.mxu0 0.0
    %1522 = vmatpush1.msra.mxu0 %v60
    %1523 = vmatprep.subr.mxu0 0.0
    %1524 = vmatpush1.msra.mxu0 %v61
    %1525 = vmatprep.subr.mxu0 0.0
    %1526 = vmatpush1.msra.mxu0 %v62
    %1527 = vmatprep.subr.mxu0 0.0
    %1528 = vmatpush1.msra.mxu0 %v63
    %1529 = vmatprep.subr.mxu0 0.0
    %1530 = vmatpush1.msra.mxu0 %v64
    %1531 = vmatprep.subr.mxu0 0.0
    %1532 = vmatpush1.msra.mxu0 %v65
    %1533 = vmatprep.subr.mxu0 0.0
    %1534 = vmatpush1.msra.mxu0 %v66
    %1535 = vmatprep.subr.mxu0 0.0
    %1536 = vmatpush1.msra.mxu0 %v67
    %1537 = vmatprep.subr.mxu0 0.0
    %1538 = vmatpush1.msra.mxu0 %v68
    %1539 = vmatprep.subr.mxu0 0.0
    %1540 = vmatpush1.msra.mxu0 %v69
    %1541 = vmatprep.subr.mxu0 0.0
    %1542 = vmatpush1.msra.mxu0 %v70
    %1543 = vmatprep.subr.mxu0 0.0
    %1544 = vmatpush1.msra.mxu0 %v71
    %1545 = vmatprep.subr.mxu0 0.0
    %1546 = vmatpush1.msra.mxu0 0.0
    %1547 = vmatprep.subr.mxu0 0.0
    %1548 = vmatpush1.msra.mxu0 0.0
    %1549 = vmatprep.subr.mxu0 0.0
    %1550 = vmatpush1.msra.mxu0 0.0
    %1551 = vmatprep.subr.mxu0 0.0
    %1552 = vmatpush1.msra.mxu0 0.0
    %1553 = vmatprep.subr.mxu0 0.0
    %1554 = vmatpush1.msra.mxu0 0.0
    %1555 = vmatprep.subr.mxu0 0.0
    %1556 = vmatpush1.msra.mxu0 0.0
    %1557 = vmatprep.subr.mxu0 0.0
    %1558 = vmatpush1.msra.mxu0 0.0
    %1559 = vmatprep.subr.mxu0 0.0
    %1560 = vmatpush1.msra.mxu0 0.0
    %1561 = vmatprep.subr.mxu0 0.0
    %1562 = vmatpush1.msra.mxu0 0.0
    %1563 = vmatprep.subr.mxu0 0.0
    %1564 = vmatpush1.msra.mxu0 0.0
    %1565 = vmatprep.subr.mxu0 0.0
    %1566 = vmatpush1.msra.mxu0 0.0
    %1567 = vmatprep.subr.mxu0 0.0
    %1568 = vmatpush1.msra.mxu0 0.0
    %1569 = vmatprep.subr.mxu0 0.0
    %1570 = vmatpush1.msra.mxu0 0.0
    %1571 = vmatprep.subr.mxu0 0.0
    %1572 = vmatpush1.msra.mxu0 0.0
    %1573 = vmatprep.subr.mxu0 0.0
    %1574 = vmatpush1.msra.mxu0 0.0
    %1575 = vmatprep.subr.mxu0 0.0
    %1576 = vmatpush1.msra.mxu0 0.0
    %1577 = vmatprep.mubr.f32.mxu0 0.0
    %1578 = vmatmul.mubr.f32.gmra.mrb[0].mxu0 %v1512
    %v1579 = vpop.f32.mrb[0].mxu0
    %v1580 = vadd.f32 %v76, %v1579
    %v1581 = vpop.f32.mrb[0].mxu0
    %1582 = vdwg.mxu0
    %v1583 = vtanh.pop %v1580
    %s1584 = smul.f32 %s1290, 0.16666667
    %v1585 = vmul.f32 %v1436, 2.0
    %v1586 = vadd.f32 %v1362, %v1585
    %v1587 = vmul.f32 %v1509, 2.0
    %v1588 = vadd.f32 %v1586, %v1587
    %v1589 = vadd.f32 %v1588, %v1583
    %v1590 = vstv %s1584
    %v1591 = vmul.f32 %v1590, %v1589
    %v1592 = vadd.f32 %v1289, %v1591
    %s1593 = sld [smem:[#allocation4 + $0x5]]
    %s1594 = smul.f32 %s1593, 0.5
    %1595 = vmatprep.subr.mxu0 0.0
    %1596 = vmatpush1.msra.mxu0 %v56
    %1597 = vmatprep.subr.mxu0 0.0
    %1598 = vmatpush1.msra.mxu0 %v57
    %1599 = vmatprep.subr.mxu0 0.0
    %1600 = vmatpush1.msra.mxu0 %v58
    %1601 = vmatprep.subr.mxu0 0.0
    %1602 = vmatpush1.msra.mxu0 %v59
    %1603 = vmatprep.subr.mxu0 0.0
    %1604 = vmatpush1.msra.mxu0 %v60
    %1605 = vmatprep.subr.mxu0 0.0
    %1606 = vmatpush1.msra.mxu0 %v61
    %1607 = vmatprep.subr.mxu0 0.0
    %1608 = vmatpush1.msra.mxu0 %v62
    %1609 = vmatprep.subr.mxu0 0.0
    %1610 = vmatpush1.msra.mxu0 %v63
    %1611 = vmatprep.subr.mxu0 0.0
    %1612 = vmatpush1.msra.mxu0 %v64
    %1613 = vmatprep.subr.mxu0 0.0
    %1614 = vmatpush1.msra.mxu0 %v65
    %1615 = vmatprep.subr.mxu0 0.0
    %1616 = vmatpush1.msra.mxu0 %v66
    %1617 = vmatprep.subr.mxu0 0.0
    %1618 = vmatpush1.msra.mxu0 %v67
    %1619 = vmatprep.subr.mxu0 0.0
    %1620 = vmatpush1.msra.mxu0 %v68
    %1621 = vmatprep.subr.mxu0 0.0
    %1622 = vmatpush1.msra.mxu0 %v69
    %1623 = vmatprep.subr.mxu0 0.0
    %1624 = vmatpush1.msra.mxu0 %v70
    %1625 = vmatprep.subr.mxu0 0.0
    %1626 = vmatpush1.msra.mxu0 %v71
    %1627 = vmatprep.subr.mxu0 0.0
    %1628 = vmatpush1.msra.mxu0 0.0
    %1629 = vmatprep.subr.mxu0 0.0
    %1630 = vmatpush1.msra.mxu0 0.0
    %1631 = vmatprep.subr.mxu0 0.0
    %1632 = vmatpush1.msra.mxu0 0.0
    %1633 = vmatprep.subr.mxu0 0.0
    %1634 = vmatpush1.msra.mxu0 0.0
    %1635 = vmatprep.subr.mxu0 0.0
    %1636 = vmatpush1.msra.mxu0 0.0
    %1637 = vmatprep.subr.mxu0 0.0
    %1638 = vmatpush1.msra.mxu0 0.0
    %1639 = vmatprep.subr.mxu0 0.0
    %1640 = vmatpush1.msra.mxu0 0.0
    %1641 = vmatprep.subr.mxu0 0.0
    %1642 = vmatpush1.msra.mxu0 0.0
    %1643 = vmatprep.subr.mxu0 0.0
    %1644 = vmatpush1.msra.mxu0 0.0
    %1645 = vmatprep.subr.mxu0 0.0
    %1646 = vmatpush1.msra.mxu0 0.0
    %1647 = vmatprep.subr.mxu0 0.0
    %1648 = vmatpush1.msra.mxu0 0.0
    %1649 = vmatprep.subr.mxu0 0.0
    %1650 = vmatpush1.msra.mxu0 0.0
    %1651 = vmatprep.subr.mxu0 0.0
    %1652 = vmatpush1.msra.mxu0 0.0
    %1653 = vmatprep.subr.mxu0 0.0
    %1654 = vmatpush1.msra.mxu0 0.0
    %1655 = vmatprep.subr.mxu0 0.0
    %1656 = vmatpush1.msra.mxu0 0.0
    %1657 = vmatprep.subr.mxu0 0.0
    %1658 = vmatpush1.msra.mxu0 0.0
    %1659 = vmatprep.mubr.f32.mxu0 0.0
    %1660 = vmatmul.mubr.f32.gmra.mrb[0].mxu0 %v1592
    %v1661 = vpop.f32.mrb[0].mxu0
    %v1662 = vadd.f32 %v76, %v1661
    %v1663 = vpop.f32.mrb[0].mxu0
    %1664 = vdwg.mxu0
    %v1665 = vtanh.pop %v1662
    %v1666 = vstv %s1594
    %v1667 = vmul.f32 %v1666, %v1665
    %v1668 = vadd.f32 %v1592, %v1667
    %1669 = vmatprep.subr.mxu0 0.0
    %1670 = vmatpush1.msra.mxu0 %v56
    %1671 = vmatprep.subr.mxu0 0.0
    %1672 = vmatpush1.msra.mxu0 %v57
    %1673 = vmatprep.subr.mxu0 0.0
    %1674 = vmatpush1.msra.mxu0 %v58
    %1675 = vmatprep.subr.mxu0 0.0
    %1676 = vmatpush1.msra.mxu0 %v59
    %1677 = vmatprep.subr.mxu0 0.0
    %1678 = vmatpush1.msra.mxu0 %v60
    %1679 = vmatprep.subr.mxu0 0.0
    %1680 = vmatpush1.msra.mxu0 %v61
    %1681 = vmatprep.subr.mxu0 0.0
    %1682 = vmatpush1.msra.mxu0 %v62
    %1683 = vmatprep.subr.mxu0 0.0
    %1684 = vmatpush1.msra.mxu0 %v63
    %1685 = vmatprep.subr.mxu0 0.0
    %1686 = vmatpush1.msra.mxu0 %v64
    %1687 = vmatprep.subr.mxu0 0.0
    %1688 = vmatpush1.msra.mxu0 %v65
    %1689 = vmatprep.subr.mxu0 0.0
    %1690 = vmatpush1.msra.mxu0 %v66
    %1691 = vmatprep.subr.mxu0 0.0
    %1692 = vmatpush1.msra.mxu0 %v67
    %1693 = vmatprep.subr.mxu0 0.0
    %1694 = vmatpush1.msra.mxu0 %v68
    %1695 = vmatprep.subr.mxu0 0.0
    %1696 = vmatpush1.msra.mxu0 %v69
    %1697 = vmatprep.subr.mxu0 0.0
    %1698 = vmatpush1.msra.mxu0 %v70
    %1699 = vmatprep.subr.mxu0 0.0
    %1700 = vmatpush1.msra.mxu0 %v71
    %1701 = vmatprep.subr.mxu0 0.0
    %1702 = vmatpush1.msra.mxu0 0.0
    %1703 = vmatprep.subr.mxu0 0.0
    %1704 = vmatpush1.msra.mxu0 0.0
    %1705 = vmatprep.subr.mxu0 0.0
    %1706 = vmatpush1.msra.mxu0 0.0
    %1707 = vmatprep.subr.mxu0 0.0
    %1708 = vmatpush1.msra.mxu0 0.0
    %1709 = vmatprep.subr.mxu0 0.0
    %1710 = vmatpush1.msra.mxu0 0.0
    %1711 = vmatprep.subr.mxu0 0.0
    %1712 = vmatpush1.msra.mxu0 0.0
    %1713 = vmatprep.subr.mxu0 0.0
    %1714 = vmatpush1.msra.mxu0 0.0
    %1715 = vmatprep.subr.mxu0 0.0
    %1716 = vmatpush1.msra.mxu0 0.0
    %1717 = vmatprep.subr.mxu0 0.0
    %1718 = vmatpush1.msra.mxu0 0.0
    %1719 = vmatprep.subr.mxu0 0.0
    %1720 = vmatpush1.msra.mxu0 0.0
    %1721 = vmatprep.subr.mxu0 0.0
    %1722 = vmatpush1.msra.mxu0 0.0
    %1723 = vmatprep.subr.mxu0 0.0
    %1724 = vmatpush1.msra.mxu0 0.0
    %1725 = vmatprep.subr.mxu0 0.0
    %1726 = vmatpush1.msra.mxu0 0.0
    %1727 = vmatprep.subr.mxu0 0.0
    %1728 = vmatpush1.msra.mxu0 0.0
    %1729 = vmatprep.subr.mxu0 0.0
    %1730 = vmatpush1.msra.mxu0 0.0
    %1731 = vmatprep.subr.mxu0 0.0
    %1732 = vmatpush1.msra.mxu0 0.0
    %1733 = vmatprep.mubr.f32.mxu0 0.0
    %1734 = vmatmul.mubr.f32.gmra.mrb[0].mxu0 %v1668
    %v1735 = vpop.f32.mrb[0].mxu0
    %v1736 = vadd.f32 %v76, %v1735
    %v1737 = vpop.f32.mrb[0].mxu0
    %1738 = vdwg.mxu0
    %v1739 = vtanh.pop %v1736
    %v1740 = vmul.f32 %v1666, %v1739
    %v1741 = vadd.f32 %v1592, %v1740
    %1742 = vmatprep.subr.mxu0 0.0
    %1743 = vmatpush1.msra.mxu0 %v56
    %1744 = vmatprep.subr.mxu0 0.0
    %1745 = vmatpush1.msra.mxu0 %v57
    %1746 = vmatprep.subr.mxu0 0.0
    %1747 = vmatpush1.msra.mxu0 %v58
    %1748 = vmatprep.subr.mxu0 0.0
    %1749 = vmatpush1.msra.mxu0 %v59
    %1750 = vmatprep.subr.mxu0 0.0
    %1751 = vmatpush1.msra.mxu0 %v60
    %1752 = vmatprep.subr.mxu0 0.0
    %1753 = vmatpush1.msra.mxu0 %v61
    %1754 = vmatprep.subr.mxu0 0.0
    %1755 = vmatpush1.msra.mxu0 %v62
    %1756 = vmatprep.subr.mxu0 0.0
    %1757 = vmatpush1.msra.mxu0 %v63
    %1758 = vmatprep.subr.mxu0 0.0
    %1759 = vmatpush1.msra.mxu0 %v64
    %1760 = vmatprep.subr.mxu0 0.0
    %1761 = vmatpush1.msra.mxu0 %v65
    %1762 = vmatprep.subr.mxu0 0.0
    %1763 = vmatpush1.msra.mxu0 %v66
    %1764 = vmatprep.subr.mxu0 0.0
    %1765 = vmatpush1.msra.mxu0 %v67
    %1766 = vmatprep.subr.mxu0 0.0
    %1767 = vmatpush1.msra.mxu0 %v68
    %1768 = vmatprep.subr.mxu0 0.0
    %1769 = vmatpush1.msra.mxu0 %v69
    %1770 = vmatprep.subr.mxu0 0.0
    %1771 = vmatpush1.msra.mxu0 %v70
    %1772 = vmatprep.subr.mxu0 0.0
    %1773 = vmatpush1.msra.mxu0 %v71
    %1774 = vmatprep.subr.mxu0 0.0
    %1775 = vmatpush1.msra.mxu0 0.0
    %1776 = vmatprep.subr.mxu0 0.0
    %1777 = vmatpush1.msra.mxu0 0.0
    %1778 = vmatprep.subr.mxu0 0.0
    %1779 = vmatpush1.msra.mxu0 0.0
    %1780 = vmatprep.subr.mxu0 0.0
    %1781 = vmatpush1.msra.mxu0 0.0
    %1782 = vmatprep.subr.mxu0 0.0
    %1783 = vmatpush1.msra.mxu0 0.0
    %1784 = vmatprep.subr.mxu0 0.0
    %1785 = vmatpush1.msra.mxu0 0.0
    %1786 = vmatprep.subr.mxu0 0.0
    %1787 = vmatpush1.msra.mxu0 0.0
    %1788 = vmatprep.subr.mxu0 0.0
    %1789 = vmatpush1.msra.mxu0 0.0
    %1790 = vmatprep.subr.mxu0 0.0
    %1791 = vmatpush1.msra.mxu0 0.0
    %1792 = vmatprep.subr.mxu0 0.0
    %1793 = vmatpush1.msra.mxu0 0.0
    %1794 = vmatprep.subr.mxu0 0.0
    %1795 = vmatpush1.msra.mxu0 0.0
    %1796 = vmatprep.subr.mxu0 0.0
    %1797 = vmatpush1.msra.mxu0 0.0
    %1798 = vmatprep.subr.mxu0 0.0
    %1799 = vmatpush1.msra.mxu0 0.0
    %1800 = vmatprep.subr.mxu0 0.0
    %1801 = vmatpush1.msra.mxu0 0.0
    %1802 = vmatprep.subr.mxu0 0.0
    %1803 = vmatpush1.msra.mxu0 0.0
    %1804 = vmatprep.subr.mxu0 0.0
    %1805 = vmatpush1.msra.mxu0 0.0
    %1806 = vmatprep.mubr.f32.mxu0 0.0
    %1807 = vmatmul.mubr.f32.gmra.mrb[0].mxu0 %v1741
    %v1808 = vpop.f32.mrb[0].mxu0
    %v1809 = vadd.f32 %v76, %v1808
    %v1810 = vpop.f32.mrb[0].mxu0
    %1811 = vdwg.mxu0
    %v1812 = vtanh.pop %v1809
    %v1813 = vstv %s1593
    %v1814 = vmul.f32 %v1813, %v1812
    %v1815 = vadd.f32 %v1592, %v1814
    %1816 = vmatprep.subr.mxu0 0.0
    %1817 = vmatpush1.msra.mxu0 %v56
    %1818 = vmatprep.subr.mxu0 0.0
    %1819 = vmatpush1.msra.mxu0 %v57
    %1820 = vmatprep.subr.mxu0 0.0
    %1821 = vmatpush1.msra.mxu0 %v58
    %1822 = vmatprep.subr.mxu0 0.0
    %1823 = vmatpush1.msra.mxu0 %v59
    %1824 = vmatprep.subr.mxu0 0.0
    %1825 = vmatpush1.msra.mxu0 %v60
    %1826 = vmatprep.subr.mxu0 0.0
    %1827 = vmatpush1.msra.mxu0 %v61
    %1828 = vmatprep.subr.mxu0 0.0
    %1829 = vmatpush1.msra.mxu0 %v62
    %1830 = vmatprep.subr.mxu0 0.0
    %1831 = vmatpush1.msra.mxu0 %v63
    %1832 = vmatprep.subr.mxu0 0.0
    %1833 = vmatpush1.msra.mxu0 %v64
    %1834 = vmatprep.subr.mxu0 0.0
    %1835 = vmatpush1.msra.mxu0 %v65
    %1836 = vmatprep.subr.mxu0 0.0
    %1837 = vmatpush1.msra.mxu0 %v66
    %1838 = vmatprep.subr.mxu0 0.0
    %1839 = vmatpush1.msra.mxu0 %v67
    %1840 = vmatprep.subr.mxu0 0.0
    %1841 = vmatpush1.msra.mxu0 %v68
    %1842 = vmatprep.subr.mxu0 0.0
    %1843 = vmatpush1.msra.mxu0 %v69
    %1844 = vmatprep.subr.mxu0 0.0
    %1845 = vmatpush1.msra.mxu0 %v70
    %1846 = vmatprep.subr.mxu0 0.0
    %1847 = vmatpush1.msra.mxu0 %v71
    %1848 = vmatprep.subr.mxu0 0.0
    %1849 = vmatpush1.msra.mxu0 0.0
    %1850 = vmatprep.subr.mxu0 0.0
    %1851 = vmatpush1.msra.mxu0 0.0
    %1852 = vmatprep.subr.mxu0 0.0
    %1853 = vmatpush1.msra.mxu0 0.0
    %1854 = vmatprep.subr.mxu0 0.0
    %1855 = vmatpush1.msra.mxu0 0.0
    %1856 = vmatprep.subr.mxu0 0.0
    %1857 = vmatpush1.msra.mxu0 0.0
    %1858 = vmatprep.subr.mxu0 0.0
    %1859 = vmatpush1.msra.mxu0 0.0
    %1860 = vmatprep.subr.mxu0 0.0
    %1861 = vmatpush1.msra.mxu0 0.0
    %1862 = vmatprep.subr.mxu0 0.0
    %1863 = vmatpush1.msra.mxu0 0.0
    %1864 = vmatprep.subr.mxu0 0.0
    %1865 = vmatpush1.msra.mxu0 0.0
    %1866 = vmatprep.subr.mxu0 0.0
    %1867 = vmatpush1.msra.mxu0 0.0
    %1868 = vmatprep.subr.mxu0 0.0
    %1869 = vmatpush1.msra.mxu0 0.0
    %1870 = vmatprep.subr.mxu0 0.0
    %1871 = vmatpush1.msra.mxu0 0.0
    %1872 = vmatprep.subr.mxu0 0.0
    %1873 = vmatpush1.msra.mxu0 0.0
    %1874 = vmatprep.subr.mxu0 0.0
    %1875 = vmatpush1.msra.mxu0 0.0
    %1876 = vmatprep.subr.mxu0 0.0
    %1877 = vmatpush1.msra.mxu0 0.0
    %1878 = vmatprep.subr.mxu0 0.0
    %1879 = vmatpush1.msra.mxu0 0.0
    %1880 = vmatprep.mubr.f32.mxu0 0.0
    %1881 = vmatmul.mubr.f32.gmra.mrb[0].mxu0 %v1815
    %v1882 = vpop.f32.mrb[0].mxu0
    %v1883 = vadd.f32 %v76, %v1882
    %v1884 = vpop.f32.mrb[0].mxu0
    %1885 = vdwg.mxu0
    %v1886 = vtanh.pop %v1883
    %s1887 = smul.f32 %s1593, 0.16666667
    %v1888 = vmul.f32 %v1739, 2.0
    %v1889 = vadd.f32 %v1665, %v1888
    %v1890 = vmul.f32 %v1812, 2.0
    %v1891 = vadd.f32 %v1889, %v1890
    %v1892 = vadd.f32 %v1891, %v1886
    %v1893 = vstv %s1887
    %v1894 = vmul.f32 %v1893, %v1892
    %v1895 = vadd.f32 %v1592, %v1894
    %s1896 = sld [smem:[#allocation4 + $0x6]]
    %s1897 = smul.f32 %s1896, 0.5
    %1898 = vmatprep.subr.mxu0 0.0
    %1899 = vmatpush1.msra.mxu0 %v56
    %1900 = vmatprep.subr.mxu0 0.0
    %1901 = vmatpush1.msra.mxu0 %v57
    %1902 = vmatprep.subr.mxu0 0.0
    %1903 = vmatpush1.msra.mxu0 %v58
    %1904 = vmatprep.subr.mxu0 0.0
    %1905 = vmatpush1.msra.mxu0 %v59
    %1906 = vmatprep.subr.mxu0 0.0
    %1907 = vmatpush1.msra.mxu0 %v60
    %1908 = vmatprep.subr.mxu0 0.0
    %1909 = vmatpush1.msra.mxu0 %v61
    %1910 = vmatprep.subr.mxu0 0.0
    %1911 = vmatpush1.msra.mxu0 %v62
    %1912 = vmatprep.subr.mxu0 0.0
    %1913 = vmatpush1.msra.mxu0 %v63
    %1914 = vmatprep.subr.mxu0 0.0
    %1915 = vmatpush1.msra.mxu0 %v64
    %1916 = vmatprep.subr.mxu0 0.0
    %1917 = vmatpush1.msra.mxu0 %v65
    %1918 = vmatprep.subr.mxu0 0.0
    %1919 = vmatpush1.msra.mxu0 %v66
    %1920 = vmatprep.subr.mxu0 0.0
    %1921 = vmatpush1.msra.mxu0 %v67
    %1922 = vmatprep.subr.mxu0 0.0
    %1923 = vmatpush1.msra.mxu0 %v68
    %1924 = vmatprep.subr.mxu0 0.0
    %1925 = vmatpush1.msra.mxu0 %v69
    %1926 = vmatprep.subr.mxu0 0.0
    %1927 = vmatpush1.msra.mxu0 %v70
    %1928 = vmatprep.subr.mxu0 0.0
    %1929 = vmatpush1.msra.mxu0 %v71
    %1930 = vmatprep.subr.mxu0 0.0
    %1931 = vmatpush1.msra.mxu0 0.0
    %1932 = vmatprep.subr.mxu0 0.0
    %1933 = vmatpush1.msra.mxu0 0.0
    %1934 = vmatprep.subr.mxu0 0.0
    %1935 = vmatpush1.msra.mxu0 0.0
    %1936 = vmatprep.subr.mxu0 0.0
    %1937 = vmatpush1.msra.mxu0 0.0
    %1938 = vmatprep.subr.mxu0 0.0
    %1939 = vmatpush1.msra.mxu0 0.0
    %1940 = vmatprep.subr.mxu0 0.0
    %1941 = vmatpush1.msra.mxu0 0.0
    %1942 = vmatprep.subr.mxu0 0.0
    %1943 = vmatpush1.msra.mxu0 0.0
    %1944 = vmatprep.subr.mxu0 0.0
    %1945 = vmatpush1.msra.mxu0 0.0
    %1946 = vmatprep.subr.mxu0 0.0
    %1947 = vmatpush1.msra.mxu0 0.0
    %1948 = vmatprep.subr.mxu0 0.0
    %1949 = vmatpush1.msra.mxu0 0.0
    %1950 = vmatprep.subr.mxu0 0.0
    %1951 = vmatpush1.msra.mxu0 0.0
    %1952 = vmatprep.subr.mxu0 0.0
    %1953 = vmatpush1.msra.mxu0 0.0
    %1954 = vmatprep.subr.mxu0 0.0
    %1955 = vmatpush1.msra.mxu0 0.0
    %1956 = vmatprep.subr.mxu0 0.0
    %1957 = vmatpush1.msra.mxu0 0.0
    %1958 = vmatprep.subr.mxu0 0.0
    %1959 = vmatpush1.msra.mxu0 0.0
    %1960 = vmatprep.subr.mxu0 0.0
    %1961 = vmatpush1.msra.mxu0 0.0
    %1962 = vmatprep.mubr.f32.mxu0 0.0
    %1963 = vmatmul.mubr.f32.gmra.mrb[0].mxu0 %v1895
    %v1964 = vpop.f32.mrb[0].mxu0
    %v1965 = vadd.f32 %v76, %v1964
    %v1966 = vpop.f32.mrb[0].mxu0
    %1967 = vdwg.mxu0
    %v1968 = vtanh.pop %v1965
    %v1969 = vstv %s1897
    %v1970 = vmul.f32 %v1969, %v1968
    %v1971 = vadd.f32 %v1895, %v1970
    %1972 = vmatprep.subr.mxu0 0.0
    %1973 = vmatpush1.msra.mxu0 %v56
    %1974 = vmatprep.subr.mxu0 0.0
    %1975 = vmatpush1.msra.mxu0 %v57
    %1976 = vmatprep.subr.mxu0 0.0
    %1977 = vmatpush1.msra.mxu0 %v58
    %1978 = vmatprep.subr.mxu0 0.0
    %1979 = vmatpush1.msra.mxu0 %v59
    %1980 = vmatprep.subr.mxu0 0.0
    %1981 = vmatpush1.msra.mxu0 %v60
    %1982 = vmatprep.subr.mxu0 0.0
    %1983 = vmatpush1.msra.mxu0 %v61
    %1984 = vmatprep.subr.mxu0 0.0
    %1985 = vmatpush1.msra.mxu0 %v62
    %1986 = vmatprep.subr.mxu0 0.0
    %1987 = vmatpush1.msra.mxu0 %v63
    %1988 = vmatprep.subr.mxu0 0.0
    %1989 = vmatpush1.msra.mxu0 %v64
    %1990 = vmatprep.subr.mxu0 0.0
    %1991 = vmatpush1.msra.mxu0 %v65
    %1992 = vmatprep.subr.mxu0 0.0
    %1993 = vmatpush1.msra.mxu0 %v66
    %1994 = vmatprep.subr.mxu0 0.0
    %1995 = vmatpush1.msra.mxu0 %v67
    %1996 = vmatprep.subr.mxu0 0.0
    %1997 = vmatpush1.msra.mxu0 %v68
    %1998 = vmatprep.subr.mxu0 0.0
    %1999 = vmatpush1.msra.mxu0 %v69
    %2000 = vmatprep.subr.mxu0 0.0
    %2001 = vmatpush1.msra.mxu0 %v70
    %2002 = vmatprep.subr.mxu0 0.0
    %2003 = vmatpush1.msra.mxu0 %v71
    %2004 = vmatprep.subr.mxu0 0.0
    %2005 = vmatpush1.msra.mxu0 0.0
    %2006 = vmatprep.subr.mxu0 0.0
    %2007 = vmatpush1.msra.mxu0 0.0
    %2008 = vmatprep.subr.mxu0 0.0
    %2009 = vmatpush1.msra.mxu0 0.0
    %2010 = vmatprep.subr.mxu0 0.0
    %2011 = vmatpush1.msra.mxu0 0.0
    %2012 = vmatprep.subr.mxu0 0.0
    %2013 = vmatpush1.msra.mxu0 0.0
    %2014 = vmatprep.subr.mxu0 0.0
    %2015 = vmatpush1.msra.mxu0 0.0
    %2016 = vmatprep.subr.mxu0 0.0
    %2017 = vmatpush1.msra.mxu0 0.0
    %2018 = vmatprep.subr.mxu0 0.0
    %2019 = vmatpush1.msra.mxu0 0.0
    %2020 = vmatprep.subr.mxu0 0.0
    %2021 = vmatpush1.msra.mxu0 0.0
    %2022 = vmatprep.subr.mxu0 0.0
    %2023 = vmatpush1.msra.mxu0 0.0
    %2024 = vmatprep.subr.mxu0 0.0
    %2025 = vmatpush1.msra.mxu0 0.0
    %2026 = vmatprep.subr.mxu0 0.0
    %2027 = vmatpush1.msra.mxu0 0.0
    %2028 = vmatprep.subr.mxu0 0.0
    %2029 = vmatpush1.msra.mxu0 0.0
    %2030 = vmatprep.subr.mxu0 0.0
    %2031 = vmatpush1.msra.mxu0 0.0
    %2032 = vmatprep.subr.mxu0 0.0
    %2033 = vmatpush1.msra.mxu0 0.0
    %2034 = vmatprep.subr.mxu0 0.0
    %2035 = vmatpush1.msra.mxu0 0.0
    %2036 = vmatprep.mubr.f32.mxu0 0.0
    %2037 = vmatmul.mubr.f32.gmra.mrb[0].mxu0 %v1971
    %v2038 = vpop.f32.mrb[0].mxu0
    %v2039 = vadd.f32 %v76, %v2038
    %v2040 = vpop.f32.mrb[0].mxu0
    %2041 = vdwg.mxu0
    %v2042 = vtanh.pop %v2039
    %v2043 = vmul.f32 %v1969, %v2042
    %v2044 = vadd.f32 %v1895, %v2043
    %2045 = vmatprep.subr.mxu0 0.0
    %2046 = vmatpush1.msra.mxu0 %v56
    %2047 = vmatprep.subr.mxu0 0.0
    %2048 = vmatpush1.msra.mxu0 %v57
    %2049 = vmatprep.subr.mxu0 0.0
    %2050 = vmatpush1.msra.mxu0 %v58
    %2051 = vmatprep.subr.mxu0 0.0
    %2052 = vmatpush1.msra.mxu0 %v59
    %2053 = vmatprep.subr.mxu0 0.0
    %2054 = vmatpush1.msra.mxu0 %v60
    %2055 = vmatprep.subr.mxu0 0.0
    %2056 = vmatpush1.msra.mxu0 %v61
    %2057 = vmatprep.subr.mxu0 0.0
    %2058 = vmatpush1.msra.mxu0 %v62
    %2059 = vmatprep.subr.mxu0 0.0
    %2060 = vmatpush1.msra.mxu0 %v63
    %2061 = vmatprep.subr.mxu0 0.0
    %2062 = vmatpush1.msra.mxu0 %v64
    %2063 = vmatprep.subr.mxu0 0.0
    %2064 = vmatpush1.msra.mxu0 %v65
    %2065 = vmatprep.subr.mxu0 0.0
    %2066 = vmatpush1.msra.mxu0 %v66
    %2067 = vmatprep.subr.mxu0 0.0
    %2068 = vmatpush1.msra.mxu0 %v67
    %2069 = vmatprep.subr.mxu0 0.0
    %2070 = vmatpush1.msra.mxu0 %v68
    %2071 = vmatprep.subr.mxu0 0.0
    %2072 = vmatpush1.msra.mxu0 %v69
    %2073 = vmatprep.subr.mxu0 0.0
    %2074 = vmatpush1.msra.mxu0 %v70
    %2075 = vmatprep.subr.mxu0 0.0
    %2076 = vmatpush1.msra.mxu0 %v71
    %2077 = vmatprep.subr.mxu0 0.0
    %2078 = vmatpush1.msra.mxu0 0.0
    %2079 = vmatprep.subr.mxu0 0.0
    %2080 = vmatpush1.msra.mxu0 0.0
    %2081 = vmatprep.subr.mxu0 0.0
    %2082 = vmatpush1.msra.mxu0 0.0
    %2083 = vmatprep.subr.mxu0 0.0
    %2084 = vmatpush1.msra.mxu0 0.0
    %2085 = vmatprep.subr.mxu0 0.0
    %2086 = vmatpush1.msra.mxu0 0.0
    %2087 = vmatprep.subr.mxu0 0.0
    %2088 = vmatpush1.msra.mxu0 0.0
    %2089 = vmatprep.subr.mxu0 0.0
    %2090 = vmatpush1.msra.mxu0 0.0
    %2091 = vmatprep.subr.mxu0 0.0
    %2092 = vmatpush1.msra.mxu0 0.0
    %2093 = vmatprep.subr.mxu0 0.0
    %2094 = vmatpush1.msra.mxu0 0.0
    %2095 = vmatprep.subr.mxu0 0.0
    %2096 = vmatpush1.msra.mxu0 0.0
    %2097 = vmatprep.subr.mxu0 0.0
    %2098 = vmatpush1.msra.mxu0 0.0
    %2099 = vmatprep.subr.mxu0 0.0
    %2100 = vmatpush1.msra.mxu0 0.0
    %2101 = vmatprep.subr.mxu0 0.0
    %2102 = vmatpush1.msra.mxu0 0.0
    %2103 = vmatprep.subr.mxu0 0.0
    %2104 = vmatpush1.msra.mxu0 0.0
    %2105 = vmatprep.subr.mxu0 0.0
    %2106 = vmatpush1.msra.mxu0 0.0
    %2107 = vmatprep.subr.mxu0 0.0
    %2108 = vmatpush1.msra.mxu0 0.0
    %2109 = vmatprep.mubr.f32.mxu0 0.0
    %2110 = vmatmul.mubr.f32.gmra.mrb[0].mxu0 %v2044
    %v2111 = vpop.f32.mrb[0].mxu0
    %v2112 = vadd.f32 %v76, %v2111
    %v2113 = vpop.f32.mrb[0].mxu0
    %2114 = vdwg.mxu0
    %v2115 = vtanh.pop %v2112
    %v2116 = vstv %s1896
    %v2117 = vmul.f32 %v2116, %v2115
    %v2118 = vadd.f32 %v1895, %v2117
    %2119 = vmatprep.subr.mxu0 0.0
    %2120 = vmatpush1.msra.mxu0 %v56
    %2121 = vmatprep.subr.mxu0 0.0
    %2122 = vmatpush1.msra.mxu0 %v57
    %2123 = vmatprep.subr.mxu0 0.0
    %2124 = vmatpush1.msra.mxu0 %v58
    %2125 = vmatprep.subr.mxu0 0.0
    %2126 = vmatpush1.msra.mxu0 %v59
    %2127 = vmatprep.subr.mxu0 0.0
    %2128 = vmatpush1.msra.mxu0 %v60
    %2129 = vmatprep.subr.mxu0 0.0
    %2130 = vmatpush1.msra.mxu0 %v61
    %2131 = vmatprep.subr.mxu0 0.0
    %2132 = vmatpush1.msra.mxu0 %v62
    %2133 = vmatprep.subr.mxu0 0.0
    %2134 = vmatpush1.msra.mxu0 %v63
    %2135 = vmatprep.subr.mxu0 0.0
    %2136 = vmatpush1.msra.mxu0 %v64
    %2137 = vmatprep.subr.mxu0 0.0
    %2138 = vmatpush1.msra.mxu0 %v65
    %2139 = vmatprep.subr.mxu0 0.0
    %2140 = vmatpush1.msra.mxu0 %v66
    %2141 = vmatprep.subr.mxu0 0.0
    %2142 = vmatpush1.msra.mxu0 %v67
    %2143 = vmatprep.subr.mxu0 0.0
    %2144 = vmatpush1.msra.mxu0 %v68
    %2145 = vmatprep.subr.mxu0 0.0
    %2146 = vmatpush1.msra.mxu0 %v69
    %2147 = vmatprep.subr.mxu0 0.0
    %2148 = vmatpush1.msra.mxu0 %v70
    %2149 = vmatprep.subr.mxu0 0.0
    %2150 = vmatpush1.msra.mxu0 %v71
    %2151 = vmatprep.subr.mxu0 0.0
    %2152 = vmatpush1.msra.mxu0 0.0
    %2153 = vmatprep.subr.mxu0 0.0
    %2154 = vmatpush1.msra.mxu0 0.0
    %2155 = vmatprep.subr.mxu0 0.0
    %2156 = vmatpush1.msra.mxu0 0.0
    %2157 = vmatprep.subr.mxu0 0.0
    %2158 = vmatpush1.msra.mxu0 0.0
    %2159 = vmatprep.subr.mxu0 0.0
    %2160 = vmatpush1.msra.mxu0 0.0
    %2161 = vmatprep.subr.mxu0 0.0
    %2162 = vmatpush1.msra.mxu0 0.0
    %2163 = vmatprep.subr.mxu0 0.0
    %2164 = vmatpush1.msra.mxu0 0.0
    %2165 = vmatprep.subr.mxu0 0.0
    %2166 = vmatpush1.msra.mxu0 0.0
    %2167 = vmatprep.subr.mxu0 0.0
    %2168 = vmatpush1.msra.mxu0 0.0
    %2169 = vmatprep.subr.mxu0 0.0
    %2170 = vmatpush1.msra.mxu0 0.0
    %2171 = vmatprep.subr.mxu0 0.0
    %2172 = vmatpush1.msra.mxu0 0.0
    %2173 = vmatprep.subr.mxu0 0.0
    %2174 = vmatpush1.msra.mxu0 0.0
    %2175 = vmatprep.subr.mxu0 0.0
    %2176 = vmatpush1.msra.mxu0 0.0
    %2177 = vmatprep.subr.mxu0 0.0
    %2178 = vmatpush1.msra.mxu0 0.0
    %2179 = vmatprep.subr.mxu0 0.0
    %2180 = vmatpush1.msra.mxu0 0.0
    %2181 = vmatprep.subr.mxu0 0.0
    %2182 = vmatpush1.msra.mxu0 0.0
    %2183 = vmatprep.mubr.f32.mxu0 0.0
    %2184 = vmatmul.mubr.f32.gmra.mrb[0].mxu0 %v2118
    %v2185 = vpop.f32.mrb[0].mxu0
    %v2186 = vadd.f32 %v76, %v2185
    %v2187 = vpop.f32.mrb[0].mxu0
    %2188 = vdwg.mxu0
    %v2189 = vtanh.pop %v2186
    %s2190 = smul.f32 %s1896, 0.16666667
    %v2191 = vmul.f32 %v2042, 2.0
    %v2192 = vadd.f32 %v1968, %v2191
    %v2193 = vmul.f32 %v2115, 2.0
    %v2194 = vadd.f32 %v2192, %v2193
    %v2195 = vadd.f32 %v2194, %v2189
    %v2196 = vstv %s2190
    %v2197 = vmul.f32 %v2196, %v2195
    %v2198 = vadd.f32 %v1895, %v2197
    %s2199 = smul.u32 5, 128
    %s2200 = smul.u32 %s2199, 1
    %s2201 = sshll.u32 %s2200, 4
    %2202 = dma.done [#allocation3], %s2201
    %v2203 = vld [vmem:[#allocation2] sm:$0xff]
    %v2204 = vld [vmem:[#allocation2 + $0x8] sm:$0xff]
    %v2205 = vld [vmem:[#allocation2 + $0x10] sm:$0xff]
    %v2206 = vld [vmem:[#allocation2 + $0x18] sm:$0xff]
    %v2207 = vld [vmem:[#allocation2 + $0x20] sm:$0xff]
    %v2208 = vld [vmem:[#allocation2 + $0x28] sm:$0xff]
    %v2209 = vld [vmem:[#allocation2 + $0x30] sm:$0xff]
    %v2210 = vld [vmem:[#allocation2 + $0x38] sm:$0xff]
    %v2211 = vld [vmem:[#allocation2 + $0x40] sm:$0xff]
    %v2212 = vld [vmem:[#allocation2 + $0x48] sm:$0xff]
    %v2213 = vld [vmem:[#allocation2 + $0x50] sm:$0xff]
    %v2214 = vld [vmem:[#allocation2 + $0x58] sm:$0xff]
    %v2215 = vld [vmem:[#allocation2 + $0x60] sm:$0xff]
    %v2216 = vld [vmem:[#allocation2 + $0x68] sm:$0xff]
    %v2217 = vld [vmem:[#allocation2 + $0x70] sm:$0xff]
    %v2218 = vld [vmem:[#allocation2 + $0x78] sm:$0xff]
    %v2219 = vlaneseq
    %v2220 = vshrl.u32 %v2219, 7
    %v2221 = vsub.s32 1, %v2220
    %v2222 = vrot.slane %v72, %v2221
    %2223 = vmatprep.subr.mxu0 0.0
    %2224 = vmatpush1.msra.mxu0 %v2203
    %2225 = vmatprep.subr.mxu0 0.0
    %2226 = vmatpush1.msra.mxu0 %v2204
    %2227 = vmatprep.subr.mxu0 0.0
    %2228 = vmatpush1.msra.mxu0 %v2205
    %2229 = vmatprep.subr.mxu0 0.0
    %2230 = vmatpush1.msra.mxu0 %v2206
    %2231 = vmatprep.subr.mxu0 0.0
    %2232 = vmatpush1.msra.mxu0 %v2207
    %2233 = vmatprep.subr.mxu0 0.0
    %2234 = vmatpush1.msra.mxu0 %v2208
    %2235 = vmatprep.subr.mxu0 0.0
    %2236 = vmatpush1.msra.mxu0 %v2209
    %2237 = vmatprep.subr.mxu0 0.0
    %2238 = vmatpush1.msra.mxu0 %v2210
    %2239 = vmatprep.subr.mxu0 0.0
    %2240 = vmatpush1.msra.mxu0 %v2211
    %2241 = vmatprep.subr.mxu0 0.0
    %2242 = vmatpush1.msra.mxu0 %v2212
    %2243 = vmatprep.subr.mxu0 0.0
    %2244 = vmatpush1.msra.mxu0 %v2213
    %2245 = vmatprep.subr.mxu0 0.0
    %2246 = vmatpush1.msra.mxu0 %v2214
    %2247 = vmatprep.subr.mxu0 0.0
    %2248 = vmatpush1.msra.mxu0 %v2215
    %2249 = vmatprep.subr.mxu0 0.0
    %2250 = vmatpush1.msra.mxu0 %v2216
    %2251 = vmatprep.subr.mxu0 0.0
    %2252 = vmatpush1.msra.mxu0 %v2217
    %2253 = vmatprep.subr.mxu0 0.0
    %2254 = vmatpush1.msra.mxu0 %v2218
    %2255 = vmatprep.subr.mxu0 0.0
    %2256 = vmatpush1.msra.mxu0 0.0
    %2257 = vmatprep.subr.mxu0 0.0
    %2258 = vmatpush1.msra.mxu0 0.0
    %2259 = vmatprep.subr.mxu0 0.0
    %2260 = vmatpush1.msra.mxu0 0.0
    %2261 = vmatprep.subr.mxu0 0.0
    %2262 = vmatpush1.msra.mxu0 0.0
    %2263 = vmatprep.subr.mxu0 0.0
    %2264 = vmatpush1.msra.mxu0 0.0
    %2265 = vmatprep.subr.mxu0 0.0
    %2266 = vmatpush1.msra.mxu0 0.0
    %2267 = vmatprep.subr.mxu0 0.0
    %2268 = vmatpush1.msra.mxu0 0.0
    %2269 = vmatprep.subr.mxu0 0.0
    %2270 = vmatpush1.msra.mxu0 0.0
    %2271 = vmatprep.subr.mxu0 0.0
    %2272 = vmatpush1.msra.mxu0 0.0
    %2273 = vmatprep.subr.mxu0 0.0
    %2274 = vmatpush1.msra.mxu0 0.0
    %2275 = vmatprep.subr.mxu0 0.0
    %2276 = vmatpush1.msra.mxu0 0.0
    %2277 = vmatprep.subr.mxu0 0.0
    %2278 = vmatpush1.msra.mxu0 0.0
    %2279 = vmatprep.subr.mxu0 0.0
    %2280 = vmatpush1.msra.mxu0 0.0
    %2281 = vmatprep.subr.mxu0 0.0
    %2282 = vmatpush1.msra.mxu0 0.0
    %2283 = vmatprep.subr.mxu0 0.0
    %2284 = vmatpush1.msra.mxu0 0.0
    %2285 = vmatprep.subr.mxu0 0.0
    %2286 = vmatpush1.msra.mxu0 0.0
    %2287 = vmatprep.mubr.f32.mxu0 0.0
    %2288 = vmatmul.mubr.f32.gmra.mrb[0].mxu0 %v77
    %v2289 = vpop.f32.mrb[0].mxu0
    %v2290 = vadd.f32 %v2222, %v2289
    %v2291 = vpop.f32.mrb[0].mxu0
    %2292 = vmatprep.mubr.f32.mxu0 0.0
    %2293 = vmatmul.mubr.f32.gmra.mrb[0].mxu0 %v380
    %v2294 = vpop.f32.mrb[0].mxu0
    %v2295 = vadd.f32 %v2222, %v2294
    %v2296 = vpop.f32.mrb[0].mxu0
    %2297 = vmatprep.mubr.f32.mxu0 0.0
    %2298 = vmatmul.mubr.f32.gmra.mrb[0].mxu0 %v683
    %v2299 = vpop.f32.mrb[0].mxu0
    %v2300 = vadd.f32 %v2222, %v2299
    %v2301 = vpop.f32.mrb[0].mxu0
    %2302 = vmatprep.mubr.f32.mxu0 0.0
    %2303 = vmatmul.mubr.f32.gmra.mrb[0].mxu0 %v986
    %v2304 = vpop.f32.mrb[0].mxu0
    %v2305 = vadd.f32 %v2222, %v2304
    %v2306 = vpop.f32.mrb[0].mxu0
    %2307 = vmatprep.mubr.f32.mxu0 0.0
    %2308 = vmatmul.mubr.f32.gmra.mrb[0].mxu0 %v1289
    %v2309 = vpop.f32.mrb[0].mxu0
    %v2310 = vadd.f32 %v2222, %v2309
    %v2311 = vpop.f32.mrb[0].mxu0
    %2312 = vmatprep.mubr.f32.mxu0 0.0
    %2313 = vmatmul.mubr.f32.gmra.mrb[0].mxu0 %v1592
    %v2314 = vpop.f32.mrb[0].mxu0
    %v2315 = vadd.f32 %v2222, %v2314
    %v2316 = vpop.f32.mrb[0].mxu0
    %2317 = vmatprep.mubr.f32.mxu0 0.0
    %2318 = vmatmul.mubr.f32.gmra.mrb[0].mxu0 %v1895
    %v2319 = vpop.f32.mrb[0].mxu0
    %v2320 = vadd.f32 %v2222, %v2319
    %v2321 = vpop.f32.mrb[0].mxu0
    %2322 = vmatprep.mubr.f32.mxu0 0.0
    %2323 = vmatmul.mubr.f32.gmra.mrb[0].mxu0 %v2198
    %v2324 = vpop.f32.mrb[0].mxu0
    %v2325 = vadd.f32 %v2222, %v2324
    %v2326 = vpop.f32.mrb[0].mxu0
    %2327 = vdwg.mxu0
    %v2328 = vmax.f32 %v2290, 0.0
    %v2329 = vmax.f32 %v2295, 0.0
    %v2330 = vmax.f32 %v2300, 0.0
    %v2331 = vmax.f32 %v2305, 0.0
    %v2332 = vmax.f32 %v2310, 0.0
    %v2333 = vmax.f32 %v2315, 0.0
    %v2334 = vmax.f32 %v2320, 0.0
    %v2335 = vmax.f32 %v2325, 0.0
    %s2336 = scalar_lea.vmem [#allocation2], 128
    %v2337 = vld [vmem:[%s2336] sm:$0xff]
    %v2338 = vld [vmem:[%s2336 + $0x8] sm:$0xff]
    %v2339 = vld [vmem:[%s2336 + $0x10] sm:$0xff]
    %v2340 = vld [vmem:[%s2336 + $0x18] sm:$0xff]
    %v2341 = vld [vmem:[%s2336 + $0x20] sm:$0xff]
    %v2342 = vld [vmem:[%s2336 + $0x28] sm:$0xff]
    %v2343 = vld [vmem:[%s2336 + $0x30] sm:$0xff]
    %v2344 = vld [vmem:[%s2336 + $0x38] sm:$0xff]
    %v2345 = vld [vmem:[%s2336 + $0x40] sm:$0xff]
    %v2346 = vld [vmem:[%s2336 + $0x48] sm:$0xff]
    %v2347 = vld [vmem:[%s2336 + $0x50] sm:$0xff]
    %v2348 = vld [vmem:[%s2336 + $0x58] sm:$0xff]
    %v2349 = vld [vmem:[%s2336 + $0x60] sm:$0xff]
    %v2350 = vld [vmem:[%s2336 + $0x68] sm:$0xff]
    %v2351 = vld [vmem:[%s2336 + $0x70] sm:$0xff]
    %v2352 = vld [vmem:[%s2336 + $0x78] sm:$0xff]
    %v2353 = vlaneseq
    %v2354 = vshrl.u32 %v2353, 7
    %v2355 = vsub.s32 2, %v2354
    %v2356 = vrot.slane %v72, %v2355
    %2357 = vmatprep.subr.mxu0 0.0
    %2358 = vmatpush1.msra.mxu0 %v2337
    %2359 = vmatprep.subr.mxu0 0.0
    %2360 = vmatpush1.msra.mxu0 %v2338
    %2361 = vmatprep.subr.mxu0 0.0
    %2362 = vmatpush1.msra.mxu0 %v2339
    %2363 = vmatprep.subr.mxu0 0.0
    %2364 = vmatpush1.msra.mxu0 %v2340
    %2365 = vmatprep.subr.mxu0 0.0
    %2366 = vmatpush1.msra.mxu0 %v2341
    %2367 = vmatprep.subr.mxu0 0.0
    %2368 = vmatpush1.msra.mxu0 %v2342
    %2369 = vmatprep.subr.mxu0 0.0
    %2370 = vmatpush1.msra.mxu0 %v2343
    %2371 = vmatprep.subr.mxu0 0.0
    %2372 = vmatpush1.msra.mxu0 %v2344
    %2373 = vmatprep.subr.mxu0 0.0
    %2374 = vmatpush1.msra.mxu0 %v2345
    %2375 = vmatprep.subr.mxu0 0.0
    %2376 = vmatpush1.msra.mxu0 %v2346
    %2377 = vmatprep.subr.mxu0 0.0
    %2378 = vmatpush1.msra.mxu0 %v2347
    %2379 = vmatprep.subr.mxu0 0.0
    %2380 = vmatpush1.msra.mxu0 %v2348
    %2381 = vmatprep.subr.mxu0 0.0
    %2382 = vmatpush1.msra.mxu0 %v2349
    %2383 = vmatprep.subr.mxu0 0.0
    %2384 = vmatpush1.msra.mxu0 %v2350
    %2385 = vmatprep.subr.mxu0 0.0
    %2386 = vmatpush1.msra.mxu0 %v2351
    %2387 = vmatprep.subr.mxu0 0.0
    %2388 = vmatpush1.msra.mxu0 %v2352
    %2389 = vmatprep.subr.mxu0 0.0
    %2390 = vmatpush1.msra.mxu0 0.0
    %2391 = vmatprep.subr.mxu0 0.0
    %2392 = vmatpush1.msra.mxu0 0.0
    %2393 = vmatprep.subr.mxu0 0.0
    %2394 = vmatpush1.msra.mxu0 0.0
    %2395 = vmatprep.subr.mxu0 0.0
    %2396 = vmatpush1.msra.mxu0 0.0
    %2397 = vmatprep.subr.mxu0 0.0
    %2398 = vmatpush1.msra.mxu0 0.0
    %2399 = vmatprep.subr.mxu0 0.0
    %2400 = vmatpush1.msra.mxu0 0.0
    %2401 = vmatprep.subr.mxu0 0.0
    %2402 = vmatpush1.msra.mxu0 0.0
    %2403 = vmatprep.subr.mxu0 0.0
    %2404 = vmatpush1.msra.mxu0 0.0
    %2405 = vmatprep.subr.mxu0 0.0
    %2406 = vmatpush1.msra.mxu0 0.0
    %2407 = vmatprep.subr.mxu0 0.0
    %2408 = vmatpush1.msra.mxu0 0.0
    %2409 = vmatprep.subr.mxu0 0.0
    %2410 = vmatpush1.msra.mxu0 0.0
    %2411 = vmatprep.subr.mxu0 0.0
    %2412 = vmatpush1.msra.mxu0 0.0
    %2413 = vmatprep.subr.mxu0 0.0
    %2414 = vmatpush1.msra.mxu0 0.0
    %2415 = vmatprep.subr.mxu0 0.0
    %2416 = vmatpush1.msra.mxu0 0.0
    %2417 = vmatprep.subr.mxu0 0.0
    %2418 = vmatpush1.msra.mxu0 0.0
    %2419 = vmatprep.subr.mxu0 0.0
    %2420 = vmatpush1.msra.mxu0 0.0
    %2421 = vmatprep.mubr.f32.mxu0 0.0
    %2422 = vmatmul.mubr.f32.gmra.mrb[0].mxu0 %v2328
    %v2423 = vpop.f32.mrb[0].mxu0
    %v2424 = vadd.f32 %v2356, %v2423
    %v2425 = vpop.f32.mrb[0].mxu0
    %2426 = vmatprep.mubr.f32.mxu0 0.0
    %2427 = vmatmul.mubr.f32.gmra.mrb[0].mxu0 %v2329
    %v2428 = vpop.f32.mrb[0].mxu0
    %v2429 = vadd.f32 %v2356, %v2428
    %v2430 = vpop.f32.mrb[0].mxu0
    %2431 = vmatprep.mubr.f32.mxu0 0.0
    %2432 = vmatmul.mubr.f32.gmra.mrb[0].mxu0 %v2330
    %v2433 = vpop.f32.mrb[0].mxu0
    %v2434 = vadd.f32 %v2356, %v2433
    %v2435 = vpop.f32.mrb[0].mxu0
    %2436 = vmatprep.mubr.f32.mxu0 0.0
    %2437 = vmatmul.mubr.f32.gmra.mrb[0].mxu0 %v2331
    %v2438 = vpop.f32.mrb[0].mxu0
    %v2439 = vadd.f32 %v2356, %v2438
    %v2440 = vpop.f32.mrb[0].mxu0
    %2441 = vmatprep.mubr.f32.mxu0 0.0
    %2442 = vmatmul.mubr.f32.gmra.mrb[0].mxu0 %v2332
    %v2443 = vpop.f32.mrb[0].mxu0
    %v2444 = vadd.f32 %v2356, %v2443
    %v2445 = vpop.f32.mrb[0].mxu0
    %2446 = vmatprep.mubr.f32.mxu0 0.0
    %2447 = vmatmul.mubr.f32.gmra.mrb[0].mxu0 %v2333
    %v2448 = vpop.f32.mrb[0].mxu0
    %v2449 = vadd.f32 %v2356, %v2448
    %v2450 = vpop.f32.mrb[0].mxu0
    %2451 = vmatprep.mubr.f32.mxu0 0.0
    %2452 = vmatmul.mubr.f32.gmra.mrb[0].mxu0 %v2334
    %v2453 = vpop.f32.mrb[0].mxu0
    %v2454 = vadd.f32 %v2356, %v2453
    %v2455 = vpop.f32.mrb[0].mxu0
    %2456 = vmatprep.mubr.f32.mxu0 0.0
    %2457 = vmatmul.mubr.f32.gmra.mrb[0].mxu0 %v2335
    %v2458 = vpop.f32.mrb[0].mxu0
    %v2459 = vadd.f32 %v2356, %v2458
    %v2460 = vpop.f32.mrb[0].mxu0
    %2461 = vdwg.mxu0
    %v2462 = vmax.f32 %v2424, 0.0
    %v2463 = vmax.f32 %v2429, 0.0
    %v2464 = vmax.f32 %v2434, 0.0
    %v2465 = vmax.f32 %v2439, 0.0
    %v2466 = vmax.f32 %v2444, 0.0
    %v2467 = vmax.f32 %v2449, 0.0
    %v2468 = vmax.f32 %v2454, 0.0
    %v2469 = vmax.f32 %v2459, 0.0
    %s2470 = scalar_lea.vmem [#allocation2], 256
    %v2471 = vld [vmem:[%s2470] sm:$0xff]
    %v2472 = vld [vmem:[%s2470 + $0x8] sm:$0xff]
    %v2473 = vld [vmem:[%s2470 + $0x10] sm:$0xff]
    %v2474 = vld [vmem:[%s2470 + $0x18] sm:$0xff]
    %v2475 = vld [vmem:[%s2470 + $0x20] sm:$0xff]
    %v2476 = vld [vmem:[%s2470 + $0x28] sm:$0xff]
    %v2477 = vld [vmem:[%s2470 + $0x30] sm:$0xff]
    %v2478 = vld [vmem:[%s2470 + $0x38] sm:$0xff]
    %v2479 = vld [vmem:[%s2470 + $0x40] sm:$0xff]
    %v2480 = vld [vmem:[%s2470 + $0x48] sm:$0xff]
    %v2481 = vld [vmem:[%s2470 + $0x50] sm:$0xff]
    %v2482 = vld [vmem:[%s2470 + $0x58] sm:$0xff]
    %v2483 = vld [vmem:[%s2470 + $0x60] sm:$0xff]
    %v2484 = vld [vmem:[%s2470 + $0x68] sm:$0xff]
    %v2485 = vld [vmem:[%s2470 + $0x70] sm:$0xff]
    %v2486 = vld [vmem:[%s2470 + $0x78] sm:$0xff]
    %v2487 = vlaneseq
    %v2488 = vshrl.u32 %v2487, 7
    %v2489 = vsub.s32 3, %v2488
    %v2490 = vrot.slane %v72, %v2489
    %2491 = vmatprep.subr.mxu0 0.0
    %2492 = vmatpush1.msra.mxu0 %v2471
    %2493 = vmatprep.subr.mxu0 0.0
    %2494 = vmatpush1.msra.mxu0 %v2472
    %2495 = vmatprep.subr.mxu0 0.0
    %2496 = vmatpush1.msra.mxu0 %v2473
    %2497 = vmatprep.subr.mxu0 0.0
    %2498 = vmatpush1.msra.mxu0 %v2474
    %2499 = vmatprep.subr.mxu0 0.0
    %2500 = vmatpush1.msra.mxu0 %v2475
    %2501 = vmatprep.subr.mxu0 0.0
    %2502 = vmatpush1.msra.mxu0 %v2476
    %2503 = vmatprep.subr.mxu0 0.0
    %2504 = vmatpush1.msra.mxu0 %v2477
    %2505 = vmatprep.subr.mxu0 0.0
    %2506 = vmatpush1.msra.mxu0 %v2478
    %2507 = vmatprep.subr.mxu0 0.0
    %2508 = vmatpush1.msra.mxu0 %v2479
    %2509 = vmatprep.subr.mxu0 0.0
    %2510 = vmatpush1.msra.mxu0 %v2480
    %2511 = vmatprep.subr.mxu0 0.0
    %2512 = vmatpush1.msra.mxu0 %v2481
    %2513 = vmatprep.subr.mxu0 0.0
    %2514 = vmatpush1.msra.mxu0 %v2482
    %2515 = vmatprep.subr.mxu0 0.0
    %2516 = vmatpush1.msra.mxu0 %v2483
    %2517 = vmatprep.subr.mxu0 0.0
    %2518 = vmatpush1.msra.mxu0 %v2484
    %2519 = vmatprep.subr.mxu0 0.0
    %2520 = vmatpush1.msra.mxu0 %v2485
    %2521 = vmatprep.subr.mxu0 0.0
    %2522 = vmatpush1.msra.mxu0 %v2486
    %2523 = vmatprep.subr.mxu0 0.0
    %2524 = vmatpush1.msra.mxu0 0.0
    %2525 = vmatprep.subr.mxu0 0.0
    %2526 = vmatpush1.msra.mxu0 0.0
    %2527 = vmatprep.subr.mxu0 0.0
    %2528 = vmatpush1.msra.mxu0 0.0
    %2529 = vmatprep.subr.mxu0 0.0
    %2530 = vmatpush1.msra.mxu0 0.0
    %2531 = vmatprep.subr.mxu0 0.0
    %2532 = vmatpush1.msra.mxu0 0.0
    %2533 = vmatprep.subr.mxu0 0.0
    %2534 = vmatpush1.msra.mxu0 0.0
    %2535 = vmatprep.subr.mxu0 0.0
    %2536 = vmatpush1.msra.mxu0 0.0
    %2537 = vmatprep.subr.mxu0 0.0
    %2538 = vmatpush1.msra.mxu0 0.0
    %2539 = vmatprep.subr.mxu0 0.0
    %2540 = vmatpush1.msra.mxu0 0.0
    %2541 = vmatprep.subr.mxu0 0.0
    %2542 = vmatpush1.msra.mxu0 0.0
    %2543 = vmatprep.subr.mxu0 0.0
    %2544 = vmatpush1.msra.mxu0 0.0
    %2545 = vmatprep.subr.mxu0 0.0
    %2546 = vmatpush1.msra.mxu0 0.0
    %2547 = vmatprep.subr.mxu0 0.0
    %2548 = vmatpush1.msra.mxu0 0.0
    %2549 = vmatprep.subr.mxu0 0.0
    %2550 = vmatpush1.msra.mxu0 0.0
    %2551 = vmatprep.subr.mxu0 0.0
    %2552 = vmatpush1.msra.mxu0 0.0
    %2553 = vmatprep.subr.mxu0 0.0
    %2554 = vmatpush1.msra.mxu0 0.0
    %2555 = vmatprep.mubr.f32.mxu0 0.0
    %2556 = vmatmul.mubr.f32.gmra.mrb[0].mxu0 %v2462
    %v2557 = vpop.f32.mrb[0].mxu0
    %v2558 = vadd.f32 %v2490, %v2557
    %v2559 = vpop.f32.mrb[0].mxu0
    %2560 = vmatprep.mubr.f32.mxu0 0.0
    %2561 = vmatmul.mubr.f32.gmra.mrb[0].mxu0 %v2463
    %v2562 = vpop.f32.mrb[0].mxu0
    %v2563 = vadd.f32 %v2490, %v2562
    %v2564 = vpop.f32.mrb[0].mxu0
    %2565 = vmatprep.mubr.f32.mxu0 0.0
    %2566 = vmatmul.mubr.f32.gmra.mrb[0].mxu0 %v2464
    %v2567 = vpop.f32.mrb[0].mxu0
    %v2568 = vadd.f32 %v2490, %v2567
    %v2569 = vpop.f32.mrb[0].mxu0
    %2570 = vmatprep.mubr.f32.mxu0 0.0
    %2571 = vmatmul.mubr.f32.gmra.mrb[0].mxu0 %v2465
    %v2572 = vpop.f32.mrb[0].mxu0
    %v2573 = vadd.f32 %v2490, %v2572
    %v2574 = vpop.f32.mrb[0].mxu0
    %2575 = vmatprep.mubr.f32.mxu0 0.0
    %2576 = vmatmul.mubr.f32.gmra.mrb[0].mxu0 %v2466
    %v2577 = vpop.f32.mrb[0].mxu0
    %v2578 = vadd.f32 %v2490, %v2577
    %v2579 = vpop.f32.mrb[0].mxu0
    %2580 = vmatprep.mubr.f32.mxu0 0.0
    %2581 = vmatmul.mubr.f32.gmra.mrb[0].mxu0 %v2467
    %v2582 = vpop.f32.mrb[0].mxu0
    %v2583 = vadd.f32 %v2490, %v2582
    %v2584 = vpop.f32.mrb[0].mxu0
    %2585 = vmatprep.mubr.f32.mxu0 0.0
    %2586 = vmatmul.mubr.f32.gmra.mrb[0].mxu0 %v2468
    %v2587 = vpop.f32.mrb[0].mxu0
    %v2588 = vadd.f32 %v2490, %v2587
    %v2589 = vpop.f32.mrb[0].mxu0
    %2590 = vmatprep.mubr.f32.mxu0 0.0
    %2591 = vmatmul.mubr.f32.gmra.mrb[0].mxu0 %v2469
    %v2592 = vpop.f32.mrb[0].mxu0
    %v2593 = vadd.f32 %v2490, %v2592
    %v2594 = vpop.f32.mrb[0].mxu0
    %2595 = vdwg.mxu0
    %v2596 = vmax.f32 %v2558, 0.0
    %v2597 = vmax.f32 %v2563, 0.0
    %v2598 = vmax.f32 %v2568, 0.0
    %v2599 = vmax.f32 %v2573, 0.0
    %v2600 = vmax.f32 %v2578, 0.0
    %v2601 = vmax.f32 %v2583, 0.0
    %v2602 = vmax.f32 %v2588, 0.0
    %v2603 = vmax.f32 %v2593, 0.0
    %s2604 = scalar_lea.vmem [#allocation2], 384
    %v2605 = vld [vmem:[%s2604] sm:$0xff]
    %v2606 = vld [vmem:[%s2604 + $0x8] sm:$0xff]
    %v2607 = vld [vmem:[%s2604 + $0x10] sm:$0xff]
    %v2608 = vld [vmem:[%s2604 + $0x18] sm:$0xff]
    %v2609 = vld [vmem:[%s2604 + $0x20] sm:$0xff]
    %v2610 = vld [vmem:[%s2604 + $0x28] sm:$0xff]
    %v2611 = vld [vmem:[%s2604 + $0x30] sm:$0xff]
    %v2612 = vld [vmem:[%s2604 + $0x38] sm:$0xff]
    %v2613 = vld [vmem:[%s2604 + $0x40] sm:$0xff]
    %v2614 = vld [vmem:[%s2604 + $0x48] sm:$0xff]
    %v2615 = vld [vmem:[%s2604 + $0x50] sm:$0xff]
    %v2616 = vld [vmem:[%s2604 + $0x58] sm:$0xff]
    %v2617 = vld [vmem:[%s2604 + $0x60] sm:$0xff]
    %v2618 = vld [vmem:[%s2604 + $0x68] sm:$0xff]
    %v2619 = vld [vmem:[%s2604 + $0x70] sm:$0xff]
    %v2620 = vld [vmem:[%s2604 + $0x78] sm:$0xff]
    %v2621 = vlaneseq
    %v2622 = vshrl.u32 %v2621, 7
    %v2623 = vsub.s32 4, %v2622
    %v2624 = vrot.slane %v72, %v2623
    %2625 = vmatprep.subr.mxu0 0.0
    %2626 = vmatpush1.msra.mxu0 %v2605
    %2627 = vmatprep.subr.mxu0 0.0
    %2628 = vmatpush1.msra.mxu0 %v2606
    %2629 = vmatprep.subr.mxu0 0.0
    %2630 = vmatpush1.msra.mxu0 %v2607
    %2631 = vmatprep.subr.mxu0 0.0
    %2632 = vmatpush1.msra.mxu0 %v2608
    %2633 = vmatprep.subr.mxu0 0.0
    %2634 = vmatpush1.msra.mxu0 %v2609
    %2635 = vmatprep.subr.mxu0 0.0
    %2636 = vmatpush1.msra.mxu0 %v2610
    %2637 = vmatprep.subr.mxu0 0.0
    %2638 = vmatpush1.msra.mxu0 %v2611
    %2639 = vmatprep.subr.mxu0 0.0
    %2640 = vmatpush1.msra.mxu0 %v2612
    %2641 = vmatprep.subr.mxu0 0.0
    %2642 = vmatpush1.msra.mxu0 %v2613
    %2643 = vmatprep.subr.mxu0 0.0
    %2644 = vmatpush1.msra.mxu0 %v2614
    %2645 = vmatprep.subr.mxu0 0.0
    %2646 = vmatpush1.msra.mxu0 %v2615
    %2647 = vmatprep.subr.mxu0 0.0
    %2648 = vmatpush1.msra.mxu0 %v2616
    %2649 = vmatprep.subr.mxu0 0.0
    %2650 = vmatpush1.msra.mxu0 %v2617
    %2651 = vmatprep.subr.mxu0 0.0
    %2652 = vmatpush1.msra.mxu0 %v2618
    %2653 = vmatprep.subr.mxu0 0.0
    %2654 = vmatpush1.msra.mxu0 %v2619
    %2655 = vmatprep.subr.mxu0 0.0
    %2656 = vmatpush1.msra.mxu0 %v2620
    %2657 = vmatprep.subr.mxu0 0.0
    %2658 = vmatpush1.msra.mxu0 0.0
    %2659 = vmatprep.subr.mxu0 0.0
    %2660 = vmatpush1.msra.mxu0 0.0
    %2661 = vmatprep.subr.mxu0 0.0
    %2662 = vmatpush1.msra.mxu0 0.0
    %2663 = vmatprep.subr.mxu0 0.0
    %2664 = vmatpush1.msra.mxu0 0.0
    %2665 = vmatprep.subr.mxu0 0.0
    %2666 = vmatpush1.msra.mxu0 0.0
    %2667 = vmatprep.subr.mxu0 0.0
    %2668 = vmatpush1.msra.mxu0 0.0
    %2669 = vmatprep.subr.mxu0 0.0
    %2670 = vmatpush1.msra.mxu0 0.0
    %2671 = vmatprep.subr.mxu0 0.0
    %2672 = vmatpush1.msra.mxu0 0.0
    %2673 = vmatprep.subr.mxu0 0.0
    %2674 = vmatpush1.msra.mxu0 0.0
    %2675 = vmatprep.subr.mxu0 0.0
    %2676 = vmatpush1.msra.mxu0 0.0
    %2677 = vmatprep.subr.mxu0 0.0
    %2678 = vmatpush1.msra.mxu0 0.0
    %2679 = vmatprep.subr.mxu0 0.0
    %2680 = vmatpush1.msra.mxu0 0.0
    %2681 = vmatprep.subr.mxu0 0.0
    %2682 = vmatpush1.msra.mxu0 0.0
    %2683 = vmatprep.subr.mxu0 0.0
    %2684 = vmatpush1.msra.mxu0 0.0
    %2685 = vmatprep.subr.mxu0 0.0
    %2686 = vmatpush1.msra.mxu0 0.0
    %2687 = vmatprep.subr.mxu0 0.0
    %2688 = vmatpush1.msra.mxu0 0.0
    %2689 = vmatprep.mubr.f32.mxu0 0.0
    %2690 = vmatmul.mubr.f32.gmra.mrb[0].mxu0 %v2596
    %v2691 = vpop.f32.mrb[0].mxu0
    %v2692 = vadd.f32 %v2624, %v2691
    %v2693 = vpop.f32.mrb[0].mxu0
    %2694 = vmatprep.mubr.f32.mxu0 0.0
    %2695 = vmatmul.mubr.f32.gmra.mrb[0].mxu0 %v2597
    %v2696 = vpop.f32.mrb[0].mxu0
    %v2697 = vadd.f32 %v2624, %v2696
    %v2698 = vpop.f32.mrb[0].mxu0
    %2699 = vmatprep.mubr.f32.mxu0 0.0
    %2700 = vmatmul.mubr.f32.gmra.mrb[0].mxu0 %v2598
    %v2701 = vpop.f32.mrb[0].mxu0
    %v2702 = vadd.f32 %v2624, %v2701
    %v2703 = vpop.f32.mrb[0].mxu0
    %2704 = vmatprep.mubr.f32.mxu0 0.0
    %2705 = vmatmul.mubr.f32.gmra.mrb[0].mxu0 %v2599
    %v2706 = vpop.f32.mrb[0].mxu0
    %v2707 = vadd.f32 %v2624, %v2706
    %v2708 = vpop.f32.mrb[0].mxu0
    %2709 = vmatprep.mubr.f32.mxu0 0.0
    %2710 = vmatmul.mubr.f32.gmra.mrb[0].mxu0 %v2600
    %v2711 = vpop.f32.mrb[0].mxu0
    %v2712 = vadd.f32 %v2624, %v2711
    %v2713 = vpop.f32.mrb[0].mxu0
    %2714 = vmatprep.mubr.f32.mxu0 0.0
    %2715 = vmatmul.mubr.f32.gmra.mrb[0].mxu0 %v2601
    %v2716 = vpop.f32.mrb[0].mxu0
    %v2717 = vadd.f32 %v2624, %v2716
    %v2718 = vpop.f32.mrb[0].mxu0
    %2719 = vmatprep.mubr.f32.mxu0 0.0
    %2720 = vmatmul.mubr.f32.gmra.mrb[0].mxu0 %v2602
    %v2721 = vpop.f32.mrb[0].mxu0
    %v2722 = vadd.f32 %v2624, %v2721
    %v2723 = vpop.f32.mrb[0].mxu0
    %2724 = vmatprep.mubr.f32.mxu0 0.0
    %2725 = vmatmul.mubr.f32.gmra.mrb[0].mxu0 %v2603
    %v2726 = vpop.f32.mrb[0].mxu0
    %v2727 = vadd.f32 %v2624, %v2726
    %v2728 = vpop.f32.mrb[0].mxu0
    %2729 = vdwg.mxu0
    %v2730 = vmax.f32 %v2692, 0.0
    %v2731 = vmax.f32 %v2697, 0.0
    %v2732 = vmax.f32 %v2702, 0.0
    %v2733 = vmax.f32 %v2707, 0.0
    %v2734 = vmax.f32 %v2712, 0.0
    %v2735 = vmax.f32 %v2717, 0.0
    %v2736 = vmax.f32 %v2722, 0.0
    %v2737 = vmax.f32 %v2727, 0.0
    %s2738 = scalar_lea.vmem [#allocation2], 512
    %v2739 = vld [vmem:[%s2738] sm:$0xff]
    %v2740 = vld [vmem:[%s2738 + $0x8] sm:$0xff]
    %v2741 = vld [vmem:[%s2738 + $0x10] sm:$0xff]
    %v2742 = vld [vmem:[%s2738 + $0x18] sm:$0xff]
    %v2743 = vld [vmem:[%s2738 + $0x20] sm:$0xff]
    %v2744 = vld [vmem:[%s2738 + $0x28] sm:$0xff]
    %v2745 = vld [vmem:[%s2738 + $0x30] sm:$0xff]
    %v2746 = vld [vmem:[%s2738 + $0x38] sm:$0xff]
    %v2747 = vld [vmem:[%s2738 + $0x40] sm:$0xff]
    %v2748 = vld [vmem:[%s2738 + $0x48] sm:$0xff]
    %v2749 = vld [vmem:[%s2738 + $0x50] sm:$0xff]
    %v2750 = vld [vmem:[%s2738 + $0x58] sm:$0xff]
    %v2751 = vld [vmem:[%s2738 + $0x60] sm:$0xff]
    %v2752 = vld [vmem:[%s2738 + $0x68] sm:$0xff]
    %v2753 = vld [vmem:[%s2738 + $0x70] sm:$0xff]
    %v2754 = vld [vmem:[%s2738 + $0x78] sm:$0xff]
    %v2755 = vlaneseq
    %v2756 = vshrl.u32 %v2755, 7
    %v2757 = vsub.s32 5, %v2756
    %v2758 = vrot.slane %v72, %v2757
    %2759 = vmatprep.subr.mxu0 0.0
    %2760 = vmatpush1.msra.mxu0 %v2739
    %2761 = vmatprep.subr.mxu0 0.0
    %2762 = vmatpush1.msra.mxu0 %v2740
    %2763 = vmatprep.subr.mxu0 0.0
    %2764 = vmatpush1.msra.mxu0 %v2741
    %2765 = vmatprep.subr.mxu0 0.0
    %2766 = vmatpush1.msra.mxu0 %v2742
    %2767 = vmatprep.subr.mxu0 0.0
    %2768 = vmatpush1.msra.mxu0 %v2743
    %2769 = vmatprep.subr.mxu0 0.0
    %2770 = vmatpush1.msra.mxu0 %v2744
    %2771 = vmatprep.subr.mxu0 0.0
    %2772 = vmatpush1.msra.mxu0 %v2745
    %2773 = vmatprep.subr.mxu0 0.0
    %2774 = vmatpush1.msra.mxu0 %v2746
    %2775 = vmatprep.subr.mxu0 0.0
    %2776 = vmatpush1.msra.mxu0 %v2747
    %2777 = vmatprep.subr.mxu0 0.0
    %2778 = vmatpush1.msra.mxu0 %v2748
    %2779 = vmatprep.subr.mxu0 0.0
    %2780 = vmatpush1.msra.mxu0 %v2749
    %2781 = vmatprep.subr.mxu0 0.0
    %2782 = vmatpush1.msra.mxu0 %v2750
    %2783 = vmatprep.subr.mxu0 0.0
    %2784 = vmatpush1.msra.mxu0 %v2751
    %2785 = vmatprep.subr.mxu0 0.0
    %2786 = vmatpush1.msra.mxu0 %v2752
    %2787 = vmatprep.subr.mxu0 0.0
    %2788 = vmatpush1.msra.mxu0 %v2753
    %2789 = vmatprep.subr.mxu0 0.0
    %2790 = vmatpush1.msra.mxu0 %v2754
    %2791 = vmatprep.subr.mxu0 0.0
    %2792 = vmatpush1.msra.mxu0 0.0
    %2793 = vmatprep.subr.mxu0 0.0
    %2794 = vmatpush1.msra.mxu0 0.0
    %2795 = vmatprep.subr.mxu0 0.0
    %2796 = vmatpush1.msra.mxu0 0.0
    %2797 = vmatprep.subr.mxu0 0.0
    %2798 = vmatpush1.msra.mxu0 0.0
    %2799 = vmatprep.subr.mxu0 0.0
    %2800 = vmatpush1.msra.mxu0 0.0
    %2801 = vmatprep.subr.mxu0 0.0
    %2802 = vmatpush1.msra.mxu0 0.0
    %2803 = vmatprep.subr.mxu0 0.0
    %2804 = vmatpush1.msra.mxu0 0.0
    %2805 = vmatprep.subr.mxu0 0.0
    %2806 = vmatpush1.msra.mxu0 0.0
    %2807 = vmatprep.subr.mxu0 0.0
    %2808 = vmatpush1.msra.mxu0 0.0
    %2809 = vmatprep.subr.mxu0 0.0
    %2810 = vmatpush1.msra.mxu0 0.0
    %2811 = vmatprep.subr.mxu0 0.0
    %2812 = vmatpush1.msra.mxu0 0.0
    %2813 = vmatprep.subr.mxu0 0.0
    %2814 = vmatpush1.msra.mxu0 0.0
    %2815 = vmatprep.subr.mxu0 0.0
    %2816 = vmatpush1.msra.mxu0 0.0
    %2817 = vmatprep.subr.mxu0 0.0
    %2818 = vmatpush1.msra.mxu0 0.0
    %2819 = vmatprep.subr.mxu0 0.0
    %2820 = vmatpush1.msra.mxu0 0.0
    %2821 = vmatprep.subr.mxu0 0.0
    %2822 = vmatpush1.msra.mxu0 0.0
    %2823 = vmatprep.mubr.f32.mxu0 0.0
    %2824 = vmatmul.mubr.f32.gmra.mrb[0].mxu0 %v2730
    %v2825 = vpop.f32.mrb[0].mxu0
    %v2826 = vadd.f32 %v2758, %v2825
    %v2827 = vpop.f32.mrb[0].mxu0
    %2828 = vmatprep.mubr.f32.mxu0 0.0
    %2829 = vmatmul.mubr.f32.gmra.mrb[0].mxu0 %v2731
    %v2830 = vpop.f32.mrb[0].mxu0
    %v2831 = vadd.f32 %v2758, %v2830
    %v2832 = vpop.f32.mrb[0].mxu0
    %2833 = vmatprep.mubr.f32.mxu0 0.0
    %2834 = vmatmul.mubr.f32.gmra.mrb[0].mxu0 %v2732
    %v2835 = vpop.f32.mrb[0].mxu0
    %v2836 = vadd.f32 %v2758, %v2835
    %v2837 = vpop.f32.mrb[0].mxu0
    %2838 = vmatprep.mubr.f32.mxu0 0.0
    %2839 = vmatmul.mubr.f32.gmra.mrb[0].mxu0 %v2733
    %v2840 = vpop.f32.mrb[0].mxu0
    %v2841 = vadd.f32 %v2758, %v2840
    %v2842 = vpop.f32.mrb[0].mxu0
    %2843 = vmatprep.mubr.f32.mxu0 0.0
    %2844 = vmatmul.mubr.f32.gmra.mrb[0].mxu0 %v2734
    %v2845 = vpop.f32.mrb[0].mxu0
    %v2846 = vadd.f32 %v2758, %v2845
    %v2847 = vpop.f32.mrb[0].mxu0
    %2848 = vmatprep.mubr.f32.mxu0 0.0
    %2849 = vmatmul.mubr.f32.gmra.mrb[0].mxu0 %v2735
    %v2850 = vpop.f32.mrb[0].mxu0
    %v2851 = vadd.f32 %v2758, %v2850
    %v2852 = vpop.f32.mrb[0].mxu0
    %2853 = vmatprep.mubr.f32.mxu0 0.0
    %2854 = vmatmul.mubr.f32.gmra.mrb[0].mxu0 %v2736
    %v2855 = vpop.f32.mrb[0].mxu0
    %v2856 = vadd.f32 %v2758, %v2855
    %v2857 = vpop.f32.mrb[0].mxu0
    %2858 = vmatprep.mubr.f32.mxu0 0.0
    %2859 = vmatmul.mubr.f32.gmra.mrb[0].mxu0 %v2737
    %v2860 = vpop.f32.mrb[0].mxu0
    %v2861 = vadd.f32 %v2758, %v2860
    %v2862 = vpop.f32.mrb[0].mxu0
    %2863 = vdwg.mxu0
    %v2864 = vlaneseq
    %v2865 = vand.u32 %v2864, 127
    %vm2866 = vcmp.lt.s32.totalorder %v2865, 16
    %v2867 = vmax.f32 %v2826, 0.0
    %v2868 = vmax.f32 %v2831, 0.0
    %v2869 = vmax.f32 %v2836, 0.0
    %v2870 = vmax.f32 %v2841, 0.0
    %v2871 = vmax.f32 %v2846, 0.0
    %v2872 = vmax.f32 %v2851, 0.0
    %v2873 = vmax.f32 %v2856, 0.0
    %v2874 = vmax.f32 %v2861, 0.0
    %vm2875 = vcmp.ne.f32.partialorder %v2826, %v2826
    %vm2876 = vcmp.ne.f32.partialorder %v2831, %v2831
    %vm2877 = vcmp.ne.f32.partialorder %v2836, %v2836
    %vm2878 = vcmp.ne.f32.partialorder %v2841, %v2841
    %vm2879 = vcmp.ne.f32.partialorder %v2846, %v2846
    %vm2880 = vcmp.ne.f32.partialorder %v2851, %v2851
    %vm2881 = vcmp.ne.f32.partialorder %v2856, %v2856
    %vm2882 = vcmp.ne.f32.partialorder %v2861, %v2861
    %v2883 = vadd.f32 %v2826, 0.0
    %v2884 = vadd.f32 %v2831, 0.0
    %v2885 = vadd.f32 %v2836, 0.0
    %v2886 = vadd.f32 %v2841, 0.0
    %v2887 = vadd.f32 %v2846, 0.0
    %v2888 = vadd.f32 %v2851, 0.0
    %v2889 = vadd.f32 %v2856, 0.0
    %v2890 = vadd.f32 %v2861, 0.0
    %v2891 = vand.u32 2147483647, %v2826
    %v2892 = vand.u32 2147483647, %v2831
    %v2893 = vand.u32 2147483647, %v2836
    %v2894 = vand.u32 2147483647, %v2841
    %v2895 = vand.u32 2147483647, %v2846
    %v2896 = vand.u32 2147483647, %v2851
    %v2897 = vand.u32 2147483647, %v2856
    %v2898 = vand.u32 2147483647, %v2861
    %v2899 = vsub.f32 0.0, %v2891
    %v2900 = vsub.f32 0.0, %v2892
    %v2901 = vsub.f32 0.0, %v2893
    %v2902 = vsub.f32 0.0, %v2894
    %v2903 = vsub.f32 0.0, %v2895
    %v2904 = vsub.f32 0.0, %v2896
    %v2905 = vsub.f32 0.0, %v2897
    %v2906 = vsub.f32 0.0, %v2898
    %v2907 = vmul.f32 %v2899, 1.442695
    %v2908 = vpow.pop %v2907
    %v2909 = vmul.f32 %v2900, 1.442695
    %v2910 = vpow.pop %v2909
    %v2911 = vmul.f32 %v2901, 1.442695
    %v2912 = vpow.pop %v2911
    %v2913 = vmul.f32 %v2902, 1.442695
    %v2914 = vpow.pop %v2913
    %v2915 = vmul.f32 %v2903, 1.442695
    %v2916 = vpow.pop %v2915
    %v2917 = vmul.f32 %v2904, 1.442695
    %v2918 = vpow.pop %v2917
    %v2919 = vmul.f32 %v2905, 1.442695
    %v2920 = vpow.pop %v2919
    %v2921 = vmul.f32 %v2906, 1.442695
    %v2922 = vpow.pop %v2921
    %v2923 = vadd.f32 %v2908, 1.0
    %v2924 = vlog2.pop %v2923
    %v2925 = vmul.f32 %v2924, 0.6931472
    %v2926 = vmul.f32 -0.5, %v2908
    %v2927 = vadd.f32 %v2926, 1.0
    %v2928 = vmul.f32 %v2927, %v2908
    %v2929 = vand.u32 2147483647, %v2908
    %vm2930 = vcmp.lt.f32.partialorder %v2929, 0.0004427343
    %v2931 = vsel %vm2930, %v2928, %v2925
    %v2932 = vadd.f32 %v2910, 1.0
    %v2933 = vlog2.pop %v2932
    %v2934 = vmul.f32 %v2933, 0.6931472
    %v2935 = vmul.f32 -0.5, %v2910
    %v2936 = vadd.f32 %v2935, 1.0
    %v2937 = vmul.f32 %v2936, %v2910
    %v2938 = vand.u32 2147483647, %v2910
    %vm2939 = vcmp.lt.f32.partialorder %v2938, 0.0004427343
    %v2940 = vsel %vm2939, %v2937, %v2934
    %v2941 = vadd.f32 %v2912, 1.0
    %v2942 = vlog2.pop %v2941
    %v2943 = vmul.f32 %v2942, 0.6931472
    %v2944 = vmul.f32 -0.5, %v2912
    %v2945 = vadd.f32 %v2944, 1.0
    %v2946 = vmul.f32 %v2945, %v2912
    %v2947 = vand.u32 2147483647, %v2912
    %vm2948 = vcmp.lt.f32.partialorder %v2947, 0.0004427343
    %v2949 = vsel %vm2948, %v2946, %v2943
    %v2950 = vadd.f32 %v2914, 1.0
    %v2951 = vlog2.pop %v2950
    %v2952 = vmul.f32 %v2951, 0.6931472
    %v2953 = vmul.f32 -0.5, %v2914
    %v2954 = vadd.f32 %v2953, 1.0
    %v2955 = vmul.f32 %v2954, %v2914
    %v2956 = vand.u32 2147483647, %v2914
    %vm2957 = vcmp.lt.f32.partialorder %v2956, 0.0004427343
    %v2958 = vsel %vm2957, %v2955, %v2952
    %v2959 = vadd.f32 %v2916, 1.0
    %v2960 = vlog2.pop %v2959
    %v2961 = vmul.f32 %v2960, 0.6931472
    %v2962 = vmul.f32 -0.5, %v2916
    %v2963 = vadd.f32 %v2962, 1.0
    %v2964 = vmul.f32 %v2963, %v2916
    %v2965 = vand.u32 2147483647, %v2916
    %vm2966 = vcmp.lt.f32.partialorder %v2965, 0.0004427343
    %v2967 = vsel %vm2966, %v2964, %v2961
    %v2968 = vadd.f32 %v2918, 1.0
    %v2969 = vlog2.pop %v2968
    %v2970 = vmul.f32 %v2969, 0.6931472
    %v2971 = vmul.f32 -0.5, %v2918
    %v2972 = vadd.f32 %v2971, 1.0
    %v2973 = vmul.f32 %v2972, %v2918
    %v2974 = vand.u32 2147483647, %v2918
    %vm2975 = vcmp.lt.f32.partialorder %v2974, 0.0004427343
    %v2976 = vsel %vm2975, %v2973, %v2970
    %v2977 = vadd.f32 %v2920, 1.0
    %v2978 = vlog2.pop %v2977
    %v2979 = vmul.f32 %v2978, 0.6931472
    %v2980 = vmul.f32 -0.5, %v2920
    %v2981 = vadd.f32 %v2980, 1.0
    %v2982 = vmul.f32 %v2981, %v2920
    %v2983 = vand.u32 2147483647, %v2920
    %vm2984 = vcmp.lt.f32.partialorder %v2983, 0.0004427343
    %v2985 = vsel %vm2984, %v2982, %v2979
    %v2986 = vadd.f32 %v2922, 1.0
    %v2987 = vlog2.pop %v2986
    %v2988 = vmul.f32 %v2987, 0.6931472
    %v2989 = vmul.f32 -0.5, %v2922
    %v2990 = vadd.f32 %v2989, 1.0
    %v2991 = vmul.f32 %v2990, %v2922
    %v2992 = vand.u32 2147483647, %v2922
    %vm2993 = vcmp.lt.f32.partialorder %v2992, 0.0004427343
    %v2994 = vsel %vm2993, %v2991, %v2988
    %v2995 = vadd.f32 %v2867, %v2931
    %v2996 = vadd.f32 %v2868, %v2940
    %v2997 = vadd.f32 %v2869, %v2949
    %v2998 = vadd.f32 %v2870, %v2958
    %v2999 = vadd.f32 %v2871, %v2967
    %v3000 = vadd.f32 %v2872, %v2976
    %v3001 = vadd.f32 %v2873, %v2985
    %v3002 = vadd.f32 %v2874, %v2994
    %v3003 = vsel %vm2875, %v2883, %v2995
    %v3004 = vsel %vm2876, %v2884, %v2996
    %v3005 = vsel %vm2877, %v2885, %v2997
    %v3006 = vsel %vm2878, %v2886, %v2998
    %v3007 = vsel %vm2879, %v2887, %v2999
    %v3008 = vsel %vm2880, %v2888, %v3000
    %v3009 = vsel %vm2881, %v2889, %v3001
    %v3010 = vsel %vm2882, %v2890, %v3002
    %v3011 = vmul.f32 %v3003, 0.9
    %v3012 = vmul.f32 %v3004, 0.9
    %v3013 = vmul.f32 %v3005, 0.9
    %v3014 = vmul.f32 %v3006, 0.9
    %v3015 = vmul.f32 %v3007, 0.9
    %v3016 = vmul.f32 %v3008, 0.9
    %v3017 = vmul.f32 %v3009, 0.9
    %v3018 = vmul.f32 %v3010, 0.9
    %v3019 = vadd.f32 %v3011, 0.1
    %v3020 = vadd.f32 %v3012, 0.1
    %v3021 = vadd.f32 %v3013, 0.1
    %v3022 = vadd.f32 %v3014, 0.1
    %v3023 = vadd.f32 %v3015, 0.1
    %v3024 = vadd.f32 %v3016, 0.1
    %v3025 = vadd.f32 %v3017, 0.1
    %v3026 = vadd.f32 %v3018, 0.1
    %v3027 = vsel %vm2866, %v2826, %v3019
    %v3028 = vsel %vm2866, %v2831, %v3020
    %v3029 = vsel %vm2866, %v2836, %v3021
    %v3030 = vsel %vm2866, %v2841, %v3022
    %v3031 = vsel %vm2866, %v2846, %v3023
    %v3032 = vsel %vm2866, %v2851, %v3024
    %v3033 = vsel %vm2866, %v2856, %v3025
    %v3034 = vsel %vm2866, %v2861, %v3026
    %3035 = vst [vmem:[%s5] sm:$0xff] %v3027
    %3036 = vst [vmem:[%s5 + $0x8] sm:$0xff] %v3028
    %3037 = vst [vmem:[%s5 + $0x10] sm:$0xff] %v3029
    %3038 = vst [vmem:[%s5 + $0x18] sm:$0xff] %v3030
    %3039 = vst [vmem:[%s5 + $0x20] sm:$0xff] %v3031
    %3040 = vst [vmem:[%s5 + $0x28] sm:$0xff] %v3032
    %3041 = vst [vmem:[%s5 + $0x30] sm:$0xff] %v3033
    %3042 = vst [vmem:[%s5 + $0x38] sm:$0xff] %v3034
    // Predicated region
    $region30: #{_decoder_apply.1} parent=1 // pred_check
      _
    $region31: #{_decoder_apply.1} parent=1 // pred_check_branch
      %3044 = sbr.rel (0) target = $region33
    $region32: #{_decoder_apply.1} parent=1 // pred_region
      _
    $region33: #{_decoder_apply.1} parent=1 // pred_fallthru
      _
    // Predicated region
    $region34: #{_decoder_apply.1} parent=1 // pred_check
      _
    $region35: #{_decoder_apply.1} parent=1 // pred_check_branch
      %3046 = sbr.rel (0) target = $region37
    $region36: #{_decoder_apply.1} parent=1 // pred_region
      _
    $region37: #{_decoder_apply.1} parent=1 // pred_fallthru
      _
    %3047 = vsyncpa [#allocation5], 1
    %3048 = vsyncpa [#allocation6], 1
  %3049 = vsyncmov [#allocation3]
  %s3050 = vpop.sfrf %3049
  %p3051 = scmp.eq.s32.totalorder %s3050, 0
  %p3052 = pneg %p3051
  %3054 = shalt.err (%p3052)

</llo_original>
